<compile_context>
chip_gen: v5e
topology: v5e:2x2
jax: 0.10.0
libtpu: 0.0.40
codegen_flags: <defaults>
</compile_context>

<pallas_src>
import math

import jax
import jax.numpy as jnp
from jax.experimental import pallas as pl
from jax.experimental.pallas import tpu as pltpu

VMEM = pltpu.MemorySpace.VMEM
F32 = jnp.float32
BF16 = jnp.bfloat16

D = 128            # universal padded lane width of every activation
LN_EPS = 1e-5

# vec-slab row layout (see pack_hminet_params)
R_BL = 0           # rows 0..5 : MFL layer biases
R_PE1 = 6          # row  6    : positional encoding (d = 2*cd), position 0
R_PE2 = 7          # row  7    : positional encoding (d = cd), position 0
R_ENC = 8          # rows 8..  : 7 rows per enc1 layer, then 7 rows per enc2 layer


# ----------------------------------------------------------------------------
# Synthetic parameter construction (deterministic; no checkpoint load)
# ----------------------------------------------------------------------------
def _linear_params(key, din, dout, bias=True):
    scale = 1.0 / math.sqrt(din)
    kw, kb = jax.random.split(key)
    w = jax.random.uniform(kw, (din, dout), F32, -scale, scale)
    b = (jax.random.uniform(kb, (1, dout), F32, -scale, scale)
         if bias else jnp.zeros((1, dout), F32))
    return w, b


def _mfl_params(key, din, dout, dctx):
    k1, k2, k3 = jax.random.split(key, 3)
    wl, bl = _linear_params(k1, din, dout)                 # self._layer
    wg, bg = _linear_params(k2, dctx, dout)                # self._hyper_gate
    wb, _ = _linear_params(k3, dctx, dout, bias=False)     # self._hyper_bias (no bias)
    return dict(wl=wl, bl=bl, wg=wg, bg=bg, wb=wb)


def _encoder_layer_params(key, d, dff):
    ks = jax.random.split(key, 4)
    wv, bv = _linear_params(ks[0], d, d)   # V rows of in_proj (only slice used @ seq=1)
    wo, bo = _linear_params(ks[1], d, d)   # self_attn.out_proj
    w1, b1 = _linear_params(ks[2], d, dff)
    w2, b2 = _linear_params(ks[3], dff, d)
    return dict(wv=wv, bv=bv, wo=wo, bo=bo, w1=w1, b1=b1, w2=w2, b2=b2,
                g1=jnp.ones((1, d), F32), be1=jnp.zeros((1, d), F32),
                g2=jnp.ones((1, d), F32), be2=jnp.zeros((1, d), F32))


def _positional_encoding_row0(d_model):
    # pe[position=0]: sin(0) interleaved with cos(0) -> [0, 1, 0, 1, ...]
    div = jnp.exp(jnp.arange(0, d_model, 2, dtype=F32) * (-math.log(10000.0) / d_model))
    pe = jnp.zeros((d_model,), F32)
    pe = pe.at[0::2].set(jnp.sin(0.0 * div))
    pe = pe.at[1::2].set(jnp.cos(0.0 * div))
    return pe.reshape(1, d_model)


def make_hminet_raw_params(key, point_dim=4, context_dim=64, tf_layer=3):
    cd = context_dim
    dctx = cd + 3
    dins = (point_dim, cd // 2, cd, 2 * cd, cd, cd // 2)
    douts = (cd // 2, cd, 2 * cd, cd, cd // 2, point_dim)
    keys = jax.random.split(key, 6 + 2 * tf_layer)
    mfls = [_mfl_params(keys[i], dins[i], douts[i], dctx) for i in range(6)]
    enc1 = [_encoder_layer_params(keys[6 + i], 2 * cd, 4 * cd) for i in range(tf_layer)]
    enc2 = [_encoder_layer_params(keys[6 + tf_layer + i], cd, 2 * cd)
            for i in range(tf_layer)]
    return dict(point_dim=point_dim, context_dim=cd, tf_layer=tf_layer, dctx=dctx,
                dins=dins, douts=douts, mfls=mfls, enc1=enc1, enc2=enc2,
                pe1=_positional_encoding_row0(2 * cd), pe2=_positional_encoding_row0(cd))


# ----------------------------------------------------------------------------
# Packing into a handful of lane-dense slabs
# ----------------------------------------------------------------------------
def _pad2(a, rows, cols):
    a = a.astype(F32)
    return jnp.pad(a, ((0, rows - a.shape[0]), (0, cols - a.shape[1])))


def pack_hminet_params(raw):
    """Pack all weights into 5 lane-dense slabs (matrices in bf16, vectors in f32)."""
    cd, dctx = raw["context_dim"], raw["dctx"]
    dins, douts = raw["dins"], raw["douts"]
    d1, dff1, d2, dff2 = 2 * cd, 4 * cd, cd, 2 * cd
    assert d1 == D and dff1 == 2 * D and d2 <= D and dff2 <= D
    assert max(douts) <= D and max(dins) <= D and dctx < D
    hi = jax.lax.Precision.HIGHEST

    # --- ctx-projection slab: 6 hyper-gates + 6 hyper-biases, one matmul.
    # The wrapper sets ctx lane `dctx` to 1.0, so the gate biases fold into row dctx.
    blocks = []
    for i, m in enumerate(raw["mfls"]):                    # gate slots 0..5
        blk = jnp.zeros((D, D), F32)
        blk = blk.at[:dctx, :douts[i]].set(m["wg"])
        blk = blk.at[dctx, :douts[i]].set(m["bg"][0])
        blocks.append(blk)
    for i, m in enumerate(raw["mfls"]):                    # hyper-bias slots 6..11
        blk = jnp.zeros((D, D), F32)
        blk = blk.at[:dctx, :douts[i]].set(m["wb"])
        blocks.append(blk)
    wctx = jnp.concatenate(blocks, axis=1).astype(BF16)    # (128, 12*128)

    # --- "early" matrix slab: MFL0-2 layer weights + enc1 (wvo, w2) per layer.
    early = [_pad2(raw["mfls"][i]["wl"], D, D) for i in range(3)]
    for lp in raw["enc1"]:
        wvo = jnp.dot(lp["wv"], lp["wo"], precision=hi)    # fold seq_len==1 attention
        early.append(_pad2(wvo, D, D))
        early.append(_pad2(lp["w2"], 2 * D, D))
    w_early = jnp.concatenate(early, axis=0).astype(BF16)  # (12*128, 128)

    # --- "late" matrix slab (overlapped manual DMA): MFL3-5 + enc2 (wvo, w1, w2).
    late = [_pad2(raw["mfls"][i]["wl"], D, D) for i in (3, 4, 5)]
    for lp in raw["enc2"]:
        wvo = jnp.dot(lp["wv"], lp["wo"], precision=hi)
        late.append(_pad2(wvo, D, D))
        late.append(_pad2(lp["w1"], D, D))
        late.append(_pad2(lp["w2"], D, D))
    w_late = jnp.concatenate(late, axis=0).astype(BF16)    # (12*128, 128)

    # --- enc1 linear1 (128 -> 256) slab.
    wff1 = jnp.concatenate([_pad2(lp["w1"], D, 2 * D) for lp in raw["enc1"]],
                           axis=0).astype(BF16)            # (3*128, 256)

    # --- vector slab: biases / LN affine / positional encodings (one row each).
    rows = [_pad2(raw["mfls"][i]["bl"], 1, 2 * D) for i in range(6)]
    rows.append(_pad2(raw["pe1"], 1, 2 * D))
    rows.append(_pad2(raw["pe2"], 1, 2 * D))
    for lp in raw["enc1"] + raw["enc2"]:
        bvo = jnp.dot(lp["bv"], lp["wo"], precision=hi) + lp["bo"]
        for v in (bvo, lp["b1"], lp["b2"], lp["g1"], lp["be1"], lp["g2"], lp["be2"]):
            rows.append(_pad2(v, 1, 2 * D))
    vec = jnp.concatenate(rows, axis=0)
    vec = jnp.pad(vec, ((0, (-vec.shape[0]) % 8), (0, 0)))  # sublane-pad rows

    return dict(wctx=wctx, w_early=w_early, w_late=w_late, wff1=wff1, vec=vec)


# ----------------------------------------------------------------------------
# Shared network body (traced inside the Pallas kernel AND by the JAX reference)
# ----------------------------------------------------------------------------
def _run_network(gb, h, n_enc, d2, get_early, get_ff1, get_late, get_vec,
                 before_stage2=None):
    """All activations are zero-padded to 128 lanes; padded lanes stay exactly 0."""

    def mfl(i, h, get_w, row0):
        # ConcatSquashLinear: layer(x) * sigmoid(hyper_gate(ctx)) + hyper_bias(ctx).
        lin = jnp.dot(h, get_w(row0, D), preferred_element_type=F32) + get_vec(R_BL + i, D)
        gate = jax.nn.sigmoid(gb[:, i * D:(i + 1) * D])
        return lin * gate + gb[:, (6 + i) * D:(7 + i) * D]

    def layernorm(h, d, g, b):
        # Two independent cross-lane reductions (sum, sum-of-squares).
        inv_d = 1.0 / d
        m = jnp.sum(h, axis=-1, keepdims=True) * inv_d
        s = jnp.sum(h * h, axis=-1, keepdims=True) * inv_d
        return (h - m) * jax.lax.rsqrt(s - m * m + LN_EPS) * g + b

    def enc_layer(h, d, attn_w, ff1_w, ff2_w, v0):
        # Post-norm TransformerEncoderLayer at seq_len==1: softmax over one key is 1,
        # so self-attention == out_proj(V) == a single (folded) linear.
        attn = jnp.dot(h, attn_w, preferred_element_type=F32) + get_vec(v0, D)
        h = layernorm(h + attn, d, get_vec(v0 + 3, D), get_vec(v0 + 4, D))
        ff = jnp.maximum(
            jnp.dot(h, ff1_w, preferred_element_type=F32)
            + get_vec(v0 + 1, ff1_w.shape[1]), 0.0)
        ff = jnp.dot(ff, ff2_w, preferred_element_type=F32) + get_vec(v0 + 2, D)
        return layernorm(h + ff, d, get_vec(v0 + 5, D), get_vec(v0 + 6, D))

    # Stage 1: concat1 -> concat1_2 -> concat1_3 -> pos_emb -> transformer_encoder.
    h = mfl(0, h, get_early, 0)
    h = mfl(1, h, get_early, D)
    h = mfl(2, h, get_early, 2 * D)
    h = h + get_vec(R_PE1, D)
    for l in range(n_enc):
        base = 3 * D + 3 * D * l
        h = enc_layer(h, float(D), get_early(base, D), get_ff1(l * D, D),
                      get_early(base + D, 2 * D), R_ENC + 7 * l)

    if before_stage2 is not None:
        before_stage2()      # in-kernel: wait for the stage-2 weight DMA

    # Stage 2: concat3 -> pos_emb2 -> transformer_encoder2 -> concat4 -> linear.
    h = mfl(3, h, get_late, 0)
    h = h + get_vec(R_PE2, D)
    for l in range(n_enc):
        base = 3 * D + 3 * D * l
        h = enc_layer(h, d2, get_late(base, D), get_late(base + D, D),
                      get_late(base + 2 * D, D), R_ENC + 7 * (n_enc + l))
    h = mfl(4, h, get_late, D)
    return mfl(5, h, get_late, 2 * D)


def _build_act(x, beta, context):
    """(B, 2*D) activation slab: lanes [0:pd)=x, [D:D+dctx)=ctx_emb, lane D+dctx=1."""
    B, point_dim = x.shape
    beta = beta.reshape(B, 1).astype(F32)
    context = context.reshape(B, -1).astype(F32)
    dctx = context.shape[1] + 3
    ctx_emb = jnp.concatenate(
        [beta, jnp.sin(beta), jnp.cos(beta), context,
         jnp.ones((B, 1), F32),                   # bias lane (folded hyper-gate bias)
         jnp.zeros((B, D - dctx - 1), F32)], axis=-1)
    return jnp.concatenate(
        [x.astype(F32), jnp.zeros((B, D - point_dim), F32), ctx_emb], axis=-1)


# ----------------------------------------------------------------------------
# Fused forward: one pallas_call for the whole network
# ----------------------------------------------------------------------------
def hminet_forward(packed, x, beta, context):
    B, point_dim = x.shape
    cd = context.reshape(B, -1).shape[1]
    assert 2 * cd == D
    act = _build_act(x, beta, context)
    n_enc = packed["wff1"].shape[0] // D
    w_late_shape = packed["w_late"].shape

    def kernel(act_ref, wctx_ref, wearly_ref, wff1_ref, vec_ref, wlate_hbm,
               out_ref, wlate_vmem, dma_sem):
        # Prefetch stage-2 weights (MFL3-5 + encoder stack 2) behind stage-1 compute.
        late_cp = pltpu.make_async_copy(wlate_hbm, wlate_vmem, dma_sem)
        late_cp.start()

        xin = act_ref[...]
        h0 = xin[:, :D]           # x, zero-padded to 128 lanes
        ctx = xin[:, D:]          # [beta, sin, cos, context, 1, 0...]

        # All 12 ctx-side projections (gates + hyper-biases) in ONE lane-dense matmul.
        gb = jnp.dot(ctx, wctx_ref[...].astype(F32), preferred_element_type=F32)

        get_early = lambda r, n: wearly_ref[pl.ds(r, n), :].astype(F32)
        get_ff1 = lambda r, n: wff1_ref[pl.ds(r, n), :].astype(F32)
        get_late = lambda r, n: wlate_vmem[pl.ds(r, n), :].astype(F32)
        get_vec = lambda r, n: vec_ref[pl.ds(r, 1), pl.ds(0, n)]

        out_ref[...] = _run_network(gb, h0, n_enc, float(cd),
                                    get_early, get_ff1, get_late, get_vec,
                                    before_stage2=late_cp.wait)

    out = pl.pallas_call(
        kernel,
        out_shape=jax.ShapeDtypeStruct((B, D), F32),
        in_specs=[
            pl.BlockSpec(memory_space=VMEM),      # act
            pl.BlockSpec(memory_space=VMEM),      # wctx
            pl.BlockSpec(memory_space=VMEM),      # w_early
            pl.BlockSpec(memory_space=VMEM),      # wff1
            pl.BlockSpec(memory_space=VMEM),      # vec
            pl.BlockSpec(memory_space=pl.ANY),    # w_late: stays in HBM, manual DMA
        ],
        out_specs=pl.BlockSpec(memory_space=VMEM),
        scratch_shapes=[
            pltpu.VMEM(w_late_shape, BF16),
            pltpu.SemaphoreType.DMA,
        ],
    )(act, packed["wctx"], packed["w_early"], packed["wff1"], packed["vec"],
      packed["w_late"])
    return out[:, :point_dim]


# ----------------------------------------------------------------------------
# References for correctness checks
# ----------------------------------------------------------------------------
def _reference_forward_packed(packed, x, beta, context):
    """Plain-JAX replay of the exact packed/folded bf16 parameterization."""
    B, point_dim = x.shape
    cd = context.reshape(B, -1).shape[1]
    act = _build_act(x, beta, context)
    n_enc = packed["wff1"].shape[0] // D
    we = packed["w_early"].astype(F32)
    wl = packed["w_late"].astype(F32)
    wf = packed["wff1"].astype(F32)
    vec = packed["vec"]
    gb = act[:, D:] @ packed["wctx"].astype(F32)
    out = _run_network(
        gb, act[:, :D], n_enc, float(cd),
        lambda r, n: we[r:r + n, :], lambda r, n: wf[r:r + n, :],
        lambda r, n: wl[r:r + n, :], lambda r, n: vec[r:r + 1, :n])
    return out[:, :point_dim]


def _reference_forward_unfused(raw, x, beta, context):
    """Faithful (unfused, fp32) replay of the PyTorch HMINet forward at seq_len==1."""
    B = x.shape[0]
    beta = beta.reshape(B, 1).astype(F32)
    context = context.reshape(B, -1).astype(F32)
    ctx = jnp.concatenate([beta, jnp.sin(beta), jnp.cos(beta), context], axis=-1)

    def mfl(m, h):
        gate = jax.nn.sigmoid(ctx @ m["wg"] + m["bg"])
        return (h @ m["wl"] + m["bl"]) * gate + ctx @ m["wb"]

    def ln(h, g, b):
        mu = h.mean(-1, keepdims=True)
        v = ((h - mu) ** 2).mean(-1, keepdims=True)
        return (h - mu) / jnp.sqrt(v + LN_EPS) * g + b

    def enc(lp, h):
        v = h @ lp["wv"] + lp["bv"]                 # softmax over one key == 1
        attn = v @ lp["wo"] + lp["bo"]
        h = ln(h + attn, lp["g1"], lp["be1"])
        ff = jnp.maximum(h @ lp["w1"] + lp["b1"], 0.0) @ lp["w2"] + lp["b2"]
        return ln(h + ff, lp["g2"], lp["be2"])

    h = x.astype(F32)
    for i in range(3):
        h = mfl(raw["mfls"][i], h)
    h = h + raw["pe1"]
    for lp in raw["enc1"]:
        h = enc(lp, h)
    h = mfl(raw["mfls"][3], h)
    h = h + raw["pe2"]
    for lp in raw["enc2"]:
        h = enc(lp, h)
    h = mfl(raw["mfls"][4], h)
    return mfl(raw["mfls"][5], h)


if __name__ == "__main__":
    B = 8
    POINT_DIM = 4
    CONTEXT_DIM = 64
    TF_LAYER = 3

    root = jax.random.PRNGKey(0)
    kp, kx, kb, kc = jax.random.split(root, 4)

    raw = make_hminet_raw_params(kp, POINT_DIM, CONTEXT_DIM, TF_LAYER)
    packed = pack_hminet_params(raw)

    x = jax.random.normal(kx, (B, POINT_DIM), F32)
    beta = jax.random.uniform(kb, (B,), F32, 0.01, 1.0)
    context = jax.random.normal(kc, (B, CONTEXT_DIM), F32)

    fwd = jax.jit(hminet_forward)
    out = jax.block_until_ready(fwd(packed, x, beta, context))

    assert out.shape == (B, POINT_DIM), out.shape
    assert bool(jnp.all(jnp.isfinite(out)))

    # 1) strict self-consistency: identical packed bf16 weights, plain-JAX math.
    ref_packed = _reference_forward_packed(packed, x, beta, context)
    err1 = float(jnp.max(jnp.abs(out - ref_packed)))
    assert bool(jnp.allclose(out, ref_packed, atol=1e-2, rtol=1e-2)), err1

    # 2) sanity vs the faithful, unfused fp32 parameterization (bf16 weight rounding
    #    plus the seq_len==1 attention fold are the only numerical differences).
    ref_full = _reference_forward_unfused(raw, x, beta, context)
    err2 = float(jnp.max(jnp.abs(out - ref_full)))
    assert bool(jnp.allclose(out, ref_full, atol=1e-1, rtol=1e-1)), err2

    print("KERNEL_OK")
</pallas_src>

<mosaic_0001>
module attributes {stable_mosaic.version = 11 : i64} {
  func.func @kernel(%arg0: memref<8x256xf32, #tpu.memory_space<vmem>>, %arg1: memref<128x1536xbf16, #tpu.memory_space<vmem>>, %arg2: memref<1536x128xbf16, #tpu.memory_space<vmem>>, %arg3: memref<384x256xbf16, #tpu.memory_space<vmem>>, %arg4: memref<56x256xf32, #tpu.memory_space<vmem>>, %arg5: memref<1536x128xbf16, #tpu.memory_space<any>>, %arg6: memref<8x128xf32, #tpu.memory_space<vmem>>, %arg7: memref<1536x128xbf16, #tpu.memory_space<vmem>>, %arg8: memref<!tpu.dma_semaphore, #tpu.memory_space<semaphore_mem>>) attributes {dimension_semantics = [], scalar_prefetch = 0 : i64, scratch_operands = 2 : i64, tpu.core_type = #tpu.core_type<tc>} {
    tpu.enqueue_dma source(%arg5 : memref<1536x128xbf16, #tpu.memory_space<any>>) target(%arg7 : memref<1536x128xbf16, #tpu.memory_space<vmem>>) target_semaphore(%arg8 : memref<!tpu.dma_semaphore, #tpu.memory_space<semaphore_mem>>)
    %c0 = arith.constant 0 : index
    %c0_0 = arith.constant 0 : index
    %0 = vector.load %arg0[%c0, %c0_0] : memref<8x256xf32, #tpu.memory_space<vmem>>, vector<8x256xf32>
    %1 = vector.extract_strided_slice %0 {offsets = [0, 0], sizes = [8, 128], strides = [1, 1]} : vector<8x256xf32> to vector<8x128xf32>
    %2 = vector.extract_strided_slice %0 {offsets = [0, 128], sizes = [8, 128], strides = [1, 1]} : vector<8x256xf32> to vector<8x128xf32>
    %c0_1 = arith.constant 0 : index
    %c0_2 = arith.constant 0 : index
    %3 = vector.load %arg1[%c0_1, %c0_2] : memref<128x1536xbf16, #tpu.memory_space<vmem>>, vector<128x1536xbf16>
    %4 = arith.extf %3 : vector<128x1536xbf16> to vector<128x1536xf32>
    %cst = arith.constant dense<0.000000e+00> : vector<8x1536xf32>
    %5 = tpu.matmul %2, %4, %cst {dimension_numbers = #tpu.dot_dimension_numbers<[1], [0], [0], [1], [0, 0, 1, 1], [], []>} : vector<8x128xf32>, vector<128x1536xf32>, vector<8x1536xf32> -> vector<8x1536xf32>
    %c0_3 = arith.constant 0 : index
    %c0_4 = arith.constant 0 : index
    %6 = vector.load %arg2[%c0_3, %c0_4] : memref<1536x128xbf16, #tpu.memory_space<vmem>>, vector<128x128xbf16>
    %7 = arith.extf %6 : vector<128x128xbf16> to vector<128x128xf32>
    %cst_5 = arith.constant dense<0.000000e+00> : vector<8x128xf32>
    %8 = tpu.matmul %1, %7, %cst_5 {dimension_numbers = #tpu.dot_dimension_numbers<[1], [0], [0], [1], [0, 0, 1, 1], [], []>} : vector<8x128xf32>, vector<128x128xf32>, vector<8x128xf32> -> vector<8x128xf32>
    %c0_6 = arith.constant 0 : index
    %c0_7 = arith.constant 0 : index
    %9 = vector.load %arg4[%c0_6, %c0_7] : memref<56x256xf32, #tpu.memory_space<vmem>>, vector<1x128xf32>
    %10 = vector.broadcast %9 : vector<1x128xf32> to vector<8x128xf32>
    %11 = arith.addf %8, %10 : vector<8x128xf32>
    %12 = vector.extract_strided_slice %5 {offsets = [0, 0], sizes = [8, 128], strides = [1, 1]} : vector<8x1536xf32> to vector<8x128xf32>
    %13 = arith.negf %12 : vector<8x128xf32>
    %14 = math.exp %13 : vector<8x128xf32>
    %cst_8 = arith.constant 1.000000e+00 : f32
    %15 = vector.broadcast %cst_8 : f32 to vector<8x128xf32>
    %16 = arith.addf %15, %14 : vector<8x128xf32>
    %17 = arith.divf %15, %16 : vector<8x128xf32>
    %18 = arith.mulf %11, %17 : vector<8x128xf32>
    %19 = vector.extract_strided_slice %5 {offsets = [0, 768], sizes = [8, 128], strides = [1, 1]} : vector<8x1536xf32> to vector<8x128xf32>
    %20 = arith.addf %18, %19 : vector<8x128xf32>
    %c128 = arith.constant 128 : index
    %c0_9 = arith.constant 0 : index
    %21 = vector.load %arg2[%c128, %c0_9] : memref<1536x128xbf16, #tpu.memory_space<vmem>>, vector<128x128xbf16>
    %22 = arith.extf %21 : vector<128x128xbf16> to vector<128x128xf32>
    %cst_10 = arith.constant dense<0.000000e+00> : vector<8x128xf32>
    %23 = tpu.matmul %20, %22, %cst_10 {dimension_numbers = #tpu.dot_dimension_numbers<[1], [0], [0], [1], [0, 0, 1, 1], [], []>} : vector<8x128xf32>, vector<128x128xf32>, vector<8x128xf32> -> vector<8x128xf32>
    %c1 = arith.constant 1 : index
    %c0_11 = arith.constant 0 : index
    %24 = vector.load %arg4[%c1, %c0_11] : memref<56x256xf32, #tpu.memory_space<vmem>>, vector<1x128xf32>
    %25 = vector.broadcast %24 : vector<1x128xf32> to vector<8x128xf32>
    %26 = arith.addf %23, %25 : vector<8x128xf32>
    %27 = vector.extract_strided_slice %5 {offsets = [0, 128], sizes = [8, 128], strides = [1, 1]} : vector<8x1536xf32> to vector<8x128xf32>
    %28 = arith.negf %27 : vector<8x128xf32>
    %29 = math.exp %28 : vector<8x128xf32>
    %cst_12 = arith.constant 1.000000e+00 : f32
    %30 = vector.broadcast %cst_12 : f32 to vector<8x128xf32>
    %31 = arith.addf %30, %29 : vector<8x128xf32>
    %32 = arith.divf %30, %31 : vector<8x128xf32>
    %33 = arith.mulf %26, %32 : vector<8x128xf32>
    %34 = vector.extract_strided_slice %5 {offsets = [0, 896], sizes = [8, 128], strides = [1, 1]} : vector<8x1536xf32> to vector<8x128xf32>
    %35 = arith.addf %33, %34 : vector<8x128xf32>
    %c256 = arith.constant 256 : index
    %c0_13 = arith.constant 0 : index
    %36 = vector.load %arg2[%c256, %c0_13] : memref<1536x128xbf16, #tpu.memory_space<vmem>>, vector<128x128xbf16>
    %37 = arith.extf %36 : vector<128x128xbf16> to vector<128x128xf32>
    %cst_14 = arith.constant dense<0.000000e+00> : vector<8x128xf32>
    %38 = tpu.matmul %35, %37, %cst_14 {dimension_numbers = #tpu.dot_dimension_numbers<[1], [0], [0], [1], [0, 0, 1, 1], [], []>} : vector<8x128xf32>, vector<128x128xf32>, vector<8x128xf32> -> vector<8x128xf32>
    %c2 = arith.constant 2 : index
    %c0_15 = arith.constant 0 : index
    %39 = vector.load %arg4[%c2, %c0_15] : memref<56x256xf32, #tpu.memory_space<vmem>>, vector<1x128xf32>
    %40 = vector.broadcast %39 : vector<1x128xf32> to vector<8x128xf32>
    %41 = arith.addf %38, %40 : vector<8x128xf32>
    %42 = vector.extract_strided_slice %5 {offsets = [0, 256], sizes = [8, 128], strides = [1, 1]} : vector<8x1536xf32> to vector<8x128xf32>
    %43 = arith.negf %42 : vector<8x128xf32>
    %44 = math.exp %43 : vector<8x128xf32>
    %cst_16 = arith.constant 1.000000e+00 : f32
    %45 = vector.broadcast %cst_16 : f32 to vector<8x128xf32>
    %46 = arith.addf %45, %44 : vector<8x128xf32>
    %47 = arith.divf %45, %46 : vector<8x128xf32>
    %48 = arith.mulf %41, %47 : vector<8x128xf32>
    %49 = vector.extract_strided_slice %5 {offsets = [0, 1024], sizes = [8, 128], strides = [1, 1]} : vector<8x1536xf32> to vector<8x128xf32>
    %50 = arith.addf %48, %49 : vector<8x128xf32>
    %c6 = arith.constant 6 : index
    %c0_17 = arith.constant 0 : index
    %51 = vector.load %arg4[%c6, %c0_17] : memref<56x256xf32, #tpu.memory_space<vmem>>, vector<1x128xf32>
    %52 = vector.broadcast %51 : vector<1x128xf32> to vector<8x128xf32>
    %53 = arith.addf %50, %52 : vector<8x128xf32>
    %c384 = arith.constant 384 : index
    %c0_18 = arith.constant 0 : index
    %54 = vector.load %arg2[%c384, %c0_18] : memref<1536x128xbf16, #tpu.memory_space<vmem>>, vector<128x128xbf16>
    %55 = arith.extf %54 : vector<128x128xbf16> to vector<128x128xf32>
    %c0_19 = arith.constant 0 : index
    %c0_20 = arith.constant 0 : index
    %56 = vector.load %arg3[%c0_19, %c0_20] : memref<384x256xbf16, #tpu.memory_space<vmem>>, vector<128x256xbf16>
    %57 = arith.extf %56 : vector<128x256xbf16> to vector<128x256xf32>
    %c512 = arith.constant 512 : index
    %c0_21 = arith.constant 0 : index
    %58 = vector.load %arg2[%c512, %c0_21] : memref<1536x128xbf16, #tpu.memory_space<vmem>>, vector<256x128xbf16>
    %59 = arith.extf %58 : vector<256x128xbf16> to vector<256x128xf32>
    %cst_22 = arith.constant dense<0.000000e+00> : vector<8x128xf32>
    %60 = tpu.matmul %53, %55, %cst_22 {dimension_numbers = #tpu.dot_dimension_numbers<[1], [0], [0], [1], [0, 0, 1, 1], [], []>} : vector<8x128xf32>, vector<128x128xf32>, vector<8x128xf32> -> vector<8x128xf32>
    %c8 = arith.constant 8 : index
    %c0_23 = arith.constant 0 : index
    %61 = vector.load %arg4[%c8, %c0_23] : memref<56x256xf32, #tpu.memory_space<vmem>>, vector<1x128xf32>
    %62 = vector.broadcast %61 : vector<1x128xf32> to vector<8x128xf32>
    %63 = arith.addf %60, %62 : vector<8x128xf32>
    %64 = arith.addf %53, %63 : vector<8x128xf32>
    %c11 = arith.constant 11 : index
    %c0_24 = arith.constant 0 : index
    %65 = vector.load %arg4[%c11, %c0_24] : memref<56x256xf32, #tpu.memory_space<vmem>>, vector<1x128xf32>
    %c12 = arith.constant 12 : index
    %c0_25 = arith.constant 0 : index
    %66 = vector.load %arg4[%c12, %c0_25] : memref<56x256xf32, #tpu.memory_space<vmem>>, vector<1x128xf32>
    %cst_26 = arith.constant dense<0.000000e+00> : vector<8xf32>
    %67 = vector.multi_reduction <add>, %64, %cst_26 [1] : vector<8x128xf32> to vector<8xf32>
    %68 = vector.shape_cast %67 : vector<8xf32> to vector<8x1xf32>
    %cst_27 = arith.constant 7.812500e-03 : f32
    %69 = vector.broadcast %cst_27 : f32 to vector<8x1xf32>
    %70 = arith.mulf %68, %69 : vector<8x1xf32>
    %71 = arith.mulf %64, %64 : vector<8x128xf32>
    %cst_28 = arith.constant dense<0.000000e+00> : vector<8xf32>
    %72 = vector.multi_reduction <add>, %71, %cst_28 [1] : vector<8x128xf32> to vector<8xf32>
    %73 = vector.shape_cast %72 : vector<8xf32> to vector<8x1xf32>
    %cst_29 = arith.constant 7.812500e-03 : f32
    %74 = vector.broadcast %cst_29 : f32 to vector<8x1xf32>
    %75 = arith.mulf %73, %74 : vector<8x1xf32>
    %76 = vector.broadcast %70 : vector<8x1xf32> to vector<8x128xf32>
    %77 = arith.subf %64, %76 : vector<8x128xf32>
    %78 = arith.mulf %70, %70 : vector<8x1xf32>
    %79 = arith.subf %75, %78 : vector<8x1xf32>
    %cst_30 = arith.constant 9.99999974E-6 : f32
    %80 = vector.broadcast %cst_30 : f32 to vector<8x1xf32>
    %81 = arith.addf %79, %80 : vector<8x1xf32>
    %82 = math.rsqrt %81 : vector<8x1xf32>
    %83 = vector.broadcast %82 : vector<8x1xf32> to vector<8x128xf32>
    %84 = arith.mulf %77, %83 : vector<8x128xf32>
    %85 = vector.broadcast %65 : vector<1x128xf32> to vector<8x128xf32>
    %86 = arith.mulf %84, %85 : vector<8x128xf32>
    %87 = vector.broadcast %66 : vector<1x128xf32> to vector<8x128xf32>
    %88 = arith.addf %86, %87 : vector<8x128xf32>
    %cst_31 = arith.constant dense<0.000000e+00> : vector<8x256xf32>
    %89 = tpu.matmul %88, %57, %cst_31 {dimension_numbers = #tpu.dot_dimension_numbers<[1], [0], [0], [1], [0, 0, 1, 1], [], []>} : vector<8x128xf32>, vector<128x256xf32>, vector<8x256xf32> -> vector<8x256xf32>
    %c9 = arith.constant 9 : index
    %c0_32 = arith.constant 0 : index
    %90 = vector.load %arg4[%c9, %c0_32] : memref<56x256xf32, #tpu.memory_space<vmem>>, vector<1x256xf32>
    %91 = vector.broadcast %90 : vector<1x256xf32> to vector<8x256xf32>
    %92 = arith.addf %89, %91 : vector<8x256xf32>
    %cst_33 = arith.constant 0.000000e+00 : f32
    %93 = vector.broadcast %cst_33 : f32 to vector<8x256xf32>
    %94 = arith.maximumf %92, %93 : vector<8x256xf32>
    %cst_34 = arith.constant dense<0.000000e+00> : vector<8x128xf32>
    %95 = tpu.matmul %94, %59, %cst_34 {dimension_numbers = #tpu.dot_dimension_numbers<[1], [0], [0], [1], [0, 0, 1, 1], [], []>} : vector<8x256xf32>, vector<256x128xf32>, vector<8x128xf32> -> vector<8x128xf32>
    %c10 = arith.constant 10 : index
    %c0_35 = arith.constant 0 : index
    %96 = vector.load %arg4[%c10, %c0_35] : memref<56x256xf32, #tpu.memory_space<vmem>>, vector<1x128xf32>
    %97 = vector.broadcast %96 : vector<1x128xf32> to vector<8x128xf32>
    %98 = arith.addf %95, %97 : vector<8x128xf32>
    %99 = arith.addf %88, %98 : vector<8x128xf32>
    %c13 = arith.constant 13 : index
    %c0_36 = arith.constant 0 : index
    %100 = vector.load %arg4[%c13, %c0_36] : memref<56x256xf32, #tpu.memory_space<vmem>>, vector<1x128xf32>
    %c14 = arith.constant 14 : index
    %c0_37 = arith.constant 0 : index
    %101 = vector.load %arg4[%c14, %c0_37] : memref<56x256xf32, #tpu.memory_space<vmem>>, vector<1x128xf32>
    %cst_38 = arith.constant dense<0.000000e+00> : vector<8xf32>
    %102 = vector.multi_reduction <add>, %99, %cst_38 [1] : vector<8x128xf32> to vector<8xf32>
    %103 = vector.shape_cast %102 : vector<8xf32> to vector<8x1xf32>
    %cst_39 = arith.constant 7.812500e-03 : f32
    %104 = vector.broadcast %cst_39 : f32 to vector<8x1xf32>
    %105 = arith.mulf %103, %104 : vector<8x1xf32>
    %106 = arith.mulf %99, %99 : vector<8x128xf32>
    %cst_40 = arith.constant dense<0.000000e+00> : vector<8xf32>
    %107 = vector.multi_reduction <add>, %106, %cst_40 [1] : vector<8x128xf32> to vector<8xf32>
    %108 = vector.shape_cast %107 : vector<8xf32> to vector<8x1xf32>
    %cst_41 = arith.constant 7.812500e-03 : f32
    %109 = vector.broadcast %cst_41 : f32 to vector<8x1xf32>
    %110 = arith.mulf %108, %109 : vector<8x1xf32>
    %111 = vector.broadcast %105 : vector<8x1xf32> to vector<8x128xf32>
    %112 = arith.subf %99, %111 : vector<8x128xf32>
    %113 = arith.mulf %105, %105 : vector<8x1xf32>
    %114 = arith.subf %110, %113 : vector<8x1xf32>
    %cst_42 = arith.constant 9.99999974E-6 : f32
    %115 = vector.broadcast %cst_42 : f32 to vector<8x1xf32>
    %116 = arith.addf %114, %115 : vector<8x1xf32>
    %117 = math.rsqrt %116 : vector<8x1xf32>
    %118 = vector.broadcast %117 : vector<8x1xf32> to vector<8x128xf32>
    %119 = arith.mulf %112, %118 : vector<8x128xf32>
    %120 = vector.broadcast %100 : vector<1x128xf32> to vector<8x128xf32>
    %121 = arith.mulf %119, %120 : vector<8x128xf32>
    %122 = vector.broadcast %101 : vector<1x128xf32> to vector<8x128xf32>
    %123 = arith.addf %121, %122 : vector<8x128xf32>
    %c768 = arith.constant 768 : index
    %c0_43 = arith.constant 0 : index
    %124 = vector.load %arg2[%c768, %c0_43] : memref<1536x128xbf16, #tpu.memory_space<vmem>>, vector<128x128xbf16>
    %125 = arith.extf %124 : vector<128x128xbf16> to vector<128x128xf32>
    %c128_44 = arith.constant 128 : index
    %c0_45 = arith.constant 0 : index
    %126 = vector.load %arg3[%c128_44, %c0_45] : memref<384x256xbf16, #tpu.memory_space<vmem>>, vector<128x256xbf16>
    %127 = arith.extf %126 : vector<128x256xbf16> to vector<128x256xf32>
    %c896 = arith.constant 896 : index
    %c0_46 = arith.constant 0 : index
    %128 = vector.load %arg2[%c896, %c0_46] : memref<1536x128xbf16, #tpu.memory_space<vmem>>, vector<256x128xbf16>
    %129 = arith.extf %128 : vector<256x128xbf16> to vector<256x128xf32>
    %cst_47 = arith.constant dense<0.000000e+00> : vector<8x128xf32>
    %130 = tpu.matmul %123, %125, %cst_47 {dimension_numbers = #tpu.dot_dimension_numbers<[1], [0], [0], [1], [0, 0, 1, 1], [], []>} : vector<8x128xf32>, vector<128x128xf32>, vector<8x128xf32> -> vector<8x128xf32>
    %c15 = arith.constant 15 : index
    %c0_48 = arith.constant 0 : index
    %131 = vector.load %arg4[%c15, %c0_48] : memref<56x256xf32, #tpu.memory_space<vmem>>, vector<1x128xf32>
    %132 = vector.broadcast %131 : vector<1x128xf32> to vector<8x128xf32>
    %133 = arith.addf %130, %132 : vector<8x128xf32>
    %134 = arith.addf %123, %133 : vector<8x128xf32>
    %c18 = arith.constant 18 : index
    %c0_49 = arith.constant 0 : index
    %135 = vector.load %arg4[%c18, %c0_49] : memref<56x256xf32, #tpu.memory_space<vmem>>, vector<1x128xf32>
    %c19 = arith.constant 19 : index
    %c0_50 = arith.constant 0 : index
    %136 = vector.load %arg4[%c19, %c0_50] : memref<56x256xf32, #tpu.memory_space<vmem>>, vector<1x128xf32>
    %cst_51 = arith.constant dense<0.000000e+00> : vector<8xf32>
    %137 = vector.multi_reduction <add>, %134, %cst_51 [1] : vector<8x128xf32> to vector<8xf32>
    %138 = vector.shape_cast %137 : vector<8xf32> to vector<8x1xf32>
    %cst_52 = arith.constant 7.812500e-03 : f32
    %139 = vector.broadcast %cst_52 : f32 to vector<8x1xf32>
    %140 = arith.mulf %138, %139 : vector<8x1xf32>
    %141 = arith.mulf %134, %134 : vector<8x128xf32>
    %cst_53 = arith.constant dense<0.000000e+00> : vector<8xf32>
    %142 = vector.multi_reduction <add>, %141, %cst_53 [1] : vector<8x128xf32> to vector<8xf32>
    %143 = vector.shape_cast %142 : vector<8xf32> to vector<8x1xf32>
    %cst_54 = arith.constant 7.812500e-03 : f32
    %144 = vector.broadcast %cst_54 : f32 to vector<8x1xf32>
    %145 = arith.mulf %143, %144 : vector<8x1xf32>
    %146 = vector.broadcast %140 : vector<8x1xf32> to vector<8x128xf32>
    %147 = arith.subf %134, %146 : vector<8x128xf32>
    %148 = arith.mulf %140, %140 : vector<8x1xf32>
    %149 = arith.subf %145, %148 : vector<8x1xf32>
    %cst_55 = arith.constant 9.99999974E-6 : f32
    %150 = vector.broadcast %cst_55 : f32 to vector<8x1xf32>
    %151 = arith.addf %149, %150 : vector<8x1xf32>
    %152 = math.rsqrt %151 : vector<8x1xf32>
    %153 = vector.broadcast %152 : vector<8x1xf32> to vector<8x128xf32>
    %154 = arith.mulf %147, %153 : vector<8x128xf32>
    %155 = vector.broadcast %135 : vector<1x128xf32> to vector<8x128xf32>
    %156 = arith.mulf %154, %155 : vector<8x128xf32>
    %157 = vector.broadcast %136 : vector<1x128xf32> to vector<8x128xf32>
    %158 = arith.addf %156, %157 : vector<8x128xf32>
    %cst_56 = arith.constant dense<0.000000e+00> : vector<8x256xf32>
    %159 = tpu.matmul %158, %127, %cst_56 {dimension_numbers = #tpu.dot_dimension_numbers<[1], [0], [0], [1], [0, 0, 1, 1], [], []>} : vector<8x128xf32>, vector<128x256xf32>, vector<8x256xf32> -> vector<8x256xf32>
    %c16 = arith.constant 16 : index
    %c0_57 = arith.constant 0 : index
    %160 = vector.load %arg4[%c16, %c0_57] : memref<56x256xf32, #tpu.memory_space<vmem>>, vector<1x256xf32>
    %161 = vector.broadcast %160 : vector<1x256xf32> to vector<8x256xf32>
    %162 = arith.addf %159, %161 : vector<8x256xf32>
    %cst_58 = arith.constant 0.000000e+00 : f32
    %163 = vector.broadcast %cst_58 : f32 to vector<8x256xf32>
    %164 = arith.maximumf %162, %163 : vector<8x256xf32>
    %cst_59 = arith.constant dense<0.000000e+00> : vector<8x128xf32>
    %165 = tpu.matmul %164, %129, %cst_59 {dimension_numbers = #tpu.dot_dimension_numbers<[1], [0], [0], [1], [0, 0, 1, 1], [], []>} : vector<8x256xf32>, vector<256x128xf32>, vector<8x128xf32> -> vector<8x128xf32>
    %c17 = arith.constant 17 : index
    %c0_60 = arith.constant 0 : index
    %166 = vector.load %arg4[%c17, %c0_60] : memref<56x256xf32, #tpu.memory_space<vmem>>, vector<1x128xf32>
    %167 = vector.broadcast %166 : vector<1x128xf32> to vector<8x128xf32>
    %168 = arith.addf %165, %167 : vector<8x128xf32>
    %169 = arith.addf %158, %168 : vector<8x128xf32>
    %c20 = arith.constant 20 : index
    %c0_61 = arith.constant 0 : index
    %170 = vector.load %arg4[%c20, %c0_61] : memref<56x256xf32, #tpu.memory_space<vmem>>, vector<1x128xf32>
    %c21 = arith.constant 21 : index
    %c0_62 = arith.constant 0 : index
    %171 = vector.load %arg4[%c21, %c0_62] : memref<56x256xf32, #tpu.memory_space<vmem>>, vector<1x128xf32>
    %cst_63 = arith.constant dense<0.000000e+00> : vector<8xf32>
    %172 = vector.multi_reduction <add>, %169, %cst_63 [1] : vector<8x128xf32> to vector<8xf32>
    %173 = vector.shape_cast %172 : vector<8xf32> to vector<8x1xf32>
    %cst_64 = arith.constant 7.812500e-03 : f32
    %174 = vector.broadcast %cst_64 : f32 to vector<8x1xf32>
    %175 = arith.mulf %173, %174 : vector<8x1xf32>
    %176 = arith.mulf %169, %169 : vector<8x128xf32>
    %cst_65 = arith.constant dense<0.000000e+00> : vector<8xf32>
    %177 = vector.multi_reduction <add>, %176, %cst_65 [1] : vector<8x128xf32> to vector<8xf32>
    %178 = vector.shape_cast %177 : vector<8xf32> to vector<8x1xf32>
    %cst_66 = arith.constant 7.812500e-03 : f32
    %179 = vector.broadcast %cst_66 : f32 to vector<8x1xf32>
    %180 = arith.mulf %178, %179 : vector<8x1xf32>
    %181 = vector.broadcast %175 : vector<8x1xf32> to vector<8x128xf32>
    %182 = arith.subf %169, %181 : vector<8x128xf32>
    %183 = arith.mulf %175, %175 : vector<8x1xf32>
    %184 = arith.subf %180, %183 : vector<8x1xf32>
    %cst_67 = arith.constant 9.99999974E-6 : f32
    %185 = vector.broadcast %cst_67 : f32 to vector<8x1xf32>
    %186 = arith.addf %184, %185 : vector<8x1xf32>
    %187 = math.rsqrt %186 : vector<8x1xf32>
    %188 = vector.broadcast %187 : vector<8x1xf32> to vector<8x128xf32>
    %189 = arith.mulf %182, %188 : vector<8x128xf32>
    %190 = vector.broadcast %170 : vector<1x128xf32> to vector<8x128xf32>
    %191 = arith.mulf %189, %190 : vector<8x128xf32>
    %192 = vector.broadcast %171 : vector<1x128xf32> to vector<8x128xf32>
    %193 = arith.addf %191, %192 : vector<8x128xf32>
    %c1152 = arith.constant 1152 : index
    %c0_68 = arith.constant 0 : index
    %194 = vector.load %arg2[%c1152, %c0_68] : memref<1536x128xbf16, #tpu.memory_space<vmem>>, vector<128x128xbf16>
    %195 = arith.extf %194 : vector<128x128xbf16> to vector<128x128xf32>
    %c256_69 = arith.constant 256 : index
    %c0_70 = arith.constant 0 : index
    %196 = vector.load %arg3[%c256_69, %c0_70] : memref<384x256xbf16, #tpu.memory_space<vmem>>, vector<128x256xbf16>
    %197 = arith.extf %196 : vector<128x256xbf16> to vector<128x256xf32>
    %c1280 = arith.constant 1280 : index
    %c0_71 = arith.constant 0 : index
    %198 = vector.load %arg2[%c1280, %c0_71] : memref<1536x128xbf16, #tpu.memory_space<vmem>>, vector<256x128xbf16>
    %199 = arith.extf %198 : vector<256x128xbf16> to vector<256x128xf32>
    %cst_72 = arith.constant dense<0.000000e+00> : vector<8x128xf32>
    %200 = tpu.matmul %193, %195, %cst_72 {dimension_numbers = #tpu.dot_dimension_numbers<[1], [0], [0], [1], [0, 0, 1, 1], [], []>} : vector<8x128xf32>, vector<128x128xf32>, vector<8x128xf32> -> vector<8x128xf32>
    %c22 = arith.constant 22 : index
    %c0_73 = arith.constant 0 : index
    %201 = vector.load %arg4[%c22, %c0_73] : memref<56x256xf32, #tpu.memory_space<vmem>>, vector<1x128xf32>
    %202 = vector.broadcast %201 : vector<1x128xf32> to vector<8x128xf32>
    %203 = arith.addf %200, %202 : vector<8x128xf32>
    %204 = arith.addf %193, %203 : vector<8x128xf32>
    %c25 = arith.constant 25 : index
    %c0_74 = arith.constant 0 : index
    %205 = vector.load %arg4[%c25, %c0_74] : memref<56x256xf32, #tpu.memory_space<vmem>>, vector<1x128xf32>
    %c26 = arith.constant 26 : index
    %c0_75 = arith.constant 0 : index
    %206 = vector.load %arg4[%c26, %c0_75] : memref<56x256xf32, #tpu.memory_space<vmem>>, vector<1x128xf32>
    %cst_76 = arith.constant dense<0.000000e+00> : vector<8xf32>
    %207 = vector.multi_reduction <add>, %204, %cst_76 [1] : vector<8x128xf32> to vector<8xf32>
    %208 = vector.shape_cast %207 : vector<8xf32> to vector<8x1xf32>
    %cst_77 = arith.constant 7.812500e-03 : f32
    %209 = vector.broadcast %cst_77 : f32 to vector<8x1xf32>
    %210 = arith.mulf %208, %209 : vector<8x1xf32>
    %211 = arith.mulf %204, %204 : vector<8x128xf32>
    %cst_78 = arith.constant dense<0.000000e+00> : vector<8xf32>
    %212 = vector.multi_reduction <add>, %211, %cst_78 [1] : vector<8x128xf32> to vector<8xf32>
    %213 = vector.shape_cast %212 : vector<8xf32> to vector<8x1xf32>
    %cst_79 = arith.constant 7.812500e-03 : f32
    %214 = vector.broadcast %cst_79 : f32 to vector<8x1xf32>
    %215 = arith.mulf %213, %214 : vector<8x1xf32>
    %216 = vector.broadcast %210 : vector<8x1xf32> to vector<8x128xf32>
    %217 = arith.subf %204, %216 : vector<8x128xf32>
    %218 = arith.mulf %210, %210 : vector<8x1xf32>
    %219 = arith.subf %215, %218 : vector<8x1xf32>
    %cst_80 = arith.constant 9.99999974E-6 : f32
    %220 = vector.broadcast %cst_80 : f32 to vector<8x1xf32>
    %221 = arith.addf %219, %220 : vector<8x1xf32>
    %222 = math.rsqrt %221 : vector<8x1xf32>
    %223 = vector.broadcast %222 : vector<8x1xf32> to vector<8x128xf32>
    %224 = arith.mulf %217, %223 : vector<8x128xf32>
    %225 = vector.broadcast %205 : vector<1x128xf32> to vector<8x128xf32>
    %226 = arith.mulf %224, %225 : vector<8x128xf32>
    %227 = vector.broadcast %206 : vector<1x128xf32> to vector<8x128xf32>
    %228 = arith.addf %226, %227 : vector<8x128xf32>
    %cst_81 = arith.constant dense<0.000000e+00> : vector<8x256xf32>
    %229 = tpu.matmul %228, %197, %cst_81 {dimension_numbers = #tpu.dot_dimension_numbers<[1], [0], [0], [1], [0, 0, 1, 1], [], []>} : vector<8x128xf32>, vector<128x256xf32>, vector<8x256xf32> -> vector<8x256xf32>
    %c23 = arith.constant 23 : index
    %c0_82 = arith.constant 0 : index
    %230 = vector.load %arg4[%c23, %c0_82] : memref<56x256xf32, #tpu.memory_space<vmem>>, vector<1x256xf32>
    %231 = vector.broadcast %230 : vector<1x256xf32> to vector<8x256xf32>
    %232 = arith.addf %229, %231 : vector<8x256xf32>
    %cst_83 = arith.constant 0.000000e+00 : f32
    %233 = vector.broadcast %cst_83 : f32 to vector<8x256xf32>
    %234 = arith.maximumf %232, %233 : vector<8x256xf32>
    %cst_84 = arith.constant dense<0.000000e+00> : vector<8x128xf32>
    %235 = tpu.matmul %234, %199, %cst_84 {dimension_numbers = #tpu.dot_dimension_numbers<[1], [0], [0], [1], [0, 0, 1, 1], [], []>} : vector<8x256xf32>, vector<256x128xf32>, vector<8x128xf32> -> vector<8x128xf32>
    %c24 = arith.constant 24 : index
    %c0_85 = arith.constant 0 : index
    %236 = vector.load %arg4[%c24, %c0_85] : memref<56x256xf32, #tpu.memory_space<vmem>>, vector<1x128xf32>
    %237 = vector.broadcast %236 : vector<1x128xf32> to vector<8x128xf32>
    %238 = arith.addf %235, %237 : vector<8x128xf32>
    %239 = arith.addf %228, %238 : vector<8x128xf32>
    %c27 = arith.constant 27 : index
    %c0_86 = arith.constant 0 : index
    %240 = vector.load %arg4[%c27, %c0_86] : memref<56x256xf32, #tpu.memory_space<vmem>>, vector<1x128xf32>
    %c28 = arith.constant 28 : index
    %c0_87 = arith.constant 0 : index
    %241 = vector.load %arg4[%c28, %c0_87] : memref<56x256xf32, #tpu.memory_space<vmem>>, vector<1x128xf32>
    %cst_88 = arith.constant dense<0.000000e+00> : vector<8xf32>
    %242 = vector.multi_reduction <add>, %239, %cst_88 [1] : vector<8x128xf32> to vector<8xf32>
    %243 = vector.shape_cast %242 : vector<8xf32> to vector<8x1xf32>
    %cst_89 = arith.constant 7.812500e-03 : f32
    %244 = vector.broadcast %cst_89 : f32 to vector<8x1xf32>
    %245 = arith.mulf %243, %244 : vector<8x1xf32>
    %246 = arith.mulf %239, %239 : vector<8x128xf32>
    %cst_90 = arith.constant dense<0.000000e+00> : vector<8xf32>
    %247 = vector.multi_reduction <add>, %246, %cst_90 [1] : vector<8x128xf32> to vector<8xf32>
    %248 = vector.shape_cast %247 : vector<8xf32> to vector<8x1xf32>
    %cst_91 = arith.constant 7.812500e-03 : f32
    %249 = vector.broadcast %cst_91 : f32 to vector<8x1xf32>
    %250 = arith.mulf %248, %249 : vector<8x1xf32>
    %251 = vector.broadcast %245 : vector<8x1xf32> to vector<8x128xf32>
    %252 = arith.subf %239, %251 : vector<8x128xf32>
    %253 = arith.mulf %245, %245 : vector<8x1xf32>
    %254 = arith.subf %250, %253 : vector<8x1xf32>
    %cst_92 = arith.constant 9.99999974E-6 : f32
    %255 = vector.broadcast %cst_92 : f32 to vector<8x1xf32>
    %256 = arith.addf %254, %255 : vector<8x1xf32>
    %257 = math.rsqrt %256 : vector<8x1xf32>
    %258 = vector.broadcast %257 : vector<8x1xf32> to vector<8x128xf32>
    %259 = arith.mulf %252, %258 : vector<8x128xf32>
    %260 = vector.broadcast %240 : vector<1x128xf32> to vector<8x128xf32>
    %261 = arith.mulf %259, %260 : vector<8x128xf32>
    %262 = vector.broadcast %241 : vector<1x128xf32> to vector<8x128xf32>
    %263 = arith.addf %261, %262 : vector<8x128xf32>
    tpu.wait_dma2 semaphore(%arg8 : memref<!tpu.dma_semaphore, #tpu.memory_space<semaphore_mem>>) src(%arg5 : memref<1536x128xbf16, #tpu.memory_space<any>>) dst(%arg7 : memref<1536x128xbf16, #tpu.memory_space<vmem>>)
    %c0_93 = arith.constant 0 : index
    %c0_94 = arith.constant 0 : index
    %264 = vector.load %arg7[%c0_93, %c0_94] : memref<1536x128xbf16, #tpu.memory_space<vmem>>, vector<128x128xbf16>
    %265 = arith.extf %264 : vector<128x128xbf16> to vector<128x128xf32>
    %cst_95 = arith.constant dense<0.000000e+00> : vector<8x128xf32>
    %266 = tpu.matmul %263, %265, %cst_95 {dimension_numbers = #tpu.dot_dimension_numbers<[1], [0], [0], [1], [0, 0, 1, 1], [], []>} : vector<8x128xf32>, vector<128x128xf32>, vector<8x128xf32> -> vector<8x128xf32>
    %c3 = arith.constant 3 : index
    %c0_96 = arith.constant 0 : index
    %267 = vector.load %arg4[%c3, %c0_96] : memref<56x256xf32, #tpu.memory_space<vmem>>, vector<1x128xf32>
    %268 = vector.broadcast %267 : vector<1x128xf32> to vector<8x128xf32>
    %269 = arith.addf %266, %268 : vector<8x128xf32>
    %270 = vector.extract_strided_slice %5 {offsets = [0, 384], sizes = [8, 128], strides = [1, 1]} : vector<8x1536xf32> to vector<8x128xf32>
    %271 = arith.negf %270 : vector<8x128xf32>
    %272 = math.exp %271 : vector<8x128xf32>
    %cst_97 = arith.constant 1.000000e+00 : f32
    %273 = vector.broadcast %cst_97 : f32 to vector<8x128xf32>
    %274 = arith.addf %273, %272 : vector<8x128xf32>
    %275 = arith.divf %273, %274 : vector<8x128xf32>
    %276 = arith.mulf %269, %275 : vector<8x128xf32>
    %277 = vector.extract_strided_slice %5 {offsets = [0, 1152], sizes = [8, 128], strides = [1, 1]} : vector<8x1536xf32> to vector<8x128xf32>
    %278 = arith.addf %276, %277 : vector<8x128xf32>
    %c7 = arith.constant 7 : index
    %c0_98 = arith.constant 0 : index
    %279 = vector.load %arg4[%c7, %c0_98] : memref<56x256xf32, #tpu.memory_space<vmem>>, vector<1x128xf32>
    %280 = vector.broadcast %279 : vector<1x128xf32> to vector<8x128xf32>
    %281 = arith.addf %278, %280 : vector<8x128xf32>
    %c384_99 = arith.constant 384 : index
    %c0_100 = arith.constant 0 : index
    %282 = vector.load %arg7[%c384_99, %c0_100] : memref<1536x128xbf16, #tpu.memory_space<vmem>>, vector<128x128xbf16>
    %283 = arith.extf %282 : vector<128x128xbf16> to vector<128x128xf32>
    %c512_101 = arith.constant 512 : index
    %c0_102 = arith.constant 0 : index
    %284 = vector.load %arg7[%c512_101, %c0_102] : memref<1536x128xbf16, #tpu.memory_space<vmem>>, vector<128x128xbf16>
    %285 = arith.extf %284 : vector<128x128xbf16> to vector<128x128xf32>
    %c640 = arith.constant 640 : index
    %c0_103 = arith.constant 0 : index
    %286 = vector.load %arg7[%c640, %c0_103] : memref<1536x128xbf16, #tpu.memory_space<vmem>>, vector<128x128xbf16>
    %287 = arith.extf %286 : vector<128x128xbf16> to vector<128x128xf32>
    %cst_104 = arith.constant dense<0.000000e+00> : vector<8x128xf32>
    %288 = tpu.matmul %281, %283, %cst_104 {dimension_numbers = #tpu.dot_dimension_numbers<[1], [0], [0], [1], [0, 0, 1, 1], [], []>} : vector<8x128xf32>, vector<128x128xf32>, vector<8x128xf32> -> vector<8x128xf32>
    %c29 = arith.constant 29 : index
    %c0_105 = arith.constant 0 : index
    %289 = vector.load %arg4[%c29, %c0_105] : memref<56x256xf32, #tpu.memory_space<vmem>>, vector<1x128xf32>
    %290 = vector.broadcast %289 : vector<1x128xf32> to vector<8x128xf32>
    %291 = arith.addf %288, %290 : vector<8x128xf32>
    %292 = arith.addf %281, %291 : vector<8x128xf32>
    %c32 = arith.constant 32 : index
    %c0_106 = arith.constant 0 : index
    %293 = vector.load %arg4[%c32, %c0_106] : memref<56x256xf32, #tpu.memory_space<vmem>>, vector<1x128xf32>
    %c33 = arith.constant 33 : index
    %c0_107 = arith.constant 0 : index
    %294 = vector.load %arg4[%c33, %c0_107] : memref<56x256xf32, #tpu.memory_space<vmem>>, vector<1x128xf32>
    %cst_108 = arith.constant dense<0.000000e+00> : vector<8xf32>
    %295 = vector.multi_reduction <add>, %292, %cst_108 [1] : vector<8x128xf32> to vector<8xf32>
    %296 = vector.shape_cast %295 : vector<8xf32> to vector<8x1xf32>
    %cst_109 = arith.constant 1.562500e-02 : f32
    %297 = vector.broadcast %cst_109 : f32 to vector<8x1xf32>
    %298 = arith.mulf %296, %297 : vector<8x1xf32>
    %299 = arith.mulf %292, %292 : vector<8x128xf32>
    %cst_110 = arith.constant dense<0.000000e+00> : vector<8xf32>
    %300 = vector.multi_reduction <add>, %299, %cst_110 [1] : vector<8x128xf32> to vector<8xf32>
    %301 = vector.shape_cast %300 : vector<8xf32> to vector<8x1xf32>
    %cst_111 = arith.constant 1.562500e-02 : f32
    %302 = vector.broadcast %cst_111 : f32 to vector<8x1xf32>
    %303 = arith.mulf %301, %302 : vector<8x1xf32>
    %304 = vector.broadcast %298 : vector<8x1xf32> to vector<8x128xf32>
    %305 = arith.subf %292, %304 : vector<8x128xf32>
    %306 = arith.mulf %298, %298 : vector<8x1xf32>
    %307 = arith.subf %303, %306 : vector<8x1xf32>
    %cst_112 = arith.constant 9.99999974E-6 : f32
    %308 = vector.broadcast %cst_112 : f32 to vector<8x1xf32>
    %309 = arith.addf %307, %308 : vector<8x1xf32>
    %310 = math.rsqrt %309 : vector<8x1xf32>
    %311 = vector.broadcast %310 : vector<8x1xf32> to vector<8x128xf32>
    %312 = arith.mulf %305, %311 : vector<8x128xf32>
    %313 = vector.broadcast %293 : vector<1x128xf32> to vector<8x128xf32>
    %314 = arith.mulf %312, %313 : vector<8x128xf32>
    %315 = vector.broadcast %294 : vector<1x128xf32> to vector<8x128xf32>
    %316 = arith.addf %314, %315 : vector<8x128xf32>
    %cst_113 = arith.constant dense<0.000000e+00> : vector<8x128xf32>
    %317 = tpu.matmul %316, %285, %cst_113 {dimension_numbers = #tpu.dot_dimension_numbers<[1], [0], [0], [1], [0, 0, 1, 1], [], []>} : vector<8x128xf32>, vector<128x128xf32>, vector<8x128xf32> -> vector<8x128xf32>
    %c30 = arith.constant 30 : index
    %c0_114 = arith.constant 0 : index
    %318 = vector.load %arg4[%c30, %c0_114] : memref<56x256xf32, #tpu.memory_space<vmem>>, vector<1x128xf32>
    %319 = vector.broadcast %318 : vector<1x128xf32> to vector<8x128xf32>
    %320 = arith.addf %317, %319 : vector<8x128xf32>
    %cst_115 = arith.constant 0.000000e+00 : f32
    %321 = vector.broadcast %cst_115 : f32 to vector<8x128xf32>
    %322 = arith.maximumf %320, %321 : vector<8x128xf32>
    %cst_116 = arith.constant dense<0.000000e+00> : vector<8x128xf32>
    %323 = tpu.matmul %322, %287, %cst_116 {dimension_numbers = #tpu.dot_dimension_numbers<[1], [0], [0], [1], [0, 0, 1, 1], [], []>} : vector<8x128xf32>, vector<128x128xf32>, vector<8x128xf32> -> vector<8x128xf32>
    %c31 = arith.constant 31 : index
    %c0_117 = arith.constant 0 : index
    %324 = vector.load %arg4[%c31, %c0_117] : memref<56x256xf32, #tpu.memory_space<vmem>>, vector<1x128xf32>
    %325 = vector.broadcast %324 : vector<1x128xf32> to vector<8x128xf32>
    %326 = arith.addf %323, %325 : vector<8x128xf32>
    %327 = arith.addf %316, %326 : vector<8x128xf32>
    %c34 = arith.constant 34 : index
    %c0_118 = arith.constant 0 : index
    %328 = vector.load %arg4[%c34, %c0_118] : memref<56x256xf32, #tpu.memory_space<vmem>>, vector<1x128xf32>
    %c35 = arith.constant 35 : index
    %c0_119 = arith.constant 0 : index
    %329 = vector.load %arg4[%c35, %c0_119] : memref<56x256xf32, #tpu.memory_space<vmem>>, vector<1x128xf32>
    %cst_120 = arith.constant dense<0.000000e+00> : vector<8xf32>
    %330 = vector.multi_reduction <add>, %327, %cst_120 [1] : vector<8x128xf32> to vector<8xf32>
    %331 = vector.shape_cast %330 : vector<8xf32> to vector<8x1xf32>
    %cst_121 = arith.constant 1.562500e-02 : f32
    %332 = vector.broadcast %cst_121 : f32 to vector<8x1xf32>
    %333 = arith.mulf %331, %332 : vector<8x1xf32>
    %334 = arith.mulf %327, %327 : vector<8x128xf32>
    %cst_122 = arith.constant dense<0.000000e+00> : vector<8xf32>
    %335 = vector.multi_reduction <add>, %334, %cst_122 [1] : vector<8x128xf32> to vector<8xf32>
    %336 = vector.shape_cast %335 : vector<8xf32> to vector<8x1xf32>
    %cst_123 = arith.constant 1.562500e-02 : f32
    %337 = vector.broadcast %cst_123 : f32 to vector<8x1xf32>
    %338 = arith.mulf %336, %337 : vector<8x1xf32>
    %339 = vector.broadcast %333 : vector<8x1xf32> to vector<8x128xf32>
    %340 = arith.subf %327, %339 : vector<8x128xf32>
    %341 = arith.mulf %333, %333 : vector<8x1xf32>
    %342 = arith.subf %338, %341 : vector<8x1xf32>
    %cst_124 = arith.constant 9.99999974E-6 : f32
    %343 = vector.broadcast %cst_124 : f32 to vector<8x1xf32>
    %344 = arith.addf %342, %343 : vector<8x1xf32>
    %345 = math.rsqrt %344 : vector<8x1xf32>
    %346 = vector.broadcast %345 : vector<8x1xf32> to vector<8x128xf32>
    %347 = arith.mulf %340, %346 : vector<8x128xf32>
    %348 = vector.broadcast %328 : vector<1x128xf32> to vector<8x128xf32>
    %349 = arith.mulf %347, %348 : vector<8x128xf32>
    %350 = vector.broadcast %329 : vector<1x128xf32> to vector<8x128xf32>
    %351 = arith.addf %349, %350 : vector<8x128xf32>
    %c768_125 = arith.constant 768 : index
    %c0_126 = arith.constant 0 : index
    %352 = vector.load %arg7[%c768_125, %c0_126] : memref<1536x128xbf16, #tpu.memory_space<vmem>>, vector<128x128xbf16>
    %353 = arith.extf %352 : vector<128x128xbf16> to vector<128x128xf32>
    %c896_127 = arith.constant 896 : index
    %c0_128 = arith.constant 0 : index
    %354 = vector.load %arg7[%c896_127, %c0_128] : memref<1536x128xbf16, #tpu.memory_space<vmem>>, vector<128x128xbf16>
    %355 = arith.extf %354 : vector<128x128xbf16> to vector<128x128xf32>
    %c1024 = arith.constant 1024 : index
    %c0_129 = arith.constant 0 : index
    %356 = vector.load %arg7[%c1024, %c0_129] : memref<1536x128xbf16, #tpu.memory_space<vmem>>, vector<128x128xbf16>
    %357 = arith.extf %356 : vector<128x128xbf16> to vector<128x128xf32>
    %cst_130 = arith.constant dense<0.000000e+00> : vector<8x128xf32>
    %358 = tpu.matmul %351, %353, %cst_130 {dimension_numbers = #tpu.dot_dimension_numbers<[1], [0], [0], [1], [0, 0, 1, 1], [], []>} : vector<8x128xf32>, vector<128x128xf32>, vector<8x128xf32> -> vector<8x128xf32>
    %c36 = arith.constant 36 : index
    %c0_131 = arith.constant 0 : index
    %359 = vector.load %arg4[%c36, %c0_131] : memref<56x256xf32, #tpu.memory_space<vmem>>, vector<1x128xf32>
    %360 = vector.broadcast %359 : vector<1x128xf32> to vector<8x128xf32>
    %361 = arith.addf %358, %360 : vector<8x128xf32>
    %362 = arith.addf %351, %361 : vector<8x128xf32>
    %c39 = arith.constant 39 : index
    %c0_132 = arith.constant 0 : index
    %363 = vector.load %arg4[%c39, %c0_132] : memref<56x256xf32, #tpu.memory_space<vmem>>, vector<1x128xf32>
    %c40 = arith.constant 40 : index
    %c0_133 = arith.constant 0 : index
    %364 = vector.load %arg4[%c40, %c0_133] : memref<56x256xf32, #tpu.memory_space<vmem>>, vector<1x128xf32>
    %cst_134 = arith.constant dense<0.000000e+00> : vector<8xf32>
    %365 = vector.multi_reduction <add>, %362, %cst_134 [1] : vector<8x128xf32> to vector<8xf32>
    %366 = vector.shape_cast %365 : vector<8xf32> to vector<8x1xf32>
    %cst_135 = arith.constant 1.562500e-02 : f32
    %367 = vector.broadcast %cst_135 : f32 to vector<8x1xf32>
    %368 = arith.mulf %366, %367 : vector<8x1xf32>
    %369 = arith.mulf %362, %362 : vector<8x128xf32>
    %cst_136 = arith.constant dense<0.000000e+00> : vector<8xf32>
    %370 = vector.multi_reduction <add>, %369, %cst_136 [1] : vector<8x128xf32> to vector<8xf32>
    %371 = vector.shape_cast %370 : vector<8xf32> to vector<8x1xf32>
    %cst_137 = arith.constant 1.562500e-02 : f32
    %372 = vector.broadcast %cst_137 : f32 to vector<8x1xf32>
    %373 = arith.mulf %371, %372 : vector<8x1xf32>
    %374 = vector.broadcast %368 : vector<8x1xf32> to vector<8x128xf32>
    %375 = arith.subf %362, %374 : vector<8x128xf32>
    %376 = arith.mulf %368, %368 : vector<8x1xf32>
    %377 = arith.subf %373, %376 : vector<8x1xf32>
    %cst_138 = arith.constant 9.99999974E-6 : f32
    %378 = vector.broadcast %cst_138 : f32 to vector<8x1xf32>
    %379 = arith.addf %377, %378 : vector<8x1xf32>
    %380 = math.rsqrt %379 : vector<8x1xf32>
    %381 = vector.broadcast %380 : vector<8x1xf32> to vector<8x128xf32>
    %382 = arith.mulf %375, %381 : vector<8x128xf32>
    %383 = vector.broadcast %363 : vector<1x128xf32> to vector<8x128xf32>
    %384 = arith.mulf %382, %383 : vector<8x128xf32>
    %385 = vector.broadcast %364 : vector<1x128xf32> to vector<8x128xf32>
    %386 = arith.addf %384, %385 : vector<8x128xf32>
    %cst_139 = arith.constant dense<0.000000e+00> : vector<8x128xf32>
    %387 = tpu.matmul %386, %355, %cst_139 {dimension_numbers = #tpu.dot_dimension_numbers<[1], [0], [0], [1], [0, 0, 1, 1], [], []>} : vector<8x128xf32>, vector<128x128xf32>, vector<8x128xf32> -> vector<8x128xf32>
    %c37 = arith.constant 37 : index
    %c0_140 = arith.constant 0 : index
    %388 = vector.load %arg4[%c37, %c0_140] : memref<56x256xf32, #tpu.memory_space<vmem>>, vector<1x128xf32>
    %389 = vector.broadcast %388 : vector<1x128xf32> to vector<8x128xf32>
    %390 = arith.addf %387, %389 : vector<8x128xf32>
    %cst_141 = arith.constant 0.000000e+00 : f32
    %391 = vector.broadcast %cst_141 : f32 to vector<8x128xf32>
    %392 = arith.maximumf %390, %391 : vector<8x128xf32>
    %cst_142 = arith.constant dense<0.000000e+00> : vector<8x128xf32>
    %393 = tpu.matmul %392, %357, %cst_142 {dimension_numbers = #tpu.dot_dimension_numbers<[1], [0], [0], [1], [0, 0, 1, 1], [], []>} : vector<8x128xf32>, vector<128x128xf32>, vector<8x128xf32> -> vector<8x128xf32>
    %c38 = arith.constant 38 : index
    %c0_143 = arith.constant 0 : index
    %394 = vector.load %arg4[%c38, %c0_143] : memref<56x256xf32, #tpu.memory_space<vmem>>, vector<1x128xf32>
    %395 = vector.broadcast %394 : vector<1x128xf32> to vector<8x128xf32>
    %396 = arith.addf %393, %395 : vector<8x128xf32>
    %397 = arith.addf %386, %396 : vector<8x128xf32>
    %c41 = arith.constant 41 : index
    %c0_144 = arith.constant 0 : index
    %398 = vector.load %arg4[%c41, %c0_144] : memref<56x256xf32, #tpu.memory_space<vmem>>, vector<1x128xf32>
    %c42 = arith.constant 42 : index
    %c0_145 = arith.constant 0 : index
    %399 = vector.load %arg4[%c42, %c0_145] : memref<56x256xf32, #tpu.memory_space<vmem>>, vector<1x128xf32>
    %cst_146 = arith.constant dense<0.000000e+00> : vector<8xf32>
    %400 = vector.multi_reduction <add>, %397, %cst_146 [1] : vector<8x128xf32> to vector<8xf32>
    %401 = vector.shape_cast %400 : vector<8xf32> to vector<8x1xf32>
    %cst_147 = arith.constant 1.562500e-02 : f32
    %402 = vector.broadcast %cst_147 : f32 to vector<8x1xf32>
    %403 = arith.mulf %401, %402 : vector<8x1xf32>
    %404 = arith.mulf %397, %397 : vector<8x128xf32>
    %cst_148 = arith.constant dense<0.000000e+00> : vector<8xf32>
    %405 = vector.multi_reduction <add>, %404, %cst_148 [1] : vector<8x128xf32> to vector<8xf32>
    %406 = vector.shape_cast %405 : vector<8xf32> to vector<8x1xf32>
    %cst_149 = arith.constant 1.562500e-02 : f32
    %407 = vector.broadcast %cst_149 : f32 to vector<8x1xf32>
    %408 = arith.mulf %406, %407 : vector<8x1xf32>
    %409 = vector.broadcast %403 : vector<8x1xf32> to vector<8x128xf32>
    %410 = arith.subf %397, %409 : vector<8x128xf32>
    %411 = arith.mulf %403, %403 : vector<8x1xf32>
    %412 = arith.subf %408, %411 : vector<8x1xf32>
    %cst_150 = arith.constant 9.99999974E-6 : f32
    %413 = vector.broadcast %cst_150 : f32 to vector<8x1xf32>
    %414 = arith.addf %412, %413 : vector<8x1xf32>
    %415 = math.rsqrt %414 : vector<8x1xf32>
    %416 = vector.broadcast %415 : vector<8x1xf32> to vector<8x128xf32>
    %417 = arith.mulf %410, %416 : vector<8x128xf32>
    %418 = vector.broadcast %398 : vector<1x128xf32> to vector<8x128xf32>
    %419 = arith.mulf %417, %418 : vector<8x128xf32>
    %420 = vector.broadcast %399 : vector<1x128xf32> to vector<8x128xf32>
    %421 = arith.addf %419, %420 : vector<8x128xf32>
    %c1152_151 = arith.constant 1152 : index
    %c0_152 = arith.constant 0 : index
    %422 = vector.load %arg7[%c1152_151, %c0_152] : memref<1536x128xbf16, #tpu.memory_space<vmem>>, vector<128x128xbf16>
    %423 = arith.extf %422 : vector<128x128xbf16> to vector<128x128xf32>
    %c1280_153 = arith.constant 1280 : index
    %c0_154 = arith.constant 0 : index
    %424 = vector.load %arg7[%c1280_153, %c0_154] : memref<1536x128xbf16, #tpu.memory_space<vmem>>, vector<128x128xbf16>
    %425 = arith.extf %424 : vector<128x128xbf16> to vector<128x128xf32>
    %c1408 = arith.constant 1408 : index
    %c0_155 = arith.constant 0 : index
    %426 = vector.load %arg7[%c1408, %c0_155] : memref<1536x128xbf16, #tpu.memory_space<vmem>>, vector<128x128xbf16>
    %427 = arith.extf %426 : vector<128x128xbf16> to vector<128x128xf32>
    %cst_156 = arith.constant dense<0.000000e+00> : vector<8x128xf32>
    %428 = tpu.matmul %421, %423, %cst_156 {dimension_numbers = #tpu.dot_dimension_numbers<[1], [0], [0], [1], [0, 0, 1, 1], [], []>} : vector<8x128xf32>, vector<128x128xf32>, vector<8x128xf32> -> vector<8x128xf32>
    %c43 = arith.constant 43 : index
    %c0_157 = arith.constant 0 : index
    %429 = vector.load %arg4[%c43, %c0_157] : memref<56x256xf32, #tpu.memory_space<vmem>>, vector<1x128xf32>
    %430 = vector.broadcast %429 : vector<1x128xf32> to vector<8x128xf32>
    %431 = arith.addf %428, %430 : vector<8x128xf32>
    %432 = arith.addf %421, %431 : vector<8x128xf32>
    %c46 = arith.constant 46 : index
    %c0_158 = arith.constant 0 : index
    %433 = vector.load %arg4[%c46, %c0_158] : memref<56x256xf32, #tpu.memory_space<vmem>>, vector<1x128xf32>
    %c47 = arith.constant 47 : index
    %c0_159 = arith.constant 0 : index
    %434 = vector.load %arg4[%c47, %c0_159] : memref<56x256xf32, #tpu.memory_space<vmem>>, vector<1x128xf32>
    %cst_160 = arith.constant dense<0.000000e+00> : vector<8xf32>
    %435 = vector.multi_reduction <add>, %432, %cst_160 [1] : vector<8x128xf32> to vector<8xf32>
    %436 = vector.shape_cast %435 : vector<8xf32> to vector<8x1xf32>
    %cst_161 = arith.constant 1.562500e-02 : f32
    %437 = vector.broadcast %cst_161 : f32 to vector<8x1xf32>
    %438 = arith.mulf %436, %437 : vector<8x1xf32>
    %439 = arith.mulf %432, %432 : vector<8x128xf32>
    %cst_162 = arith.constant dense<0.000000e+00> : vector<8xf32>
    %440 = vector.multi_reduction <add>, %439, %cst_162 [1] : vector<8x128xf32> to vector<8xf32>
    %441 = vector.shape_cast %440 : vector<8xf32> to vector<8x1xf32>
    %cst_163 = arith.constant 1.562500e-02 : f32
    %442 = vector.broadcast %cst_163 : f32 to vector<8x1xf32>
    %443 = arith.mulf %441, %442 : vector<8x1xf32>
    %444 = vector.broadcast %438 : vector<8x1xf32> to vector<8x128xf32>
    %445 = arith.subf %432, %444 : vector<8x128xf32>
    %446 = arith.mulf %438, %438 : vector<8x1xf32>
    %447 = arith.subf %443, %446 : vector<8x1xf32>
    %cst_164 = arith.constant 9.99999974E-6 : f32
    %448 = vector.broadcast %cst_164 : f32 to vector<8x1xf32>
    %449 = arith.addf %447, %448 : vector<8x1xf32>
    %450 = math.rsqrt %449 : vector<8x1xf32>
    %451 = vector.broadcast %450 : vector<8x1xf32> to vector<8x128xf32>
    %452 = arith.mulf %445, %451 : vector<8x128xf32>
    %453 = vector.broadcast %433 : vector<1x128xf32> to vector<8x128xf32>
    %454 = arith.mulf %452, %453 : vector<8x128xf32>
    %455 = vector.broadcast %434 : vector<1x128xf32> to vector<8x128xf32>
    %456 = arith.addf %454, %455 : vector<8x128xf32>
    %cst_165 = arith.constant dense<0.000000e+00> : vector<8x128xf32>
    %457 = tpu.matmul %456, %425, %cst_165 {dimension_numbers = #tpu.dot_dimension_numbers<[1], [0], [0], [1], [0, 0, 1, 1], [], []>} : vector<8x128xf32>, vector<128x128xf32>, vector<8x128xf32> -> vector<8x128xf32>
    %c44 = arith.constant 44 : index
    %c0_166 = arith.constant 0 : index
    %458 = vector.load %arg4[%c44, %c0_166] : memref<56x256xf32, #tpu.memory_space<vmem>>, vector<1x128xf32>
    %459 = vector.broadcast %458 : vector<1x128xf32> to vector<8x128xf32>
    %460 = arith.addf %457, %459 : vector<8x128xf32>
    %cst_167 = arith.constant 0.000000e+00 : f32
    %461 = vector.broadcast %cst_167 : f32 to vector<8x128xf32>
    %462 = arith.maximumf %460, %461 : vector<8x128xf32>
    %cst_168 = arith.constant dense<0.000000e+00> : vector<8x128xf32>
    %463 = tpu.matmul %462, %427, %cst_168 {dimension_numbers = #tpu.dot_dimension_numbers<[1], [0], [0], [1], [0, 0, 1, 1], [], []>} : vector<8x128xf32>, vector<128x128xf32>, vector<8x128xf32> -> vector<8x128xf32>
    %c45 = arith.constant 45 : index
    %c0_169 = arith.constant 0 : index
    %464 = vector.load %arg4[%c45, %c0_169] : memref<56x256xf32, #tpu.memory_space<vmem>>, vector<1x128xf32>
    %465 = vector.broadcast %464 : vector<1x128xf32> to vector<8x128xf32>
    %466 = arith.addf %463, %465 : vector<8x128xf32>
    %467 = arith.addf %456, %466 : vector<8x128xf32>
    %c48 = arith.constant 48 : index
    %c0_170 = arith.constant 0 : index
    %468 = vector.load %arg4[%c48, %c0_170] : memref<56x256xf32, #tpu.memory_space<vmem>>, vector<1x128xf32>
    %c49 = arith.constant 49 : index
    %c0_171 = arith.constant 0 : index
    %469 = vector.load %arg4[%c49, %c0_171] : memref<56x256xf32, #tpu.memory_space<vmem>>, vector<1x128xf32>
    %cst_172 = arith.constant dense<0.000000e+00> : vector<8xf32>
    %470 = vector.multi_reduction <add>, %467, %cst_172 [1] : vector<8x128xf32> to vector<8xf32>
    %471 = vector.shape_cast %470 : vector<8xf32> to vector<8x1xf32>
    %cst_173 = arith.constant 1.562500e-02 : f32
    %472 = vector.broadcast %cst_173 : f32 to vector<8x1xf32>
    %473 = arith.mulf %471, %472 : vector<8x1xf32>
    %474 = arith.mulf %467, %467 : vector<8x128xf32>
    %cst_174 = arith.constant dense<0.000000e+00> : vector<8xf32>
    %475 = vector.multi_reduction <add>, %474, %cst_174 [1] : vector<8x128xf32> to vector<8xf32>
    %476 = vector.shape_cast %475 : vector<8xf32> to vector<8x1xf32>
    %cst_175 = arith.constant 1.562500e-02 : f32
    %477 = vector.broadcast %cst_175 : f32 to vector<8x1xf32>
    %478 = arith.mulf %476, %477 : vector<8x1xf32>
    %479 = vector.broadcast %473 : vector<8x1xf32> to vector<8x128xf32>
    %480 = arith.subf %467, %479 : vector<8x128xf32>
    %481 = arith.mulf %473, %473 : vector<8x1xf32>
    %482 = arith.subf %478, %481 : vector<8x1xf32>
    %cst_176 = arith.constant 9.99999974E-6 : f32
    %483 = vector.broadcast %cst_176 : f32 to vector<8x1xf32>
    %484 = arith.addf %482, %483 : vector<8x1xf32>
    %485 = math.rsqrt %484 : vector<8x1xf32>
    %486 = vector.broadcast %485 : vector<8x1xf32> to vector<8x128xf32>
    %487 = arith.mulf %480, %486 : vector<8x128xf32>
    %488 = vector.broadcast %468 : vector<1x128xf32> to vector<8x128xf32>
    %489 = arith.mulf %487, %488 : vector<8x128xf32>
    %490 = vector.broadcast %469 : vector<1x128xf32> to vector<8x128xf32>
    %491 = arith.addf %489, %490 : vector<8x128xf32>
    %c128_177 = arith.constant 128 : index
    %c0_178 = arith.constant 0 : index
    %492 = vector.load %arg7[%c128_177, %c0_178] : memref<1536x128xbf16, #tpu.memory_space<vmem>>, vector<128x128xbf16>
    %493 = arith.extf %492 : vector<128x128xbf16> to vector<128x128xf32>
    %cst_179 = arith.constant dense<0.000000e+00> : vector<8x128xf32>
    %494 = tpu.matmul %491, %493, %cst_179 {dimension_numbers = #tpu.dot_dimension_numbers<[1], [0], [0], [1], [0, 0, 1, 1], [], []>} : vector<8x128xf32>, vector<128x128xf32>, vector<8x128xf32> -> vector<8x128xf32>
    %c4 = arith.constant 4 : index
    %c0_180 = arith.constant 0 : index
    %495 = vector.load %arg4[%c4, %c0_180] : memref<56x256xf32, #tpu.memory_space<vmem>>, vector<1x128xf32>
    %496 = vector.broadcast %495 : vector<1x128xf32> to vector<8x128xf32>
    %497 = arith.addf %494, %496 : vector<8x128xf32>
    %498 = vector.extract_strided_slice %5 {offsets = [0, 512], sizes = [8, 128], strides = [1, 1]} : vector<8x1536xf32> to vector<8x128xf32>
    %499 = arith.negf %498 : vector<8x128xf32>
    %500 = math.exp %499 : vector<8x128xf32>
    %cst_181 = arith.constant 1.000000e+00 : f32
    %501 = vector.broadcast %cst_181 : f32 to vector<8x128xf32>
    %502 = arith.addf %501, %500 : vector<8x128xf32>
    %503 = arith.divf %501, %502 : vector<8x128xf32>
    %504 = arith.mulf %497, %503 : vector<8x128xf32>
    %505 = vector.extract_strided_slice %5 {offsets = [0, 1280], sizes = [8, 128], strides = [1, 1]} : vector<8x1536xf32> to vector<8x128xf32>
    %506 = arith.addf %504, %505 : vector<8x128xf32>
    %c256_182 = arith.constant 256 : index
    %c0_183 = arith.constant 0 : index
    %507 = vector.load %arg7[%c256_182, %c0_183] : memref<1536x128xbf16, #tpu.memory_space<vmem>>, vector<128x128xbf16>
    %508 = arith.extf %507 : vector<128x128xbf16> to vector<128x128xf32>
    %cst_184 = arith.constant dense<0.000000e+00> : vector<8x128xf32>
    %509 = tpu.matmul %506, %508, %cst_184 {dimension_numbers = #tpu.dot_dimension_numbers<[1], [0], [0], [1], [0, 0, 1, 1], [], []>} : vector<8x128xf32>, vector<128x128xf32>, vector<8x128xf32> -> vector<8x128xf32>
    %c5 = arith.constant 5 : index
    %c0_185 = arith.constant 0 : index
    %510 = vector.load %arg4[%c5, %c0_185] : memref<56x256xf32, #tpu.memory_space<vmem>>, vector<1x128xf32>
    %511 = vector.broadcast %510 : vector<1x128xf32> to vector<8x128xf32>
    %512 = arith.addf %509, %511 : vector<8x128xf32>
    %513 = vector.extract_strided_slice %5 {offsets = [0, 640], sizes = [8, 128], strides = [1, 1]} : vector<8x1536xf32> to vector<8x128xf32>
    %514 = arith.negf %513 : vector<8x128xf32>
    %515 = math.exp %514 : vector<8x128xf32>
    %cst_186 = arith.constant 1.000000e+00 : f32
    %516 = vector.broadcast %cst_186 : f32 to vector<8x128xf32>
    %517 = arith.addf %516, %515 : vector<8x128xf32>
    %518 = arith.divf %516, %517 : vector<8x128xf32>
    %519 = arith.mulf %512, %518 : vector<8x128xf32>
    %520 = vector.extract_strided_slice %5 {offsets = [0, 1408], sizes = [8, 128], strides = [1, 1]} : vector<8x1536xf32> to vector<8x128xf32>
    %521 = arith.addf %519, %520 : vector<8x128xf32>
    %c0_187 = arith.constant 0 : index
    %c0_188 = arith.constant 0 : index
    %522 = vector.load %arg6[%c0_187, %c0_188] : memref<8x128xf32, #tpu.memory_space<vmem>>, vector<8x128xf32>
    tpu.vector_store %arg6[%c0_187, %c0_188], %521 {strides = array<i32>} : memref<8x128xf32, #tpu.memory_space<vmem>>, vector<8x128xf32>,
    return
  }
}

</mosaic_0001>

<llo_original>
// kernel: hminet_forward.1
$region0: #{hminet_forward.1}
  #allocation0 [shape = 'u32[]', space=smem, size = 0x4, offset = 0x4, fixed_abs, tag = 'smem constant byte address 0x4 - core index']
  #allocation1 [shape = 'u32[72,128]{1,0:T(1,128)}', space=vmem, size = 0x9000, scoped, tag = 'internal scratch']
  #allocation2 [shape = 'bf16[1536,128]{1,0:T(8,128)(2,1)}', space=vmem, size = 0x60000, scoped, tag = 'scratch operand']
  #allocation3 [shape = 's32[1]{0}', space=sflag, size = 0x4, scoped, tag = 'scratch operand']
  #allocation11 [shape = 's32[]', space=sflag, size = 0x4, offset = 0, fixed_abs, tag = 'sflag constant byte address 0x0 - dummy sync flag']
  #allocation12 [shape = 's32[]', space=sflag, size = 0x4, offset = 0, fixed_abs, tag = 'sflag constant byte address 0x0 - dummy sync flag']
  #allocation13 [shape = 'u32[]', space=smem, size = 0x4, offset = 0x44, fixed_abs, tag = 'smem constant byte address 0x44 - assertion arg 0']
  #allocation14 [shape = 'u32[]', space=smem, size = 0x4, offset = 0x48, fixed_abs, tag = 'smem constant byte address 0x48 - assertion arg 1']
  %s0 = inlined_call_operand.vmem [shape: f32[8,256], index: 0, kind: input, shape index: {}]
  %s1 = inlined_call_operand.hbm [shape: bf16[128,1536], index: 1, kind: input, shape index: {}]
  %s2 = inlined_call_operand.hbm [shape: bf16[1536,128], index: 2, kind: input, shape index: {}]
  %s3 = inlined_call_operand.hbm [shape: bf16[384,256], index: 3, kind: input, shape index: {}]
  %s4 = inlined_call_operand.hbm [shape: f32[56,256], index: 4, kind: input, shape index: {}]
  %s5 = inlined_call_operand.hbm [shape: bf16[1536,128], index: 5, kind: input, shape index: {}]
  %s6 = inlined_call_operand.vmem [shape: f32[8,128], index: 6, kind: output, shape index: {}]
  %s7 = sld [smem:[#allocation0]]
  $region50: #{hminet_forward.1} parent=0
    _
  %s9 = ssub.s32 1, %s7
  %s10 = scalar_select 0, %s9, %s7
  $region1: #{hminet_forward.1} parent=0
    #allocation4 [shape = 'u8[393216]{0}', space=vmem, size = 0x60000, scoped, tag = 'input window, operand 1, single buffered']
    #allocation5 [shape = 's32[1]{0}', space=sflag, size = 0x4, scoped, tag = 'scoped memory for hminet_forward.1']
    #allocation6 [shape = 'u8[393216]{0}', space=vmem, size = 0x60000, scoped, tag = 'input window, operand 2, single buffered']
    #allocation7 [shape = 's32[1]{0}', space=sflag, size = 0x4, scoped, tag = 'scoped memory for hminet_forward.1']
    #allocation8 [shape = 'u8[196608]{0}', space=vmem, size = 0x30000, scoped, tag = 'input window, operand 3, single buffered']
    #allocation9 [shape = 'u8[57344]{0}', space=vmem, size = 0xe000, scoped, tag = 'input window, operand 4, single buffered']
    #allocation10 [shape = 's32[1]{0}', space=sflag, size = 0x4, scoped, tag = 'scoped memory for hminet_forward.1']
    %11 = vsyncpa [#allocation5], 0
    %12 = vsyncpa [#allocation7], 0
    %13 = vsyncpa [#allocation10], 0
    // Predicated region
    $region2: #{hminet_forward.1} parent=1 // pred_check
      _
    $region3: #{hminet_forward.1} parent=1 // pred_check_branch
      %15 = sbr.rel (0) target = $region5
    $region4: #{hminet_forward.1} parent=1 // pred_region
      _
    $region5: #{hminet_forward.1} parent=1 // pred_fallthru
      _
    // Predicated region
    $region6: #{hminet_forward.1} parent=1 // pred_check
      _
    $region7: #{hminet_forward.1} parent=1 // pred_check_branch
      %17 = sbr.rel (0) target = $region9
    $region8: #{hminet_forward.1} parent=1 // pred_region
      %19 = vsyncadd [#allocation5], 0
      %s20 = sshll.u32 %s1, 4
      %s21 = int_to_ptr.hbm [resolvable:$true] %s20
      %s22 = sshll.u32 [#allocation4], 4
      %s23 = int_to_ptr.vmem [resolvable:$true] %s22
      %28 = dma.hbm_to_vmem [thread:$0]  %s21, 12288, %s23, [#allocation5], 768, 768, 48
    $region9: #{hminet_forward.1} parent=1 // pred_fallthru
      _
    // Predicated region
    $region10: #{hminet_forward.1} parent=1 // pred_check
      _
    $region11: #{hminet_forward.1} parent=1 // pred_check_branch
      %30 = sbr.rel (0) target = $region13
    $region12: #{hminet_forward.1} parent=1 // pred_region
      %32 = vsyncadd [#allocation7], 0
      %s33 = sshll.u32 %s2, 4
      %s34 = int_to_ptr.hbm [resolvable:$true] %s33
      %s35 = sshll.u32 [#allocation6], 4
      %s36 = int_to_ptr.vmem [resolvable:$true] %s35
      %41 = dma.hbm_to_vmem [thread:$0]  %s34, 12288, %s36, [#allocation7], 64, 64, 4
    $region13: #{hminet_forward.1} parent=1 // pred_fallthru
      _
    // Predicated region
    $region14: #{hminet_forward.1} parent=1 // pred_check
      _
    $region15: #{hminet_forward.1} parent=1 // pred_check_branch
      %43 = sbr.rel (0) target = $region17
    $region16: #{hminet_forward.1} parent=1 // pred_region
      %45 = vsyncadd [#allocation7], 0
      %s46 = sshll.u32 %s3, 4
      %s47 = int_to_ptr.hbm [resolvable:$true] %s46
      %s48 = sshll.u32 [#allocation8], 4
      %s49 = int_to_ptr.vmem [resolvable:$true] %s48
      %54 = dma.hbm_to_vmem [thread:$0]  %s47, 6144, %s49, [#allocation7], 128, 128, 8
    $region17: #{hminet_forward.1} parent=1 // pred_fallthru
      _
    // Predicated region
    $region18: #{hminet_forward.1} parent=1 // pred_check
      _
    $region19: #{hminet_forward.1} parent=1 // pred_check_branch
      %56 = sbr.rel (0) target = $region21
    $region20: #{hminet_forward.1} parent=1 // pred_region
      %58 = vsyncadd [#allocation10], 0
      %s59 = sshll.u32 %s4, 4
      %s60 = int_to_ptr.hbm [resolvable:$true] %s59
      %s61 = sshll.u32 [#allocation9], 4
      %s62 = int_to_ptr.vmem [resolvable:$true] %s61
      %67 = dma.hbm_to_vmem [thread:$0]  %s60, 1792, %s62, [#allocation10], 256, 256, 16
    $region21: #{hminet_forward.1} parent=1 // pred_fallthru
      _
    // Predicated region
    $region22: #{hminet_forward.1} parent=1 // pred_check
      _
    $region23: #{hminet_forward.1} parent=1 // pred_check_branch
      %69 = sbr.rel (0) target = $region25
    $region24: #{hminet_forward.1} parent=1 // pred_region
      %71 = dma.done [#allocation5], 12288
    $region25: #{hminet_forward.1} parent=1 // pred_fallthru
      _
    // Predicated region
    $region26: #{hminet_forward.1} parent=1 // pred_check
      _
    $region27: #{hminet_forward.1} parent=1 // pred_check_branch
      %73 = sbr.rel (0) target = $region29
    $region28: #{hminet_forward.1} parent=1 // pred_region
      %75 = dma.done [#allocation7], 12288
    $region29: #{hminet_forward.1} parent=1 // pred_fallthru
      _
    // Predicated region
    $region30: #{hminet_forward.1} parent=1 // pred_check
      _
    $region31: #{hminet_forward.1} parent=1 // pred_check_branch
      %77 = sbr.rel (0) target = $region33
    $region32: #{hminet_forward.1} parent=1 // pred_region
      %79 = dma.done [#allocation7], 6144
    $region33: #{hminet_forward.1} parent=1 // pred_fallthru
      _
    // Predicated region
    $region34: #{hminet_forward.1} parent=1 // pred_check
      _
    $region35: #{hminet_forward.1} parent=1 // pred_check_branch
      %81 = sbr.rel (0) target = $region37
    $region36: #{hminet_forward.1} parent=1 // pred_region
      %83 = dma.done [#allocation10], 1792
    $region37: #{hminet_forward.1} parent=1 // pred_fallthru
      _
    // Predicated region
    $region38: #{hminet_forward.1} parent=1 // pred_check
      _
    $region39: #{hminet_forward.1} parent=1 // pred_check_branch
      %85 = sbr.rel target = $region41
    $region40: #{hminet_forward.1} parent=1 // pred_region
      %86 = sst [smem:[#allocation13]] [#allocation12]
      %87 = sst [smem:[#allocation14]] [#allocation11]
    $region41: #{hminet_forward.1} parent=1 // pred_fallthru
      _
    %89 = shalt.err (0)
    %s91 = sshll.u32 %s5, 4
    %s92 = int_to_ptr.hbm [resolvable:$true] %s91
    %s93 = sshll.u32 [#allocation2], 4
    %s94 = int_to_ptr.vmem [resolvable:$true] %s93
    %96 = dma.hbm_to_vmem [thread:$0]  %s92, 12288, %s94, [#allocation3]
    %v97 = vld [vmem:[%s0] sm:$0xff]
    %v98 = vld [vmem:[%s0 + $0x8] sm:$0xff]
    %v99 = vld [vmem:[#allocation4] sm:$0xff]
    %v100 = vld [vmem:[#allocation4 + $0x8] sm:$0xff]
    %v101 = vld [vmem:[#allocation4 + $0x10] sm:$0xff]
    %v102 = vld [vmem:[#allocation4 + $0x18] sm:$0xff]
    %v103 = vld [vmem:[#allocation4 + $0x20] sm:$0xff]
    %v104 = vld [vmem:[#allocation4 + $0x28] sm:$0xff]
    %v105 = vld [vmem:[#allocation4 + $0x30] sm:$0xff]
    %v106 = vld [vmem:[#allocation4 + $0x38] sm:$0xff]
    %v107 = vld [vmem:[#allocation4 + $0x40] sm:$0xff]
    %v108 = vld [vmem:[#allocation4 + $0x48] sm:$0xff]
    %v109 = vld [vmem:[#allocation4 + $0x50] sm:$0xff]
    %v110 = vld [vmem:[#allocation4 + $0x58] sm:$0xff]
    %v111 = vld [vmem:[#allocation4 + $0x60] sm:$0xff]
    %v112 = vld [vmem:[#allocation4 + $0x68] sm:$0xff]
    %v113 = vld [vmem:[#allocation4 + $0x70] sm:$0xff]
    %v114 = vld [vmem:[#allocation4 + $0x78] sm:$0xff]
    %v115 = vld [vmem:[#allocation4 + $0x80] sm:$0xff]
    %v116 = vld [vmem:[#allocation4 + $0x88] sm:$0xff]
    %v117 = vld [vmem:[#allocation4 + $0x90] sm:$0xff]
    %v118 = vld [vmem:[#allocation4 + $0x98] sm:$0xff]
    %v119 = vld [vmem:[#allocation4 + $0xa0] sm:$0xff]
    %v120 = vld [vmem:[#allocation4 + $0xa8] sm:$0xff]
    %v121 = vld [vmem:[#allocation4 + $0xb0] sm:$0xff]
    %v122 = vld [vmem:[#allocation4 + $0xb8] sm:$0xff]
    %v123 = vld [vmem:[#allocation4 + $0xc0] sm:$0xff]
    %v124 = vld [vmem:[#allocation4 + $0xc8] sm:$0xff]
    %v125 = vld [vmem:[#allocation4 + $0xd0] sm:$0xff]
    %v126 = vld [vmem:[#allocation4 + $0xd8] sm:$0xff]
    %v127 = vld [vmem:[#allocation4 + $0xe0] sm:$0xff]
    %v128 = vld [vmem:[#allocation4 + $0xe8] sm:$0xff]
    %v129 = vld [vmem:[#allocation4 + $0xf0] sm:$0xff]
    %v130 = vld [vmem:[#allocation4 + $0xf8] sm:$0xff]
    %v131 = vld [vmem:[#allocation4 + $0x100] sm:$0xff]
    %v132 = vld [vmem:[#allocation4 + $0x108] sm:$0xff]
    %v133 = vld [vmem:[#allocation4 + $0x110] sm:$0xff]
    %v134 = vld [vmem:[#allocation4 + $0x118] sm:$0xff]
    %v135 = vld [vmem:[#allocation4 + $0x120] sm:$0xff]
    %v136 = vld [vmem:[#allocation4 + $0x128] sm:$0xff]
    %v137 = vld [vmem:[#allocation4 + $0x130] sm:$0xff]
    %v138 = vld [vmem:[#allocation4 + $0x138] sm:$0xff]
    %v139 = vld [vmem:[#allocation4 + $0x140] sm:$0xff]
    %v140 = vld [vmem:[#allocation4 + $0x148] sm:$0xff]
    %v141 = vld [vmem:[#allocation4 + $0x150] sm:$0xff]
    %v142 = vld [vmem:[#allocation4 + $0x158] sm:$0xff]
    %v143 = vld [vmem:[#allocation4 + $0x160] sm:$0xff]
    %v144 = vld [vmem:[#allocation4 + $0x168] sm:$0xff]
    %v145 = vld [vmem:[#allocation4 + $0x170] sm:$0xff]
    %v146 = vld [vmem:[#allocation4 + $0x178] sm:$0xff]
    %v147 = vld [vmem:[#allocation4 + $0x180] sm:$0xff]
    %v148 = vld [vmem:[#allocation4 + $0x188] sm:$0xff]
    %v149 = vld [vmem:[#allocation4 + $0x190] sm:$0xff]
    %v150 = vld [vmem:[#allocation4 + $0x198] sm:$0xff]
    %v151 = vld [vmem:[#allocation4 + $0x1a0] sm:$0xff]
    %v152 = vld [vmem:[#allocation4 + $0x1a8] sm:$0xff]
    %v153 = vld [vmem:[#allocation4 + $0x1b0] sm:$0xff]
    %v154 = vld [vmem:[#allocation4 + $0x1b8] sm:$0xff]
    %v155 = vld [vmem:[#allocation4 + $0x1c0] sm:$0xff]
    %v156 = vld [vmem:[#allocation4 + $0x1c8] sm:$0xff]
    %v157 = vld [vmem:[#allocation4 + $0x1d0] sm:$0xff]
    %v158 = vld [vmem:[#allocation4 + $0x1d8] sm:$0xff]
    %v159 = vld [vmem:[#allocation4 + $0x1e0] sm:$0xff]
    %v160 = vld [vmem:[#allocation4 + $0x1e8] sm:$0xff]
    %v161 = vld [vmem:[#allocation4 + $0x1f0] sm:$0xff]
    %v162 = vld [vmem:[#allocation4 + $0x1f8] sm:$0xff]
    %v163 = vld [vmem:[#allocation4 + $0x200] sm:$0xff]
    %v164 = vld [vmem:[#allocation4 + $0x208] sm:$0xff]
    %v165 = vld [vmem:[#allocation4 + $0x210] sm:$0xff]
    %v166 = vld [vmem:[#allocation4 + $0x218] sm:$0xff]
    %v167 = vld [vmem:[#allocation4 + $0x220] sm:$0xff]
    %v168 = vld [vmem:[#allocation4 + $0x228] sm:$0xff]
    %v169 = vld [vmem:[#allocation4 + $0x230] sm:$0xff]
    %v170 = vld [vmem:[#allocation4 + $0x238] sm:$0xff]
    %v171 = vld [vmem:[#allocation4 + $0x240] sm:$0xff]
    %v172 = vld [vmem:[#allocation4 + $0x248] sm:$0xff]
    %v173 = vld [vmem:[#allocation4 + $0x250] sm:$0xff]
    %v174 = vld [vmem:[#allocation4 + $0x258] sm:$0xff]
    %v175 = vld [vmem:[#allocation4 + $0x260] sm:$0xff]
    %v176 = vld [vmem:[#allocation4 + $0x268] sm:$0xff]
    %v177 = vld [vmem:[#allocation4 + $0x270] sm:$0xff]
    %v178 = vld [vmem:[#allocation4 + $0x278] sm:$0xff]
    %v179 = vld [vmem:[#allocation4 + $0x280] sm:$0xff]
    %v180 = vld [vmem:[#allocation4 + $0x288] sm:$0xff]
    %v181 = vld [vmem:[#allocation4 + $0x290] sm:$0xff]
    %v182 = vld [vmem:[#allocation4 + $0x298] sm:$0xff]
    %v183 = vld [vmem:[#allocation4 + $0x2a0] sm:$0xff]
    %v184 = vld [vmem:[#allocation4 + $0x2a8] sm:$0xff]
    %v185 = vld [vmem:[#allocation4 + $0x2b0] sm:$0xff]
    %v186 = vld [vmem:[#allocation4 + $0x2b8] sm:$0xff]
    %v187 = vld [vmem:[#allocation4 + $0x2c0] sm:$0xff]
    %v188 = vld [vmem:[#allocation4 + $0x2c8] sm:$0xff]
    %v189 = vld [vmem:[#allocation4 + $0x2d0] sm:$0xff]
    %v190 = vld [vmem:[#allocation4 + $0x2d8] sm:$0xff]
    %v191 = vld [vmem:[#allocation4 + $0x2e0] sm:$0xff]
    %v192 = vld [vmem:[#allocation4 + $0x2e8] sm:$0xff]
    %v193 = vld [vmem:[#allocation4 + $0x2f0] sm:$0xff]
    %v194 = vld [vmem:[#allocation4 + $0x2f8] sm:$0xff]
    %v195 = vunpack.c.l.bf16 %v99
    %v196 = vunpack.c.h.bf16 %v99
    %v197 = vunpack.c.l.bf16 %v100
    %v198 = vunpack.c.h.bf16 %v100
    %v199 = vunpack.c.l.bf16 %v101
    %v200 = vunpack.c.h.bf16 %v101
    %v201 = vunpack.c.l.bf16 %v102
    %v202 = vunpack.c.h.bf16 %v102
    %v203 = vunpack.c.l.bf16 %v103
    %v204 = vunpack.c.h.bf16 %v103
    %v205 = vunpack.c.l.bf16 %v104
    %v206 = vunpack.c.h.bf16 %v104
    %v207 = vunpack.c.l.bf16 %v105
    %v208 = vunpack.c.h.bf16 %v105
    %v209 = vunpack.c.l.bf16 %v106
    %v210 = vunpack.c.h.bf16 %v106
    %v211 = vunpack.c.l.bf16 %v107
    %v212 = vunpack.c.h.bf16 %v107
    %v213 = vunpack.c.l.bf16 %v108
    %v214 = vunpack.c.h.bf16 %v108
    %v215 = vunpack.c.l.bf16 %v109
    %v216 = vunpack.c.h.bf16 %v109
    %v217 = vunpack.c.l.bf16 %v110
    %v218 = vunpack.c.h.bf16 %v110
    %v219 = vunpack.c.l.bf16 %v111
    %v220 = vunpack.c.h.bf16 %v111
    %v221 = vunpack.c.l.bf16 %v112
    %v222 = vunpack.c.h.bf16 %v112
    %v223 = vunpack.c.l.bf16 %v113
    %v224 = vunpack.c.h.bf16 %v113
    %v225 = vunpack.c.l.bf16 %v114
    %v226 = vunpack.c.h.bf16 %v114
    %v227 = vunpack.c.l.bf16 %v115
    %v228 = vunpack.c.h.bf16 %v115
    %v229 = vunpack.c.l.bf16 %v116
    %v230 = vunpack.c.h.bf16 %v116
    %v231 = vunpack.c.l.bf16 %v117
    %v232 = vunpack.c.h.bf16 %v117
    %v233 = vunpack.c.l.bf16 %v118
    %v234 = vunpack.c.h.bf16 %v118
    %v235 = vunpack.c.l.bf16 %v119
    %v236 = vunpack.c.h.bf16 %v119
    %v237 = vunpack.c.l.bf16 %v120
    %v238 = vunpack.c.h.bf16 %v120
    %v239 = vunpack.c.l.bf16 %v121
    %v240 = vunpack.c.h.bf16 %v121
    %v241 = vunpack.c.l.bf16 %v122
    %v242 = vunpack.c.h.bf16 %v122
    %v243 = vunpack.c.l.bf16 %v123
    %v244 = vunpack.c.h.bf16 %v123
    %v245 = vunpack.c.l.bf16 %v124
    %v246 = vunpack.c.h.bf16 %v124
    %v247 = vunpack.c.l.bf16 %v125
    %v248 = vunpack.c.h.bf16 %v125
    %v249 = vunpack.c.l.bf16 %v126
    %v250 = vunpack.c.h.bf16 %v126
    %v251 = vunpack.c.l.bf16 %v127
    %v252 = vunpack.c.h.bf16 %v127
    %v253 = vunpack.c.l.bf16 %v128
    %v254 = vunpack.c.h.bf16 %v128
    %v255 = vunpack.c.l.bf16 %v129
    %v256 = vunpack.c.h.bf16 %v129
    %v257 = vunpack.c.l.bf16 %v130
    %v258 = vunpack.c.h.bf16 %v130
    %v259 = vunpack.c.l.bf16 %v131
    %v260 = vunpack.c.h.bf16 %v131
    %v261 = vunpack.c.l.bf16 %v132
    %v262 = vunpack.c.h.bf16 %v132
    %v263 = vunpack.c.l.bf16 %v133
    %v264 = vunpack.c.h.bf16 %v133
    %v265 = vunpack.c.l.bf16 %v134
    %v266 = vunpack.c.h.bf16 %v134
    %v267 = vunpack.c.l.bf16 %v135
    %v268 = vunpack.c.h.bf16 %v135
    %v269 = vunpack.c.l.bf16 %v136
    %v270 = vunpack.c.h.bf16 %v136
    %v271 = vunpack.c.l.bf16 %v137
    %v272 = vunpack.c.h.bf16 %v137
    %v273 = vunpack.c.l.bf16 %v138
    %v274 = vunpack.c.h.bf16 %v138
    %v275 = vunpack.c.l.bf16 %v139
    %v276 = vunpack.c.h.bf16 %v139
    %v277 = vunpack.c.l.bf16 %v140
    %v278 = vunpack.c.h.bf16 %v140
    %v279 = vunpack.c.l.bf16 %v141
    %v280 = vunpack.c.h.bf16 %v141
    %v281 = vunpack.c.l.bf16 %v142
    %v282 = vunpack.c.h.bf16 %v142
    %v283 = vunpack.c.l.bf16 %v143
    %v284 = vunpack.c.h.bf16 %v143
    %v285 = vunpack.c.l.bf16 %v144
    %v286 = vunpack.c.h.bf16 %v144
    %v287 = vunpack.c.l.bf16 %v145
    %v288 = vunpack.c.h.bf16 %v145
    %v289 = vunpack.c.l.bf16 %v146
    %v290 = vunpack.c.h.bf16 %v146
    %v291 = vunpack.c.l.bf16 %v147
    %v292 = vunpack.c.h.bf16 %v147
    %v293 = vunpack.c.l.bf16 %v148
    %v294 = vunpack.c.h.bf16 %v148
    %v295 = vunpack.c.l.bf16 %v149
    %v296 = vunpack.c.h.bf16 %v149
    %v297 = vunpack.c.l.bf16 %v150
    %v298 = vunpack.c.h.bf16 %v150
    %v299 = vunpack.c.l.bf16 %v151
    %v300 = vunpack.c.h.bf16 %v151
    %v301 = vunpack.c.l.bf16 %v152
    %v302 = vunpack.c.h.bf16 %v152
    %v303 = vunpack.c.l.bf16 %v153
    %v304 = vunpack.c.h.bf16 %v153
    %v305 = vunpack.c.l.bf16 %v154
    %v306 = vunpack.c.h.bf16 %v154
    %v307 = vunpack.c.l.bf16 %v155
    %v308 = vunpack.c.h.bf16 %v155
    %v309 = vunpack.c.l.bf16 %v156
    %v310 = vunpack.c.h.bf16 %v156
    %v311 = vunpack.c.l.bf16 %v157
    %v312 = vunpack.c.h.bf16 %v157
    %v313 = vunpack.c.l.bf16 %v158
    %v314 = vunpack.c.h.bf16 %v158
    %v315 = vunpack.c.l.bf16 %v159
    %v316 = vunpack.c.h.bf16 %v159
    %v317 = vunpack.c.l.bf16 %v160
    %v318 = vunpack.c.h.bf16 %v160
    %v319 = vunpack.c.l.bf16 %v161
    %v320 = vunpack.c.h.bf16 %v161
    %v321 = vunpack.c.l.bf16 %v162
    %v322 = vunpack.c.h.bf16 %v162
    %v323 = vunpack.c.l.bf16 %v163
    %v324 = vunpack.c.h.bf16 %v163
    %v325 = vunpack.c.l.bf16 %v164
    %v326 = vunpack.c.h.bf16 %v164
    %v327 = vunpack.c.l.bf16 %v165
    %v328 = vunpack.c.h.bf16 %v165
    %v329 = vunpack.c.l.bf16 %v166
    %v330 = vunpack.c.h.bf16 %v166
    %v331 = vunpack.c.l.bf16 %v167
    %v332 = vunpack.c.h.bf16 %v167
    %v333 = vunpack.c.l.bf16 %v168
    %v334 = vunpack.c.h.bf16 %v168
    %v335 = vunpack.c.l.bf16 %v169
    %v336 = vunpack.c.h.bf16 %v169
    %v337 = vunpack.c.l.bf16 %v170
    %v338 = vunpack.c.h.bf16 %v170
    %v339 = vunpack.c.l.bf16 %v171
    %v340 = vunpack.c.h.bf16 %v171
    %v341 = vunpack.c.l.bf16 %v172
    %v342 = vunpack.c.h.bf16 %v172
    %v343 = vunpack.c.l.bf16 %v173
    %v344 = vunpack.c.h.bf16 %v173
    %v345 = vunpack.c.l.bf16 %v174
    %v346 = vunpack.c.h.bf16 %v174
    %v347 = vunpack.c.l.bf16 %v175
    %v348 = vunpack.c.h.bf16 %v175
    %v349 = vunpack.c.l.bf16 %v176
    %v350 = vunpack.c.h.bf16 %v176
    %v351 = vunpack.c.l.bf16 %v177
    %v352 = vunpack.c.h.bf16 %v177
    %v353 = vunpack.c.l.bf16 %v178
    %v354 = vunpack.c.h.bf16 %v178
    %v355 = vunpack.c.l.bf16 %v179
    %v356 = vunpack.c.h.bf16 %v179
    %v357 = vunpack.c.l.bf16 %v180
    %v358 = vunpack.c.h.bf16 %v180
    %v359 = vunpack.c.l.bf16 %v181
    %v360 = vunpack.c.h.bf16 %v181
    %v361 = vunpack.c.l.bf16 %v182
    %v362 = vunpack.c.h.bf16 %v182
    %v363 = vunpack.c.l.bf16 %v183
    %v364 = vunpack.c.h.bf16 %v183
    %v365 = vunpack.c.l.bf16 %v184
    %v366 = vunpack.c.h.bf16 %v184
    %v367 = vunpack.c.l.bf16 %v185
    %v368 = vunpack.c.h.bf16 %v185
    %v369 = vunpack.c.l.bf16 %v186
    %v370 = vunpack.c.h.bf16 %v186
    %v371 = vunpack.c.l.bf16 %v187
    %v372 = vunpack.c.h.bf16 %v187
    %v373 = vunpack.c.l.bf16 %v188
    %v374 = vunpack.c.h.bf16 %v188
    %v375 = vunpack.c.l.bf16 %v189
    %v376 = vunpack.c.h.bf16 %v189
    %v377 = vunpack.c.l.bf16 %v190
    %v378 = vunpack.c.h.bf16 %v190
    %v379 = vunpack.c.l.bf16 %v191
    %v380 = vunpack.c.h.bf16 %v191
    %v381 = vunpack.c.l.bf16 %v192
    %v382 = vunpack.c.h.bf16 %v192
    %v383 = vunpack.c.l.bf16 %v193
    %v384 = vunpack.c.h.bf16 %v193
    %v385 = vunpack.c.l.bf16 %v194
    %v386 = vunpack.c.h.bf16 %v194
    %387 = vmatpush.msra.mxu0 %v375
    %388 = vmatpush.msra.mxu0 %v363
    %389 = vmatpush.msra.mxu0 %v351
    %390 = vmatpush.msra.mxu0 %v339
    %391 = vmatpush.msra.mxu0 %v327
    %392 = vmatpush.msra.mxu0 %v315
    %393 = vmatpush.msra.mxu0 %v303
    %394 = vmatpush.msra.mxu0 %v291
    %395 = vmatpush.msra.mxu0 %v279
    %396 = vmatpush.msra.mxu0 %v267
    %397 = vmatpush.msra.mxu0 %v255
    %398 = vmatpush.msra.mxu0 %v243
    %399 = vmatpush.msra.mxu0 %v231
    %400 = vmatpush.msra.mxu0 %v219
    %401 = vmatpush.msra.mxu0 %v207
    %402 = vmatpush.msra.mxu0 %v195
    %403 = vmatmul.f32.gmra.mxu0 %v98
    %v404 = vpop.f32.mrf.mxu0
    %v405 = vadd.f32 0.0, %v404
    %406 = vdwg.mxu0
    %407 = vmatpush.msra.mxu0 %v376
    %408 = vmatpush.msra.mxu0 %v364
    %409 = vmatpush.msra.mxu0 %v352
    %410 = vmatpush.msra.mxu0 %v340
    %411 = vmatpush.msra.mxu0 %v328
    %412 = vmatpush.msra.mxu0 %v316
    %413 = vmatpush.msra.mxu0 %v304
    %414 = vmatpush.msra.mxu0 %v292
    %415 = vmatpush.msra.mxu0 %v280
    %416 = vmatpush.msra.mxu0 %v268
    %417 = vmatpush.msra.mxu0 %v256
    %418 = vmatpush.msra.mxu0 %v244
    %419 = vmatpush.msra.mxu0 %v232
    %420 = vmatpush.msra.mxu0 %v220
    %421 = vmatpush.msra.mxu0 %v208
    %422 = vmatpush.msra.mxu0 %v196
    %423 = vmatmul.f32.gmra.mxu0 %v98
    %v424 = vpop.f32.mrf.mxu0
    %v425 = vadd.f32 0.0, %v424
    %426 = vdwg.mxu0
    %427 = vmatpush.msra.mxu0 %v377
    %428 = vmatpush.msra.mxu0 %v365
    %429 = vmatpush.msra.mxu0 %v353
    %430 = vmatpush.msra.mxu0 %v341
    %431 = vmatpush.msra.mxu0 %v329
    %432 = vmatpush.msra.mxu0 %v317
    %433 = vmatpush.msra.mxu0 %v305
    %434 = vmatpush.msra.mxu0 %v293
    %435 = vmatpush.msra.mxu0 %v281
    %436 = vmatpush.msra.mxu0 %v269
    %437 = vmatpush.msra.mxu0 %v257
    %438 = vmatpush.msra.mxu0 %v245
    %439 = vmatpush.msra.mxu0 %v233
    %440 = vmatpush.msra.mxu0 %v221
    %441 = vmatpush.msra.mxu0 %v209
    %442 = vmatpush.msra.mxu0 %v197
    %443 = vmatmul.f32.gmra.mxu0 %v98
    %v444 = vpop.f32.mrf.mxu0
    %v445 = vadd.f32 0.0, %v444
    %446 = vdwg.mxu0
    %447 = vmatpush.msra.mxu0 %v378
    %448 = vmatpush.msra.mxu0 %v366
    %449 = vmatpush.msra.mxu0 %v354
    %450 = vmatpush.msra.mxu0 %v342
    %451 = vmatpush.msra.mxu0 %v330
    %452 = vmatpush.msra.mxu0 %v318
    %453 = vmatpush.msra.mxu0 %v306
    %454 = vmatpush.msra.mxu0 %v294
    %455 = vmatpush.msra.mxu0 %v282
    %456 = vmatpush.msra.mxu0 %v270
    %457 = vmatpush.msra.mxu0 %v258
    %458 = vmatpush.msra.mxu0 %v246
    %459 = vmatpush.msra.mxu0 %v234
    %460 = vmatpush.msra.mxu0 %v222
    %461 = vmatpush.msra.mxu0 %v210
    %462 = vmatpush.msra.mxu0 %v198
    %463 = vmatmul.f32.gmra.mxu0 %v98
    %v464 = vpop.f32.mrf.mxu0
    %v465 = vadd.f32 0.0, %v464
    %466 = vdwg.mxu0
    %467 = vmatpush.msra.mxu0 %v379
    %468 = vmatpush.msra.mxu0 %v367
    %469 = vmatpush.msra.mxu0 %v355
    %470 = vmatpush.msra.mxu0 %v343
    %471 = vmatpush.msra.mxu0 %v331
    %472 = vmatpush.msra.mxu0 %v319
    %473 = vmatpush.msra.mxu0 %v307
    %474 = vmatpush.msra.mxu0 %v295
    %475 = vmatpush.msra.mxu0 %v283
    %476 = vmatpush.msra.mxu0 %v271
    %477 = vmatpush.msra.mxu0 %v259
    %478 = vmatpush.msra.mxu0 %v247
    %479 = vmatpush.msra.mxu0 %v235
    %480 = vmatpush.msra.mxu0 %v223
    %481 = vmatpush.msra.mxu0 %v211
    %482 = vmatpush.msra.mxu0 %v199
    %483 = vmatmul.f32.gmra.mxu0 %v98
    %v484 = vpop.f32.mrf.mxu0
    %v485 = vadd.f32 0.0, %v484
    %486 = vdwg.mxu0
    %487 = vmatpush.msra.mxu0 %v380
    %488 = vmatpush.msra.mxu0 %v368
    %489 = vmatpush.msra.mxu0 %v356
    %490 = vmatpush.msra.mxu0 %v344
    %491 = vmatpush.msra.mxu0 %v332
    %492 = vmatpush.msra.mxu0 %v320
    %493 = vmatpush.msra.mxu0 %v308
    %494 = vmatpush.msra.mxu0 %v296
    %495 = vmatpush.msra.mxu0 %v284
    %496 = vmatpush.msra.mxu0 %v272
    %497 = vmatpush.msra.mxu0 %v260
    %498 = vmatpush.msra.mxu0 %v248
    %499 = vmatpush.msra.mxu0 %v236
    %500 = vmatpush.msra.mxu0 %v224
    %501 = vmatpush.msra.mxu0 %v212
    %502 = vmatpush.msra.mxu0 %v200
    %503 = vmatmul.f32.gmra.mxu0 %v98
    %v504 = vpop.f32.mrf.mxu0
    %v505 = vadd.f32 0.0, %v504
    %506 = vdwg.mxu0
    %507 = vmatpush.msra.mxu0 %v381
    %508 = vmatpush.msra.mxu0 %v369
    %509 = vmatpush.msra.mxu0 %v357
    %510 = vmatpush.msra.mxu0 %v345
    %511 = vmatpush.msra.mxu0 %v333
    %512 = vmatpush.msra.mxu0 %v321
    %513 = vmatpush.msra.mxu0 %v309
    %514 = vmatpush.msra.mxu0 %v297
    %515 = vmatpush.msra.mxu0 %v285
    %516 = vmatpush.msra.mxu0 %v273
    %517 = vmatpush.msra.mxu0 %v261
    %518 = vmatpush.msra.mxu0 %v249
    %519 = vmatpush.msra.mxu0 %v237
    %520 = vmatpush.msra.mxu0 %v225
    %521 = vmatpush.msra.mxu0 %v213
    %522 = vmatpush.msra.mxu0 %v201
    %523 = vmatmul.f32.gmra.mxu0 %v98
    %v524 = vpop.f32.mrf.mxu0
    %v525 = vadd.f32 0.0, %v524
    %526 = vdwg.mxu0
    %527 = vmatpush.msra.mxu0 %v382
    %528 = vmatpush.msra.mxu0 %v370
    %529 = vmatpush.msra.mxu0 %v358
    %530 = vmatpush.msra.mxu0 %v346
    %531 = vmatpush.msra.mxu0 %v334
    %532 = vmatpush.msra.mxu0 %v322
    %533 = vmatpush.msra.mxu0 %v310
    %534 = vmatpush.msra.mxu0 %v298
    %535 = vmatpush.msra.mxu0 %v286
    %536 = vmatpush.msra.mxu0 %v274
    %537 = vmatpush.msra.mxu0 %v262
    %538 = vmatpush.msra.mxu0 %v250
    %539 = vmatpush.msra.mxu0 %v238
    %540 = vmatpush.msra.mxu0 %v226
    %541 = vmatpush.msra.mxu0 %v214
    %542 = vmatpush.msra.mxu0 %v202
    %543 = vmatmul.f32.gmra.mxu0 %v98
    %v544 = vpop.f32.mrf.mxu0
    %v545 = vadd.f32 0.0, %v544
    %546 = vdwg.mxu0
    %547 = vmatpush.msra.mxu0 %v383
    %548 = vmatpush.msra.mxu0 %v371
    %549 = vmatpush.msra.mxu0 %v359
    %550 = vmatpush.msra.mxu0 %v347
    %551 = vmatpush.msra.mxu0 %v335
    %552 = vmatpush.msra.mxu0 %v323
    %553 = vmatpush.msra.mxu0 %v311
    %554 = vmatpush.msra.mxu0 %v299
    %555 = vmatpush.msra.mxu0 %v287
    %556 = vmatpush.msra.mxu0 %v275
    %557 = vmatpush.msra.mxu0 %v263
    %558 = vmatpush.msra.mxu0 %v251
    %559 = vmatpush.msra.mxu0 %v239
    %560 = vmatpush.msra.mxu0 %v227
    %561 = vmatpush.msra.mxu0 %v215
    %562 = vmatpush.msra.mxu0 %v203
    %563 = vmatmul.f32.gmra.mxu0 %v98
    %v564 = vpop.f32.mrf.mxu0
    %v565 = vadd.f32 0.0, %v564
    %566 = vdwg.mxu0
    %567 = vmatpush.msra.mxu0 %v384
    %568 = vmatpush.msra.mxu0 %v372
    %569 = vmatpush.msra.mxu0 %v360
    %570 = vmatpush.msra.mxu0 %v348
    %571 = vmatpush.msra.mxu0 %v336
    %572 = vmatpush.msra.mxu0 %v324
    %573 = vmatpush.msra.mxu0 %v312
    %574 = vmatpush.msra.mxu0 %v300
    %575 = vmatpush.msra.mxu0 %v288
    %576 = vmatpush.msra.mxu0 %v276
    %577 = vmatpush.msra.mxu0 %v264
    %578 = vmatpush.msra.mxu0 %v252
    %579 = vmatpush.msra.mxu0 %v240
    %580 = vmatpush.msra.mxu0 %v228
    %581 = vmatpush.msra.mxu0 %v216
    %582 = vmatpush.msra.mxu0 %v204
    %583 = vmatmul.f32.gmra.mxu0 %v98
    %v584 = vpop.f32.mrf.mxu0
    %v585 = vadd.f32 0.0, %v584
    %586 = vdwg.mxu0
    %587 = vmatpush.msra.mxu0 %v385
    %588 = vmatpush.msra.mxu0 %v373
    %589 = vmatpush.msra.mxu0 %v361
    %590 = vmatpush.msra.mxu0 %v349
    %591 = vmatpush.msra.mxu0 %v337
    %592 = vmatpush.msra.mxu0 %v325
    %593 = vmatpush.msra.mxu0 %v313
    %594 = vmatpush.msra.mxu0 %v301
    %595 = vmatpush.msra.mxu0 %v289
    %596 = vmatpush.msra.mxu0 %v277
    %597 = vmatpush.msra.mxu0 %v265
    %598 = vmatpush.msra.mxu0 %v253
    %599 = vmatpush.msra.mxu0 %v241
    %600 = vmatpush.msra.mxu0 %v229
    %601 = vmatpush.msra.mxu0 %v217
    %602 = vmatpush.msra.mxu0 %v205
    %603 = vmatmul.f32.gmra.mxu0 %v98
    %v604 = vpop.f32.mrf.mxu0
    %v605 = vadd.f32 0.0, %v604
    %606 = vdwg.mxu0
    %607 = vmatpush.msra.mxu0 %v386
    %608 = vmatpush.msra.mxu0 %v374
    %609 = vmatpush.msra.mxu0 %v362
    %610 = vmatpush.msra.mxu0 %v350
    %611 = vmatpush.msra.mxu0 %v338
    %612 = vmatpush.msra.mxu0 %v326
    %613 = vmatpush.msra.mxu0 %v314
    %614 = vmatpush.msra.mxu0 %v302
    %615 = vmatpush.msra.mxu0 %v290
    %616 = vmatpush.msra.mxu0 %v278
    %617 = vmatpush.msra.mxu0 %v266
    %618 = vmatpush.msra.mxu0 %v254
    %619 = vmatpush.msra.mxu0 %v242
    %620 = vmatpush.msra.mxu0 %v230
    %621 = vmatpush.msra.mxu0 %v218
    %622 = vmatpush.msra.mxu0 %v206
    %623 = vmatmul.f32.gmra.mxu0 %v98
    %v624 = vpop.f32.mrf.mxu0
    %v625 = vadd.f32 0.0, %v624
    %626 = vdwg.mxu0
    %v627 = vld [vmem:[#allocation6] sm:$0xf]
    %v628 = vld [vmem:[#allocation6 + $0x4] sm:$0xf]
    %v629 = vld [vmem:[#allocation6 + $0x8] sm:$0xf]
    %v630 = vld [vmem:[#allocation6 + $0xc] sm:$0xf]
    %v631 = vld [vmem:[#allocation6 + $0x10] sm:$0xf]
    %v632 = vld [vmem:[#allocation6 + $0x14] sm:$0xf]
    %v633 = vld [vmem:[#allocation6 + $0x18] sm:$0xf]
    %v634 = vld [vmem:[#allocation6 + $0x1c] sm:$0xf]
    %v635 = vld [vmem:[#allocation6 + $0x20] sm:$0xf]
    %v636 = vld [vmem:[#allocation6 + $0x24] sm:$0xf]
    %v637 = vld [vmem:[#allocation6 + $0x28] sm:$0xf]
    %v638 = vld [vmem:[#allocation6 + $0x2c] sm:$0xf]
    %v639 = vld [vmem:[#allocation6 + $0x30] sm:$0xf]
    %v640 = vld [vmem:[#allocation6 + $0x34] sm:$0xf]
    %v641 = vld [vmem:[#allocation6 + $0x38] sm:$0xf]
    %v642 = vld [vmem:[#allocation6 + $0x3c] sm:$0xf]
    %v643 = vunpack.c.l.bf16 %v627
    %v644 = vunpack.c.l.bf16 %v628
    %v645 = vunpack.c.l.bf16 %v629
    %v646 = vunpack.c.l.bf16 %v630
    %v647 = vunpack.c.l.bf16 %v631
    %v648 = vunpack.c.l.bf16 %v632
    %v649 = vunpack.c.l.bf16 %v633
    %v650 = vunpack.c.l.bf16 %v634
    %v651 = vunpack.c.l.bf16 %v635
    %v652 = vunpack.c.l.bf16 %v636
    %v653 = vunpack.c.l.bf16 %v637
    %v654 = vunpack.c.l.bf16 %v638
    %v655 = vunpack.c.l.bf16 %v639
    %v656 = vunpack.c.l.bf16 %v640
    %v657 = vunpack.c.l.bf16 %v641
    %v658 = vunpack.c.l.bf16 %v642
    %v659 = vld [vmem:[#allocation9] ss:$0 sm:$0xff]
    %660 = vmatpush.msra.mxu0 %v658
    %661 = vmatpush.msra.mxu0 %v657
    %662 = vmatpush.msra.mxu0 %v656
    %663 = vmatpush.msra.mxu0 %v655
    %664 = vmatpush.msra.mxu0 %v654
    %665 = vmatpush.msra.mxu0 %v653
    %666 = vmatpush.msra.mxu0 %v652
    %667 = vmatpush.msra.mxu0 %v651
    %668 = vmatpush.msra.mxu0 %v650
    %669 = vmatpush.msra.mxu0 %v649
    %670 = vmatpush.msra.mxu0 %v648
    %671 = vmatpush.msra.mxu0 %v647
    %672 = vmatpush.msra.mxu0 %v646
    %673 = vmatpush.msra.mxu0 %v645
    %674 = vmatpush.msra.mxu0 %v644
    %675 = vmatpush.msra.mxu0 %v643
    %676 = vmatmul.f32.gmra.mxu0 %v97
    %v677 = vpop.f32.mrf.mxu0
    %v678 = vadd.f32 %v659, %v677
    %679 = vdwg.mxu0
    %v680 = vxor.u32 %v405, 2147483648
    %v681 = vmul.f32 %v680, 1.442695
    %v682 = vpow.pop %v681
    %v683 = vadd.f32 %v682, 1.0
    %v684 = vrcp.pop %v683
    %v685 = vmul.f32 %v683, %v684
    %v686 = vsub.f32 1.0, %v685
    %v687 = vmul.f32 %v684, %v686
    %v688 = vadd.f32 %v684, %v687
    %vm689 = vweird.f32 %v683
    %vm690 = vweird.f32 %v684
    %vm691 = vmor %vm689, %vm690
    %v692 = vsel %vm691, %v684, %v688
    %v693 = vand.u32 2147483647, %v683
    %vm694 = vcmp.eq.f32.partialorder %v693, 8.507059e+37
    %v695 = vand.u32 %v683, 2147483648
    %v696 = vor.u32 1.1754944e-38, %v695
    %v697 = vsel %vm694, %v696, %v692
    %v698 = vmul.f32 1.0, %v697
    %v699 = vmul.f32 %v678, %v698
    %v700 = vadd.f32 %v699, %v525
    %v701 = vld [vmem:[#allocation6 + $0x40] sm:$0xf]
    %v702 = vld [vmem:[#allocation6 + $0x44] sm:$0xf]
    %v703 = vld [vmem:[#allocation6 + $0x48] sm:$0xf]
    %v704 = vld [vmem:[#allocation6 + $0x4c] sm:$0xf]
    %v705 = vld [vmem:[#allocation6 + $0x50] sm:$0xf]
    %v706 = vld [vmem:[#allocation6 + $0x54] sm:$0xf]
    %v707 = vld [vmem:[#allocation6 + $0x58] sm:$0xf]
    %v708 = vld [vmem:[#allocation6 + $0x5c] sm:$0xf]
    %v709 = vld [vmem:[#allocation6 + $0x60] sm:$0xf]
    %v710 = vld [vmem:[#allocation6 + $0x64] sm:$0xf]
    %v711 = vld [vmem:[#allocation6 + $0x68] sm:$0xf]
    %v712 = vld [vmem:[#allocation6 + $0x6c] sm:$0xf]
    %v713 = vld [vmem:[#allocation6 + $0x70] sm:$0xf]
    %v714 = vld [vmem:[#allocation6 + $0x74] sm:$0xf]
    %v715 = vld [vmem:[#allocation6 + $0x78] sm:$0xf]
    %v716 = vld [vmem:[#allocation6 + $0x7c] sm:$0xf]
    %v717 = vunpack.c.l.bf16 %v701
    %v718 = vunpack.c.l.bf16 %v702
    %v719 = vunpack.c.l.bf16 %v703
    %v720 = vunpack.c.l.bf16 %v704
    %v721 = vunpack.c.l.bf16 %v705
    %v722 = vunpack.c.l.bf16 %v706
    %v723 = vunpack.c.l.bf16 %v707
    %v724 = vunpack.c.l.bf16 %v708
    %v725 = vunpack.c.l.bf16 %v709
    %v726 = vunpack.c.l.bf16 %v710
    %v727 = vunpack.c.l.bf16 %v711
    %v728 = vunpack.c.l.bf16 %v712
    %v729 = vunpack.c.l.bf16 %v713
    %v730 = vunpack.c.l.bf16 %v714
    %v731 = vunpack.c.l.bf16 %v715
    %v732 = vunpack.c.l.bf16 %v716
    %v733 = vld [vmem:[#allocation9 + $0x1] ss:$0 sm:$0xff]
    %734 = vmatpush.msra.mxu0 %v732
    %735 = vmatpush.msra.mxu0 %v731
    %736 = vmatpush.msra.mxu0 %v730
    %737 = vmatpush.msra.mxu0 %v729
    %738 = vmatpush.msra.mxu0 %v728
    %739 = vmatpush.msra.mxu0 %v727
    %740 = vmatpush.msra.mxu0 %v726
    %741 = vmatpush.msra.mxu0 %v725
    %742 = vmatpush.msra.mxu0 %v724
    %743 = vmatpush.msra.mxu0 %v723
    %744 = vmatpush.msra.mxu0 %v722
    %745 = vmatpush.msra.mxu0 %v721
    %746 = vmatpush.msra.mxu0 %v720
    %747 = vmatpush.msra.mxu0 %v719
    %748 = vmatpush.msra.mxu0 %v718
    %749 = vmatpush.msra.mxu0 %v717
    %750 = vmatmul.f32.gmra.mxu0 %v700
    %v751 = vpop.f32.mrf.mxu0
    %v752 = vadd.f32 %v733, %v751
    %753 = vdwg.mxu0
    %v754 = vxor.u32 %v425, 2147483648
    %v755 = vmul.f32 %v754, 1.442695
    %v756 = vpow.pop %v755
    %v757 = vadd.f32 %v756, 1.0
    %v758 = vrcp.pop %v757
    %v759 = vmul.f32 %v757, %v758
    %v760 = vsub.f32 1.0, %v759
    %v761 = vmul.f32 %v758, %v760
    %v762 = vadd.f32 %v758, %v761
    %vm763 = vweird.f32 %v757
    %vm764 = vweird.f32 %v758
    %vm765 = vmor %vm763, %vm764
    %v766 = vsel %vm765, %v758, %v762
    %v767 = vand.u32 2147483647, %v757
    %vm768 = vcmp.eq.f32.partialorder %v767, 8.507059e+37
    %v769 = vand.u32 %v757, 2147483648
    %v770 = vor.u32 1.1754944e-38, %v769
    %v771 = vsel %vm768, %v770, %v766
    %v772 = vmul.f32 1.0, %v771
    %v773 = vmul.f32 %v752, %v772
    %v774 = vadd.f32 %v773, %v545
    %v775 = vld [vmem:[#allocation6 + $0x80] sm:$0xf]
    %v776 = vld [vmem:[#allocation6 + $0x84] sm:$0xf]
    %v777 = vld [vmem:[#allocation6 + $0x88] sm:$0xf]
    %v778 = vld [vmem:[#allocation6 + $0x8c] sm:$0xf]
    %v779 = vld [vmem:[#allocation6 + $0x90] sm:$0xf]
    %v780 = vld [vmem:[#allocation6 + $0x94] sm:$0xf]
    %v781 = vld [vmem:[#allocation6 + $0x98] sm:$0xf]
    %v782 = vld [vmem:[#allocation6 + $0x9c] sm:$0xf]
    %v783 = vld [vmem:[#allocation6 + $0xa0] sm:$0xf]
    %v784 = vld [vmem:[#allocation6 + $0xa4] sm:$0xf]
    %v785 = vld [vmem:[#allocation6 + $0xa8] sm:$0xf]
    %v786 = vld [vmem:[#allocation6 + $0xac] sm:$0xf]
    %v787 = vld [vmem:[#allocation6 + $0xb0] sm:$0xf]
    %v788 = vld [vmem:[#allocation6 + $0xb4] sm:$0xf]
    %v789 = vld [vmem:[#allocation6 + $0xb8] sm:$0xf]
    %v790 = vld [vmem:[#allocation6 + $0xbc] sm:$0xf]
    %v791 = vunpack.c.l.bf16 %v775
    %v792 = vunpack.c.l.bf16 %v776
    %v793 = vunpack.c.l.bf16 %v777
    %v794 = vunpack.c.l.bf16 %v778
    %v795 = vunpack.c.l.bf16 %v779
    %v796 = vunpack.c.l.bf16 %v780
    %v797 = vunpack.c.l.bf16 %v781
    %v798 = vunpack.c.l.bf16 %v782
    %v799 = vunpack.c.l.bf16 %v783
    %v800 = vunpack.c.l.bf16 %v784
    %v801 = vunpack.c.l.bf16 %v785
    %v802 = vunpack.c.l.bf16 %v786
    %v803 = vunpack.c.l.bf16 %v787
    %v804 = vunpack.c.l.bf16 %v788
    %v805 = vunpack.c.l.bf16 %v789
    %v806 = vunpack.c.l.bf16 %v790
    %v807 = vld [vmem:[#allocation9 + $0x2] ss:$0 sm:$0xff]
    %808 = vmatpush.msra.mxu0 %v806
    %809 = vmatpush.msra.mxu0 %v805
    %810 = vmatpush.msra.mxu0 %v804
    %811 = vmatpush.msra.mxu0 %v803
    %812 = vmatpush.msra.mxu0 %v802
    %813 = vmatpush.msra.mxu0 %v801
    %814 = vmatpush.msra.mxu0 %v800
    %815 = vmatpush.msra.mxu0 %v799
    %816 = vmatpush.msra.mxu0 %v798
    %817 = vmatpush.msra.mxu0 %v797
    %818 = vmatpush.msra.mxu0 %v796
    %819 = vmatpush.msra.mxu0 %v795
    %820 = vmatpush.msra.mxu0 %v794
    %821 = vmatpush.msra.mxu0 %v793
    %822 = vmatpush.msra.mxu0 %v792
    %823 = vmatpush.msra.mxu0 %v791
    %824 = vmatmul.f32.gmra.mxu0 %v774
    %v825 = vpop.f32.mrf.mxu0
    %v826 = vadd.f32 %v807, %v825
    %827 = vdwg.mxu0
    %v828 = vxor.u32 %v445, 2147483648
    %v829 = vmul.f32 %v828, 1.442695
    %v830 = vpow.pop %v829
    %v831 = vadd.f32 %v830, 1.0
    %v832 = vrcp.pop %v831
    %v833 = vmul.f32 %v831, %v832
    %v834 = vsub.f32 1.0, %v833
    %v835 = vmul.f32 %v832, %v834
    %v836 = vadd.f32 %v832, %v835
    %vm837 = vweird.f32 %v831
    %vm838 = vweird.f32 %v832
    %vm839 = vmor %vm837, %vm838
    %v840 = vsel %vm839, %v832, %v836
    %v841 = vand.u32 2147483647, %v831
    %vm842 = vcmp.eq.f32.partialorder %v841, 8.507059e+37
    %v843 = vand.u32 %v831, 2147483648
    %v844 = vor.u32 1.1754944e-38, %v843
    %v845 = vsel %vm842, %v844, %v840
    %v846 = vmul.f32 1.0, %v845
    %v847 = vmul.f32 %v826, %v846
    %v848 = vadd.f32 %v847, %v565
    %v849 = vld [vmem:[#allocation9 + $0x6] ss:$0 sm:$0xff]
    %v850 = vadd.f32 %v848, %v849
    %v851 = vld [vmem:[#allocation6 + $0xc0] sm:$0xf]
    %v852 = vld [vmem:[#allocation6 + $0xc4] sm:$0xf]
    %v853 = vld [vmem:[#allocation6 + $0xc8] sm:$0xf]
    %v854 = vld [vmem:[#allocation6 + $0xcc] sm:$0xf]
    %v855 = vld [vmem:[#allocation6 + $0xd0] sm:$0xf]
    %v856 = vld [vmem:[#allocation6 + $0xd4] sm:$0xf]
    %v857 = vld [vmem:[#allocation6 + $0xd8] sm:$0xf]
    %v858 = vld [vmem:[#allocation6 + $0xdc] sm:$0xf]
    %v859 = vld [vmem:[#allocation6 + $0xe0] sm:$0xf]
    %v860 = vld [vmem:[#allocation6 + $0xe4] sm:$0xf]
    %v861 = vld [vmem:[#allocation6 + $0xe8] sm:$0xf]
    %v862 = vld [vmem:[#allocation6 + $0xec] sm:$0xf]
    %v863 = vld [vmem:[#allocation6 + $0xf0] sm:$0xf]
    %v864 = vld [vmem:[#allocation6 + $0xf4] sm:$0xf]
    %v865 = vld [vmem:[#allocation6 + $0xf8] sm:$0xf]
    %v866 = vld [vmem:[#allocation6 + $0xfc] sm:$0xf]
    %v867 = vunpack.c.l.bf16 %v851
    %v868 = vunpack.c.l.bf16 %v852
    %v869 = vunpack.c.l.bf16 %v853
    %v870 = vunpack.c.l.bf16 %v854
    %v871 = vunpack.c.l.bf16 %v855
    %v872 = vunpack.c.l.bf16 %v856
    %v873 = vunpack.c.l.bf16 %v857
    %v874 = vunpack.c.l.bf16 %v858
    %v875 = vunpack.c.l.bf16 %v859
    %v876 = vunpack.c.l.bf16 %v860
    %v877 = vunpack.c.l.bf16 %v861
    %v878 = vunpack.c.l.bf16 %v862
    %v879 = vunpack.c.l.bf16 %v863
    %v880 = vunpack.c.l.bf16 %v864
    %v881 = vunpack.c.l.bf16 %v865
    %v882 = vunpack.c.l.bf16 %v866
    %v883 = vld [vmem:[#allocation8] sm:$0xff]
    %v884 = vld [vmem:[#allocation8 + $0x8] sm:$0xff]
    %v885 = vld [vmem:[#allocation8 + $0x10] sm:$0xff]
    %v886 = vld [vmem:[#allocation8 + $0x18] sm:$0xff]
    %v887 = vld [vmem:[#allocation8 + $0x20] sm:$0xff]
    %v888 = vld [vmem:[#allocation8 + $0x28] sm:$0xff]
    %v889 = vld [vmem:[#allocation8 + $0x30] sm:$0xff]
    %v890 = vld [vmem:[#allocation8 + $0x38] sm:$0xff]
    %v891 = vld [vmem:[#allocation8 + $0x40] sm:$0xff]
    %v892 = vld [vmem:[#allocation8 + $0x48] sm:$0xff]
    %v893 = vld [vmem:[#allocation8 + $0x50] sm:$0xff]
    %v894 = vld [vmem:[#allocation8 + $0x58] sm:$0xff]
    %v895 = vld [vmem:[#allocation8 + $0x60] sm:$0xff]
    %v896 = vld [vmem:[#allocation8 + $0x68] sm:$0xff]
    %v897 = vld [vmem:[#allocation8 + $0x70] sm:$0xff]
    %v898 = vld [vmem:[#allocation8 + $0x78] sm:$0xff]
    %v899 = vunpack.c.l.bf16 %v883
    %v900 = vunpack.c.h.bf16 %v883
    %v901 = vunpack.c.l.bf16 %v884
    %v902 = vunpack.c.h.bf16 %v884
    %v903 = vunpack.c.l.bf16 %v885
    %v904 = vunpack.c.h.bf16 %v885
    %v905 = vunpack.c.l.bf16 %v886
    %v906 = vunpack.c.h.bf16 %v886
    %v907 = vunpack.c.l.bf16 %v887
    %v908 = vunpack.c.h.bf16 %v887
    %v909 = vunpack.c.l.bf16 %v888
    %v910 = vunpack.c.h.bf16 %v888
    %v911 = vunpack.c.l.bf16 %v889
    %v912 = vunpack.c.h.bf16 %v889
    %v913 = vunpack.c.l.bf16 %v890
    %v914 = vunpack.c.h.bf16 %v890
    %v915 = vunpack.c.l.bf16 %v891
    %v916 = vunpack.c.h.bf16 %v891
    %v917 = vunpack.c.l.bf16 %v892
    %v918 = vunpack.c.h.bf16 %v892
    %v919 = vunpack.c.l.bf16 %v893
    %v920 = vunpack.c.h.bf16 %v893
    %v921 = vunpack.c.l.bf16 %v894
    %v922 = vunpack.c.h.bf16 %v894
    %v923 = vunpack.c.l.bf16 %v895
    %v924 = vunpack.c.h.bf16 %v895
    %v925 = vunpack.c.l.bf16 %v896
    %v926 = vunpack.c.h.bf16 %v896
    %v927 = vunpack.c.l.bf16 %v897
    %v928 = vunpack.c.h.bf16 %v897
    %v929 = vunpack.c.l.bf16 %v898
    %v930 = vunpack.c.h.bf16 %v898
    %v931 = vld [vmem:[#allocation6 + $0x100] sm:$0xf]
    %v932 = vld [vmem:[#allocation6 + $0x104] sm:$0xf]
    %v933 = vld [vmem:[#allocation6 + $0x108] sm:$0xf]
    %v934 = vld [vmem:[#allocation6 + $0x10c] sm:$0xf]
    %v935 = vld [vmem:[#allocation6 + $0x110] sm:$0xf]
    %v936 = vld [vmem:[#allocation6 + $0x114] sm:$0xf]
    %v937 = vld [vmem:[#allocation6 + $0x118] sm:$0xf]
    %v938 = vld [vmem:[#allocation6 + $0x11c] sm:$0xf]
    %v939 = vld [vmem:[#allocation6 + $0x120] sm:$0xf]
    %v940 = vld [vmem:[#allocation6 + $0x124] sm:$0xf]
    %v941 = vld [vmem:[#allocation6 + $0x128] sm:$0xf]
    %v942 = vld [vmem:[#allocation6 + $0x12c] sm:$0xf]
    %v943 = vld [vmem:[#allocation6 + $0x130] sm:$0xf]
    %v944 = vld [vmem:[#allocation6 + $0x134] sm:$0xf]
    %v945 = vld [vmem:[#allocation6 + $0x138] sm:$0xf]
    %v946 = vld [vmem:[#allocation6 + $0x13c] sm:$0xf]
    %v947 = vld [vmem:[#allocation6 + $0x140] sm:$0xf]
    %v948 = vld [vmem:[#allocation6 + $0x144] sm:$0xf]
    %v949 = vld [vmem:[#allocation6 + $0x148] sm:$0xf]
    %v950 = vld [vmem:[#allocation6 + $0x14c] sm:$0xf]
    %v951 = vld [vmem:[#allocation6 + $0x150] sm:$0xf]
    %v952 = vld [vmem:[#allocation6 + $0x154] sm:$0xf]
    %v953 = vld [vmem:[#allocation6 + $0x158] sm:$0xf]
    %v954 = vld [vmem:[#allocation6 + $0x15c] sm:$0xf]
    %v955 = vld [vmem:[#allocation6 + $0x160] sm:$0xf]
    %v956 = vld [vmem:[#allocation6 + $0x164] sm:$0xf]
    %v957 = vld [vmem:[#allocation6 + $0x168] sm:$0xf]
    %v958 = vld [vmem:[#allocation6 + $0x16c] sm:$0xf]
    %v959 = vld [vmem:[#allocation6 + $0x170] sm:$0xf]
    %v960 = vld [vmem:[#allocation6 + $0x174] sm:$0xf]
    %v961 = vld [vmem:[#allocation6 + $0x178] sm:$0xf]
    %v962 = vld [vmem:[#allocation6 + $0x17c] sm:$0xf]
    %v963 = vunpack.c.l.bf16 %v931
    %v964 = vunpack.c.l.bf16 %v932
    %v965 = vunpack.c.l.bf16 %v933
    %v966 = vunpack.c.l.bf16 %v934
    %v967 = vunpack.c.l.bf16 %v935
    %v968 = vunpack.c.l.bf16 %v936
    %v969 = vunpack.c.l.bf16 %v937
    %v970 = vunpack.c.l.bf16 %v938
    %v971 = vunpack.c.l.bf16 %v939
    %v972 = vunpack.c.l.bf16 %v940
    %v973 = vunpack.c.l.bf16 %v941
    %v974 = vunpack.c.l.bf16 %v942
    %v975 = vunpack.c.l.bf16 %v943
    %v976 = vunpack.c.l.bf16 %v944
    %v977 = vunpack.c.l.bf16 %v945
    %v978 = vunpack.c.l.bf16 %v946
    %v979 = vunpack.c.l.bf16 %v947
    %v980 = vunpack.c.l.bf16 %v948
    %v981 = vunpack.c.l.bf16 %v949
    %v982 = vunpack.c.l.bf16 %v950
    %v983 = vunpack.c.l.bf16 %v951
    %v984 = vunpack.c.l.bf16 %v952
    %v985 = vunpack.c.l.bf16 %v953
    %v986 = vunpack.c.l.bf16 %v954
    %v987 = vunpack.c.l.bf16 %v955
    %v988 = vunpack.c.l.bf16 %v956
    %v989 = vunpack.c.l.bf16 %v957
    %v990 = vunpack.c.l.bf16 %v958
    %v991 = vunpack.c.l.bf16 %v959
    %v992 = vunpack.c.l.bf16 %v960
    %v993 = vunpack.c.l.bf16 %v961
    %v994 = vunpack.c.l.bf16 %v962
    %v995 = vld [vmem:[#allocation9 + $0x10] ss:$0 sm:$0xff]
    %996 = vmatpush.msra.mxu0 %v882
    %997 = vmatpush.msra.mxu0 %v881
    %998 = vmatpush.msra.mxu0 %v880
    %999 = vmatpush.msra.mxu0 %v879
    %1000 = vmatpush.msra.mxu0 %v878
    %1001 = vmatpush.msra.mxu0 %v877
    %1002 = vmatpush.msra.mxu0 %v876
    %1003 = vmatpush.msra.mxu0 %v875
    %1004 = vmatpush.msra.mxu0 %v874
    %1005 = vmatpush.msra.mxu0 %v873
    %1006 = vmatpush.msra.mxu0 %v872
    %1007 = vmatpush.msra.mxu0 %v871
    %1008 = vmatpush.msra.mxu0 %v870
    %1009 = vmatpush.msra.mxu0 %v869
    %1010 = vmatpush.msra.mxu0 %v868
    %1011 = vmatpush.msra.mxu0 %v867
    %1012 = vmatmul.f32.gmra.mxu0 %v850
    %v1013 = vpop.f32.mrf.mxu0
    %v1014 = vadd.f32 %v995, %v1013
    %1015 = vdwg.mxu0
    %v1016 = vadd.f32 %v850, %v1014
    %v1017 = vld [vmem:[#allocation9 + $0x13] ss:$0 sm:$0xff]
    %v1018 = vld [vmem:[#allocation9 + $0x14] ss:$0 sm:$0xff]
    %1019 = vadd.xlane.f32.xlu0 %v1016
    %v1020 = vpop.xlane.xlu0 %1019
    %v1021 = vmul.f32 %v1020, 0.0078125
    %v1022 = vmul.f32 %v1016, %v1016
    %1023 = vadd.xlane.f32.xlu0 %v1022
    %v1024 = vpop.xlane.xlu0 %1023
    %v1025 = vmul.f32 %v1024, 0.0078125
    %v1026 = vsub.f32 %v1016, %v1021
    %v1027 = vmul.f32 %v1021, %v1021
    %v1028 = vsub.f32 %v1025, %v1027
    %v1029 = vadd.f32 %v1028, 1e-05
    %v1030 = vrsqrt.pop %v1029
    %v1031 = vmul.f32 %v1030, %v1029
    %v1032 = vmul.f32 %v1031, %v1030
    %v1033 = vmul.f32 0.5, %v1032
    %v1034 = vsub.f32 1.5, %v1033
    %v1035 = vmul.f32 %v1030, %v1034
    %vm1036 = vweird.f32 %v1029
    %vm1037 = vweird.f32 %v1030
    %vm1038 = vmor %vm1036, %vm1037
    %v1039 = vsel %vm1038, %v1030, %v1035
    %v1040 = vmul.f32 %v1026, %v1039
    %v1041 = vmul.f32 %v1040, %v1017
    %v1042 = vadd.f32 %v1041, %v1018
    %s1043 = scalar_lea.vmem [#allocation9], 17
    %v1044 = vld [vmem:[%s1043] ss:$8 sm:$0x3]
    %v1046 = vperm.slane %v1044, 0
    %v1047 = vperm.slane %v1044, 1
    %1050 = vmatpush.msra.mxu0 %v929
    %1051 = vmatpush.msra.mxu0 %v927
    %1052 = vmatpush.msra.mxu0 %v925
    %1053 = vmatpush.msra.mxu0 %v923
    %1054 = vmatpush.msra.mxu0 %v921
    %1055 = vmatpush.msra.mxu0 %v919
    %1056 = vmatpush.msra.mxu0 %v917
    %1057 = vmatpush.msra.mxu0 %v915
    %1058 = vmatpush.msra.mxu0 %v913
    %1059 = vmatpush.msra.mxu0 %v911
    %1060 = vmatpush.msra.mxu0 %v909
    %1061 = vmatpush.msra.mxu0 %v907
    %1062 = vmatpush.msra.mxu0 %v905
    %1063 = vmatpush.msra.mxu0 %v903
    %1064 = vmatpush.msra.mxu0 %v901
    %1065 = vmatpush.msra.mxu0 %v899
    %1066 = vmatmul.f32.gmra.mxu0 %v1042
    %v1067 = vpop.f32.mrf.mxu0
    %v1068 = vadd.f32 %v1046, %v1067
    %1069 = vdwg.mxu0
    %1070 = vmatpush.msra.mxu0 %v930
    %1071 = vmatpush.msra.mxu0 %v928
    %1072 = vmatpush.msra.mxu0 %v926
    %1073 = vmatpush.msra.mxu0 %v924
    %1074 = vmatpush.msra.mxu0 %v922
    %1075 = vmatpush.msra.mxu0 %v920
    %1076 = vmatpush.msra.mxu0 %v918
    %1077 = vmatpush.msra.mxu0 %v916
    %1078 = vmatpush.msra.mxu0 %v914
    %1079 = vmatpush.msra.mxu0 %v912
    %1080 = vmatpush.msra.mxu0 %v910
    %1081 = vmatpush.msra.mxu0 %v908
    %1082 = vmatpush.msra.mxu0 %v906
    %1083 = vmatpush.msra.mxu0 %v904
    %1084 = vmatpush.msra.mxu0 %v902
    %1085 = vmatpush.msra.mxu0 %v900
    %1086 = vmatmul.f32.gmra.mxu0 %v1042
    %v1087 = vpop.f32.mrf.mxu0
    %v1088 = vadd.f32 %v1047, %v1087
    %1089 = vdwg.mxu0
    %v1090 = vmax.f32 %v1068, 0.0
    %v1091 = vmax.f32 %v1088, 0.0
    %v1092 = vld [vmem:[#allocation9 + $0x12] ss:$0 sm:$0xff]
    %1093 = vmatpush.msra.mxu0 %v978
    %1094 = vmatpush.msra.mxu0 %v977
    %1095 = vmatpush.msra.mxu0 %v976
    %1096 = vmatpush.msra.mxu0 %v975
    %1097 = vmatpush.msra.mxu0 %v974
    %1098 = vmatpush.msra.mxu0 %v973
    %1099 = vmatpush.msra.mxu0 %v972
    %1100 = vmatpush.msra.mxu0 %v971
    %1101 = vmatpush.msra.mxu0 %v970
    %1102 = vmatpush.msra.mxu0 %v969
    %1103 = vmatpush.msra.mxu0 %v968
    %1104 = vmatpush.msra.mxu0 %v967
    %1105 = vmatpush.msra.mxu0 %v966
    %1106 = vmatpush.msra.mxu0 %v965
    %1107 = vmatpush.msra.mxu0 %v964
    %1108 = vmatpush.msra.mxu0 %v963
    %1109 = vmatmul.f32.gmra.mxu0 %v1090
    %v1110 = vpop.f32.mrf.mxu0
    %v1111 = vadd.f32 %v1092, %v1110
    %1112 = vdwg.mxu0
    %1113 = vmatpush.msra.mxu0 %v994
    %1114 = vmatpush.msra.mxu0 %v993
    %1115 = vmatpush.msra.mxu0 %v992
    %1116 = vmatpush.msra.mxu0 %v991
    %1117 = vmatpush.msra.mxu0 %v990
    %1118 = vmatpush.msra.mxu0 %v989
    %1119 = vmatpush.msra.mxu0 %v988
    %1120 = vmatpush.msra.mxu0 %v987
    %1121 = vmatpush.msra.mxu0 %v986
    %1122 = vmatpush.msra.mxu0 %v985
    %1123 = vmatpush.msra.mxu0 %v984
    %1124 = vmatpush.msra.mxu0 %v983
    %1125 = vmatpush.msra.mxu0 %v982
    %1126 = vmatpush.msra.mxu0 %v981
    %1127 = vmatpush.msra.mxu0 %v980
    %1128 = vmatpush.msra.mxu0 %v979
    %1129 = vmatmul.f32.gmra.mxu0 %v1091
    %v1130 = vpop.f32.mrf.mxu0
    %v1131 = vadd.f32 %v1111, %v1130
    %1132 = vdwg.mxu0
    %v1133 = vadd.f32 %v1042, %v1131
    %v1134 = vld [vmem:[#allocation9 + $0x15] ss:$0 sm:$0xff]
    %v1135 = vld [vmem:[#allocation9 + $0x16] ss:$0 sm:$0xff]
    %1136 = vadd.xlane.f32.xlu0 %v1133
    %v1137 = vpop.xlane.xlu0 %1136
    %v1138 = vmul.f32 %v1137, 0.0078125
    %v1139 = vmul.f32 %v1133, %v1133
    %1140 = vadd.xlane.f32.xlu0 %v1139
    %v1141 = vpop.xlane.xlu0 %1140
    %v1142 = vmul.f32 %v1141, 0.0078125
    %v1143 = vsub.f32 %v1133, %v1138
    %v1144 = vmul.f32 %v1138, %v1138
    %v1145 = vsub.f32 %v1142, %v1144
    %v1146 = vadd.f32 %v1145, 1e-05
    %v1147 = vrsqrt.pop %v1146
    %v1148 = vmul.f32 %v1147, %v1146
    %v1149 = vmul.f32 %v1148, %v1147
    %v1150 = vmul.f32 0.5, %v1149
    %v1151 = vsub.f32 1.5, %v1150
    %v1152 = vmul.f32 %v1147, %v1151
    %vm1153 = vweird.f32 %v1146
    %vm1154 = vweird.f32 %v1147
    %vm1155 = vmor %vm1153, %vm1154
    %v1156 = vsel %vm1155, %v1147, %v1152
    %v1157 = vmul.f32 %v1143, %v1156
    %v1158 = vmul.f32 %v1157, %v1134
    %v1159 = vadd.f32 %v1158, %v1135
    %v1160 = vld [vmem:[#allocation6 + $0x180] sm:$0xf]
    %v1161 = vld [vmem:[#allocation6 + $0x184] sm:$0xf]
    %v1162 = vld [vmem:[#allocation6 + $0x188] sm:$0xf]
    %v1163 = vld [vmem:[#allocation6 + $0x18c] sm:$0xf]
    %v1164 = vld [vmem:[#allocation6 + $0x190] sm:$0xf]
    %v1165 = vld [vmem:[#allocation6 + $0x194] sm:$0xf]
    %v1166 = vld [vmem:[#allocation6 + $0x198] sm:$0xf]
    %v1167 = vld [vmem:[#allocation6 + $0x19c] sm:$0xf]
    %v1168 = vld [vmem:[#allocation6 + $0x1a0] sm:$0xf]
    %v1169 = vld [vmem:[#allocation6 + $0x1a4] sm:$0xf]
    %v1170 = vld [vmem:[#allocation6 + $0x1a8] sm:$0xf]
    %v1171 = vld [vmem:[#allocation6 + $0x1ac] sm:$0xf]
    %v1172 = vld [vmem:[#allocation6 + $0x1b0] sm:$0xf]
    %v1173 = vld [vmem:[#allocation6 + $0x1b4] sm:$0xf]
    %v1174 = vld [vmem:[#allocation6 + $0x1b8] sm:$0xf]
    %v1175 = vld [vmem:[#allocation6 + $0x1bc] sm:$0xf]
    %v1176 = vunpack.c.l.bf16 %v1160
    %v1177 = vunpack.c.l.bf16 %v1161
    %v1178 = vunpack.c.l.bf16 %v1162
    %v1179 = vunpack.c.l.bf16 %v1163
    %v1180 = vunpack.c.l.bf16 %v1164
    %v1181 = vunpack.c.l.bf16 %v1165
    %v1182 = vunpack.c.l.bf16 %v1166
    %v1183 = vunpack.c.l.bf16 %v1167
    %v1184 = vunpack.c.l.bf16 %v1168
    %v1185 = vunpack.c.l.bf16 %v1169
    %v1186 = vunpack.c.l.bf16 %v1170
    %v1187 = vunpack.c.l.bf16 %v1171
    %v1188 = vunpack.c.l.bf16 %v1172
    %v1189 = vunpack.c.l.bf16 %v1173
    %v1190 = vunpack.c.l.bf16 %v1174
    %v1191 = vunpack.c.l.bf16 %v1175
    %v1192 = vld [vmem:[#allocation8 + $0x80] sm:$0xff]
    %v1193 = vld [vmem:[#allocation8 + $0x88] sm:$0xff]
    %v1194 = vld [vmem:[#allocation8 + $0x90] sm:$0xff]
    %v1195 = vld [vmem:[#allocation8 + $0x98] sm:$0xff]
    %v1196 = vld [vmem:[#allocation8 + $0xa0] sm:$0xff]
    %v1197 = vld [vmem:[#allocation8 + $0xa8] sm:$0xff]
    %v1198 = vld [vmem:[#allocation8 + $0xb0] sm:$0xff]
    %v1199 = vld [vmem:[#allocation8 + $0xb8] sm:$0xff]
    %v1200 = vld [vmem:[#allocation8 + $0xc0] sm:$0xff]
    %v1201 = vld [vmem:[#allocation8 + $0xc8] sm:$0xff]
    %v1202 = vld [vmem:[#allocation8 + $0xd0] sm:$0xff]
    %v1203 = vld [vmem:[#allocation8 + $0xd8] sm:$0xff]
    %v1204 = vld [vmem:[#allocation8 + $0xe0] sm:$0xff]
    %v1205 = vld [vmem:[#allocation8 + $0xe8] sm:$0xff]
    %v1206 = vld [vmem:[#allocation8 + $0xf0] sm:$0xff]
    %v1207 = vld [vmem:[#allocation8 + $0xf8] sm:$0xff]
    %v1208 = vunpack.c.l.bf16 %v1192
    %v1209 = vunpack.c.h.bf16 %v1192
    %v1210 = vunpack.c.l.bf16 %v1193
    %v1211 = vunpack.c.h.bf16 %v1193
    %v1212 = vunpack.c.l.bf16 %v1194
    %v1213 = vunpack.c.h.bf16 %v1194
    %v1214 = vunpack.c.l.bf16 %v1195
    %v1215 = vunpack.c.h.bf16 %v1195
    %v1216 = vunpack.c.l.bf16 %v1196
    %v1217 = vunpack.c.h.bf16 %v1196
    %v1218 = vunpack.c.l.bf16 %v1197
    %v1219 = vunpack.c.h.bf16 %v1197
    %v1220 = vunpack.c.l.bf16 %v1198
    %v1221 = vunpack.c.h.bf16 %v1198
    %v1222 = vunpack.c.l.bf16 %v1199
    %v1223 = vunpack.c.h.bf16 %v1199
    %v1224 = vunpack.c.l.bf16 %v1200
    %v1225 = vunpack.c.h.bf16 %v1200
    %v1226 = vunpack.c.l.bf16 %v1201
    %v1227 = vunpack.c.h.bf16 %v1201
    %v1228 = vunpack.c.l.bf16 %v1202
    %v1229 = vunpack.c.h.bf16 %v1202
    %v1230 = vunpack.c.l.bf16 %v1203
    %v1231 = vunpack.c.h.bf16 %v1203
    %v1232 = vunpack.c.l.bf16 %v1204
    %v1233 = vunpack.c.h.bf16 %v1204
    %v1234 = vunpack.c.l.bf16 %v1205
    %v1235 = vunpack.c.h.bf16 %v1205
    %v1236 = vunpack.c.l.bf16 %v1206
    %v1237 = vunpack.c.h.bf16 %v1206
    %v1238 = vunpack.c.l.bf16 %v1207
    %v1239 = vunpack.c.h.bf16 %v1207
    %v1240 = vld [vmem:[#allocation6 + $0x1c0] sm:$0xf]
    %v1241 = vld [vmem:[#allocation6 + $0x1c4] sm:$0xf]
    %v1242 = vld [vmem:[#allocation6 + $0x1c8] sm:$0xf]
    %v1243 = vld [vmem:[#allocation6 + $0x1cc] sm:$0xf]
    %v1244 = vld [vmem:[#allocation6 + $0x1d0] sm:$0xf]
    %v1245 = vld [vmem:[#allocation6 + $0x1d4] sm:$0xf]
    %v1246 = vld [vmem:[#allocation6 + $0x1d8] sm:$0xf]
    %v1247 = vld [vmem:[#allocation6 + $0x1dc] sm:$0xf]
    %v1248 = vld [vmem:[#allocation6 + $0x1e0] sm:$0xf]
    %v1249 = vld [vmem:[#allocation6 + $0x1e4] sm:$0xf]
    %v1250 = vld [vmem:[#allocation6 + $0x1e8] sm:$0xf]
    %v1251 = vld [vmem:[#allocation6 + $0x1ec] sm:$0xf]
    %v1252 = vld [vmem:[#allocation6 + $0x1f0] sm:$0xf]
    %v1253 = vld [vmem:[#allocation6 + $0x1f4] sm:$0xf]
    %v1254 = vld [vmem:[#allocation6 + $0x1f8] sm:$0xf]
    %v1255 = vld [vmem:[#allocation6 + $0x1fc] sm:$0xf]
    %v1256 = vld [vmem:[#allocation6 + $0x200] sm:$0xf]
    %v1257 = vld [vmem:[#allocation6 + $0x204] sm:$0xf]
    %v1258 = vld [vmem:[#allocation6 + $0x208] sm:$0xf]
    %v1259 = vld [vmem:[#allocation6 + $0x20c] sm:$0xf]
    %v1260 = vld [vmem:[#allocation6 + $0x210] sm:$0xf]
    %v1261 = vld [vmem:[#allocation6 + $0x214] sm:$0xf]
    %v1262 = vld [vmem:[#allocation6 + $0x218] sm:$0xf]
    %v1263 = vld [vmem:[#allocation6 + $0x21c] sm:$0xf]
    %v1264 = vld [vmem:[#allocation6 + $0x220] sm:$0xf]
    %v1265 = vld [vmem:[#allocation6 + $0x224] sm:$0xf]
    %v1266 = vld [vmem:[#allocation6 + $0x228] sm:$0xf]
    %v1267 = vld [vmem:[#allocation6 + $0x22c] sm:$0xf]
    %v1268 = vld [vmem:[#allocation6 + $0x230] sm:$0xf]
    %v1269 = vld [vmem:[#allocation6 + $0x234] sm:$0xf]
    %v1270 = vld [vmem:[#allocation6 + $0x238] sm:$0xf]
    %v1271 = vld [vmem:[#allocation6 + $0x23c] sm:$0xf]
    %v1272 = vunpack.c.l.bf16 %v1240
    %v1273 = vunpack.c.l.bf16 %v1241
    %v1274 = vunpack.c.l.bf16 %v1242
    %v1275 = vunpack.c.l.bf16 %v1243
    %v1276 = vunpack.c.l.bf16 %v1244
    %v1277 = vunpack.c.l.bf16 %v1245
    %v1278 = vunpack.c.l.bf16 %v1246
    %v1279 = vunpack.c.l.bf16 %v1247
    %v1280 = vunpack.c.l.bf16 %v1248
    %v1281 = vunpack.c.l.bf16 %v1249
    %v1282 = vunpack.c.l.bf16 %v1250
    %v1283 = vunpack.c.l.bf16 %v1251
    %v1284 = vunpack.c.l.bf16 %v1252
    %v1285 = vunpack.c.l.bf16 %v1253
    %v1286 = vunpack.c.l.bf16 %v1254
    %v1287 = vunpack.c.l.bf16 %v1255
    %v1288 = vunpack.c.l.bf16 %v1256
    %v1289 = vunpack.c.l.bf16 %v1257
    %v1290 = vunpack.c.l.bf16 %v1258
    %v1291 = vunpack.c.l.bf16 %v1259
    %v1292 = vunpack.c.l.bf16 %v1260
    %v1293 = vunpack.c.l.bf16 %v1261
    %v1294 = vunpack.c.l.bf16 %v1262
    %v1295 = vunpack.c.l.bf16 %v1263
    %v1296 = vunpack.c.l.bf16 %v1264
    %v1297 = vunpack.c.l.bf16 %v1265
    %v1298 = vunpack.c.l.bf16 %v1266
    %v1299 = vunpack.c.l.bf16 %v1267
    %v1300 = vunpack.c.l.bf16 %v1268
    %v1301 = vunpack.c.l.bf16 %v1269
    %v1302 = vunpack.c.l.bf16 %v1270
    %v1303 = vunpack.c.l.bf16 %v1271
    %v1304 = vld [vmem:[#allocation9 + $0x17] ss:$0 sm:$0xff]
    %1305 = vmatpush.msra.mxu0 %v1191
    %1306 = vmatpush.msra.mxu0 %v1190
    %1307 = vmatpush.msra.mxu0 %v1189
    %1308 = vmatpush.msra.mxu0 %v1188
    %1309 = vmatpush.msra.mxu0 %v1187
    %1310 = vmatpush.msra.mxu0 %v1186
    %1311 = vmatpush.msra.mxu0 %v1185
    %1312 = vmatpush.msra.mxu0 %v1184
    %1313 = vmatpush.msra.mxu0 %v1183
    %1314 = vmatpush.msra.mxu0 %v1182
    %1315 = vmatpush.msra.mxu0 %v1181
    %1316 = vmatpush.msra.mxu0 %v1180
    %1317 = vmatpush.msra.mxu0 %v1179
    %1318 = vmatpush.msra.mxu0 %v1178
    %1319 = vmatpush.msra.mxu0 %v1177
    %1320 = vmatpush.msra.mxu0 %v1176
    %1321 = vmatmul.f32.gmra.mxu0 %v1159
    %v1322 = vpop.f32.mrf.mxu0
    %v1323 = vadd.f32 %v1304, %v1322
    %1324 = vdwg.mxu0
    %v1325 = vadd.f32 %v1159, %v1323
    %v1326 = vld [vmem:[#allocation9 + $0x22] ss:$0 sm:$0xff]
    %v1327 = vld [vmem:[#allocation9 + $0x23] ss:$0 sm:$0xff]
    %1328 = vadd.xlane.f32.xlu0 %v1325
    %v1329 = vpop.xlane.xlu0 %1328
    %v1330 = vmul.f32 %v1329, 0.0078125
    %v1331 = vmul.f32 %v1325, %v1325
    %1332 = vadd.xlane.f32.xlu0 %v1331
    %v1333 = vpop.xlane.xlu0 %1332
    %v1334 = vmul.f32 %v1333, 0.0078125
    %v1335 = vsub.f32 %v1325, %v1330
    %v1336 = vmul.f32 %v1330, %v1330
    %v1337 = vsub.f32 %v1334, %v1336
    %v1338 = vadd.f32 %v1337, 1e-05
    %v1339 = vrsqrt.pop %v1338
    %v1340 = vmul.f32 %v1339, %v1338
    %v1341 = vmul.f32 %v1340, %v1339
    %v1342 = vmul.f32 0.5, %v1341
    %v1343 = vsub.f32 1.5, %v1342
    %v1344 = vmul.f32 %v1339, %v1343
    %vm1345 = vweird.f32 %v1338
    %vm1346 = vweird.f32 %v1339
    %vm1347 = vmor %vm1345, %vm1346
    %v1348 = vsel %vm1347, %v1339, %v1344
    %v1349 = vmul.f32 %v1335, %v1348
    %v1350 = vmul.f32 %v1349, %v1326
    %v1351 = vadd.f32 %v1350, %v1327
    %s1352 = scalar_lea.vmem [#allocation9], 32
    %v1353 = vld [vmem:[%s1352] ss:$8 sm:$0x3]
    %v1355 = vperm.slane %v1353, 0
    %v1356 = vperm.slane %v1353, 1
    %1359 = vmatpush.msra.mxu0 %v1238
    %1360 = vmatpush.msra.mxu0 %v1236
    %1361 = vmatpush.msra.mxu0 %v1234
    %1362 = vmatpush.msra.mxu0 %v1232
    %1363 = vmatpush.msra.mxu0 %v1230
    %1364 = vmatpush.msra.mxu0 %v1228
    %1365 = vmatpush.msra.mxu0 %v1226
    %1366 = vmatpush.msra.mxu0 %v1224
    %1367 = vmatpush.msra.mxu0 %v1222
    %1368 = vmatpush.msra.mxu0 %v1220
    %1369 = vmatpush.msra.mxu0 %v1218
    %1370 = vmatpush.msra.mxu0 %v1216
    %1371 = vmatpush.msra.mxu0 %v1214
    %1372 = vmatpush.msra.mxu0 %v1212
    %1373 = vmatpush.msra.mxu0 %v1210
    %1374 = vmatpush.msra.mxu0 %v1208
    %1375 = vmatmul.f32.gmra.mxu0 %v1351
    %v1376 = vpop.f32.mrf.mxu0
    %v1377 = vadd.f32 %v1355, %v1376
    %1378 = vdwg.mxu0
    %1379 = vmatpush.msra.mxu0 %v1239
    %1380 = vmatpush.msra.mxu0 %v1237
    %1381 = vmatpush.msra.mxu0 %v1235
    %1382 = vmatpush.msra.mxu0 %v1233
    %1383 = vmatpush.msra.mxu0 %v1231
    %1384 = vmatpush.msra.mxu0 %v1229
    %1385 = vmatpush.msra.mxu0 %v1227
    %1386 = vmatpush.msra.mxu0 %v1225
    %1387 = vmatpush.msra.mxu0 %v1223
    %1388 = vmatpush.msra.mxu0 %v1221
    %1389 = vmatpush.msra.mxu0 %v1219
    %1390 = vmatpush.msra.mxu0 %v1217
    %1391 = vmatpush.msra.mxu0 %v1215
    %1392 = vmatpush.msra.mxu0 %v1213
    %1393 = vmatpush.msra.mxu0 %v1211
    %1394 = vmatpush.msra.mxu0 %v1209
    %1395 = vmatmul.f32.gmra.mxu0 %v1351
    %v1396 = vpop.f32.mrf.mxu0
    %v1397 = vadd.f32 %v1356, %v1396
    %1398 = vdwg.mxu0
    %v1399 = vmax.f32 %v1377, 0.0
    %v1400 = vmax.f32 %v1397, 0.0
    %v1401 = vld [vmem:[#allocation9 + $0x21] ss:$0 sm:$0xff]
    %1402 = vmatpush.msra.mxu0 %v1287
    %1403 = vmatpush.msra.mxu0 %v1286
    %1404 = vmatpush.msra.mxu0 %v1285
    %1405 = vmatpush.msra.mxu0 %v1284
    %1406 = vmatpush.msra.mxu0 %v1283
    %1407 = vmatpush.msra.mxu0 %v1282
    %1408 = vmatpush.msra.mxu0 %v1281
    %1409 = vmatpush.msra.mxu0 %v1280
    %1410 = vmatpush.msra.mxu0 %v1279
    %1411 = vmatpush.msra.mxu0 %v1278
    %1412 = vmatpush.msra.mxu0 %v1277
    %1413 = vmatpush.msra.mxu0 %v1276
    %1414 = vmatpush.msra.mxu0 %v1275
    %1415 = vmatpush.msra.mxu0 %v1274
    %1416 = vmatpush.msra.mxu0 %v1273
    %1417 = vmatpush.msra.mxu0 %v1272
    %1418 = vmatmul.f32.gmra.mxu0 %v1399
    %v1419 = vpop.f32.mrf.mxu0
    %v1420 = vadd.f32 %v1401, %v1419
    %1421 = vdwg.mxu0
    %1422 = vmatpush.msra.mxu0 %v1303
    %1423 = vmatpush.msra.mxu0 %v1302
    %1424 = vmatpush.msra.mxu0 %v1301
    %1425 = vmatpush.msra.mxu0 %v1300
    %1426 = vmatpush.msra.mxu0 %v1299
    %1427 = vmatpush.msra.mxu0 %v1298
    %1428 = vmatpush.msra.mxu0 %v1297
    %1429 = vmatpush.msra.mxu0 %v1296
    %1430 = vmatpush.msra.mxu0 %v1295
    %1431 = vmatpush.msra.mxu0 %v1294
    %1432 = vmatpush.msra.mxu0 %v1293
    %1433 = vmatpush.msra.mxu0 %v1292
    %1434 = vmatpush.msra.mxu0 %v1291
    %1435 = vmatpush.msra.mxu0 %v1290
    %1436 = vmatpush.msra.mxu0 %v1289
    %1437 = vmatpush.msra.mxu0 %v1288
    %1438 = vmatmul.f32.gmra.mxu0 %v1400
    %v1439 = vpop.f32.mrf.mxu0
    %v1440 = vadd.f32 %v1420, %v1439
    %1441 = vdwg.mxu0
    %v1442 = vadd.f32 %v1351, %v1440
    %v1443 = vld [vmem:[#allocation9 + $0x24] ss:$0 sm:$0xff]
    %v1444 = vld [vmem:[#allocation9 + $0x25] ss:$0 sm:$0xff]
    %1445 = vadd.xlane.f32.xlu0 %v1442
    %v1446 = vpop.xlane.xlu0 %1445
    %v1447 = vmul.f32 %v1446, 0.0078125
    %v1448 = vmul.f32 %v1442, %v1442
    %1449 = vadd.xlane.f32.xlu0 %v1448
    %v1450 = vpop.xlane.xlu0 %1449
    %v1451 = vmul.f32 %v1450, 0.0078125
    %v1452 = vsub.f32 %v1442, %v1447
    %v1453 = vmul.f32 %v1447, %v1447
    %v1454 = vsub.f32 %v1451, %v1453
    %v1455 = vadd.f32 %v1454, 1e-05
    %v1456 = vrsqrt.pop %v1455
    %v1457 = vmul.f32 %v1456, %v1455
    %v1458 = vmul.f32 %v1457, %v1456
    %v1459 = vmul.f32 0.5, %v1458
    %v1460 = vsub.f32 1.5, %v1459
    %v1461 = vmul.f32 %v1456, %v1460
    %vm1462 = vweird.f32 %v1455
    %vm1463 = vweird.f32 %v1456
    %vm1464 = vmor %vm1462, %vm1463
    %v1465 = vsel %vm1464, %v1456, %v1461
    %v1466 = vmul.f32 %v1452, %v1465
    %v1467 = vmul.f32 %v1466, %v1443
    %v1468 = vadd.f32 %v1467, %v1444
    %v1469 = vld [vmem:[#allocation6 + $0x240] sm:$0xf]
    %v1470 = vld [vmem:[#allocation6 + $0x244] sm:$0xf]
    %v1471 = vld [vmem:[#allocation6 + $0x248] sm:$0xf]
    %v1472 = vld [vmem:[#allocation6 + $0x24c] sm:$0xf]
    %v1473 = vld [vmem:[#allocation6 + $0x250] sm:$0xf]
    %v1474 = vld [vmem:[#allocation6 + $0x254] sm:$0xf]
    %v1475 = vld [vmem:[#allocation6 + $0x258] sm:$0xf]
    %v1476 = vld [vmem:[#allocation6 + $0x25c] sm:$0xf]
    %v1477 = vld [vmem:[#allocation6 + $0x260] sm:$0xf]
    %v1478 = vld [vmem:[#allocation6 + $0x264] sm:$0xf]
    %v1479 = vld [vmem:[#allocation6 + $0x268] sm:$0xf]
    %v1480 = vld [vmem:[#allocation6 + $0x26c] sm:$0xf]
    %v1481 = vld [vmem:[#allocation6 + $0x270] sm:$0xf]
    %v1482 = vld [vmem:[#allocation6 + $0x274] sm:$0xf]
    %v1483 = vld [vmem:[#allocation6 + $0x278] sm:$0xf]
    %v1484 = vld [vmem:[#allocation6 + $0x27c] sm:$0xf]
    %v1485 = vunpack.c.l.bf16 %v1469
    %v1486 = vunpack.c.l.bf16 %v1470
    %v1487 = vunpack.c.l.bf16 %v1471
    %v1488 = vunpack.c.l.bf16 %v1472
    %v1489 = vunpack.c.l.bf16 %v1473
    %v1490 = vunpack.c.l.bf16 %v1474
    %v1491 = vunpack.c.l.bf16 %v1475
    %v1492 = vunpack.c.l.bf16 %v1476
    %v1493 = vunpack.c.l.bf16 %v1477
    %v1494 = vunpack.c.l.bf16 %v1478
    %v1495 = vunpack.c.l.bf16 %v1479
    %v1496 = vunpack.c.l.bf16 %v1480
    %v1497 = vunpack.c.l.bf16 %v1481
    %v1498 = vunpack.c.l.bf16 %v1482
    %v1499 = vunpack.c.l.bf16 %v1483
    %v1500 = vunpack.c.l.bf16 %v1484
    %v1501 = vld [vmem:[#allocation8 + $0x100] sm:$0xff]
    %v1502 = vld [vmem:[#allocation8 + $0x108] sm:$0xff]
    %v1503 = vld [vmem:[#allocation8 + $0x110] sm:$0xff]
    %v1504 = vld [vmem:[#allocation8 + $0x118] sm:$0xff]
    %v1505 = vld [vmem:[#allocation8 + $0x120] sm:$0xff]
    %v1506 = vld [vmem:[#allocation8 + $0x128] sm:$0xff]
    %v1507 = vld [vmem:[#allocation8 + $0x130] sm:$0xff]
    %v1508 = vld [vmem:[#allocation8 + $0x138] sm:$0xff]
    %v1509 = vld [vmem:[#allocation8 + $0x140] sm:$0xff]
    %v1510 = vld [vmem:[#allocation8 + $0x148] sm:$0xff]
    %v1511 = vld [vmem:[#allocation8 + $0x150] sm:$0xff]
    %v1512 = vld [vmem:[#allocation8 + $0x158] sm:$0xff]
    %v1513 = vld [vmem:[#allocation8 + $0x160] sm:$0xff]
    %v1514 = vld [vmem:[#allocation8 + $0x168] sm:$0xff]
    %v1515 = vld [vmem:[#allocation8 + $0x170] sm:$0xff]
    %v1516 = vld [vmem:[#allocation8 + $0x178] sm:$0xff]
    %v1517 = vunpack.c.l.bf16 %v1501
    %v1518 = vunpack.c.h.bf16 %v1501
    %v1519 = vunpack.c.l.bf16 %v1502
    %v1520 = vunpack.c.h.bf16 %v1502
    %v1521 = vunpack.c.l.bf16 %v1503
    %v1522 = vunpack.c.h.bf16 %v1503
    %v1523 = vunpack.c.l.bf16 %v1504
    %v1524 = vunpack.c.h.bf16 %v1504
    %v1525 = vunpack.c.l.bf16 %v1505
    %v1526 = vunpack.c.h.bf16 %v1505
    %v1527 = vunpack.c.l.bf16 %v1506
    %v1528 = vunpack.c.h.bf16 %v1506
    %v1529 = vunpack.c.l.bf16 %v1507
    %v1530 = vunpack.c.h.bf16 %v1507
    %v1531 = vunpack.c.l.bf16 %v1508
    %v1532 = vunpack.c.h.bf16 %v1508
    %v1533 = vunpack.c.l.bf16 %v1509
    %v1534 = vunpack.c.h.bf16 %v1509
    %v1535 = vunpack.c.l.bf16 %v1510
    %v1536 = vunpack.c.h.bf16 %v1510
    %v1537 = vunpack.c.l.bf16 %v1511
    %v1538 = vunpack.c.h.bf16 %v1511
    %v1539 = vunpack.c.l.bf16 %v1512
    %v1540 = vunpack.c.h.bf16 %v1512
    %v1541 = vunpack.c.l.bf16 %v1513
    %v1542 = vunpack.c.h.bf16 %v1513
    %v1543 = vunpack.c.l.bf16 %v1514
    %v1544 = vunpack.c.h.bf16 %v1514
    %v1545 = vunpack.c.l.bf16 %v1515
    %v1546 = vunpack.c.h.bf16 %v1515
    %v1547 = vunpack.c.l.bf16 %v1516
    %v1548 = vunpack.c.h.bf16 %v1516
    %v1549 = vld [vmem:[#allocation6 + $0x280] sm:$0xf]
    %v1550 = vld [vmem:[#allocation6 + $0x284] sm:$0xf]
    %v1551 = vld [vmem:[#allocation6 + $0x288] sm:$0xf]
    %v1552 = vld [vmem:[#allocation6 + $0x28c] sm:$0xf]
    %v1553 = vld [vmem:[#allocation6 + $0x290] sm:$0xf]
    %v1554 = vld [vmem:[#allocation6 + $0x294] sm:$0xf]
    %v1555 = vld [vmem:[#allocation6 + $0x298] sm:$0xf]
    %v1556 = vld [vmem:[#allocation6 + $0x29c] sm:$0xf]
    %v1557 = vld [vmem:[#allocation6 + $0x2a0] sm:$0xf]
    %v1558 = vld [vmem:[#allocation6 + $0x2a4] sm:$0xf]
    %v1559 = vld [vmem:[#allocation6 + $0x2a8] sm:$0xf]
    %v1560 = vld [vmem:[#allocation6 + $0x2ac] sm:$0xf]
    %v1561 = vld [vmem:[#allocation6 + $0x2b0] sm:$0xf]
    %v1562 = vld [vmem:[#allocation6 + $0x2b4] sm:$0xf]
    %v1563 = vld [vmem:[#allocation6 + $0x2b8] sm:$0xf]
    %v1564 = vld [vmem:[#allocation6 + $0x2bc] sm:$0xf]
    %v1565 = vld [vmem:[#allocation6 + $0x2c0] sm:$0xf]
    %v1566 = vld [vmem:[#allocation6 + $0x2c4] sm:$0xf]
    %v1567 = vld [vmem:[#allocation6 + $0x2c8] sm:$0xf]
    %v1568 = vld [vmem:[#allocation6 + $0x2cc] sm:$0xf]
    %v1569 = vld [vmem:[#allocation6 + $0x2d0] sm:$0xf]
    %v1570 = vld [vmem:[#allocation6 + $0x2d4] sm:$0xf]
    %v1571 = vld [vmem:[#allocation6 + $0x2d8] sm:$0xf]
    %v1572 = vld [vmem:[#allocation6 + $0x2dc] sm:$0xf]
    %v1573 = vld [vmem:[#allocation6 + $0x2e0] sm:$0xf]
    %v1574 = vld [vmem:[#allocation6 + $0x2e4] sm:$0xf]
    %v1575 = vld [vmem:[#allocation6 + $0x2e8] sm:$0xf]
    %v1576 = vld [vmem:[#allocation6 + $0x2ec] sm:$0xf]
    %v1577 = vld [vmem:[#allocation6 + $0x2f0] sm:$0xf]
    %v1578 = vld [vmem:[#allocation6 + $0x2f4] sm:$0xf]
    %v1579 = vld [vmem:[#allocation6 + $0x2f8] sm:$0xf]
    %v1580 = vld [vmem:[#allocation6 + $0x2fc] sm:$0xf]
    %v1581 = vunpack.c.l.bf16 %v1549
    %v1582 = vunpack.c.l.bf16 %v1550
    %v1583 = vunpack.c.l.bf16 %v1551
    %v1584 = vunpack.c.l.bf16 %v1552
    %v1585 = vunpack.c.l.bf16 %v1553
    %v1586 = vunpack.c.l.bf16 %v1554
    %v1587 = vunpack.c.l.bf16 %v1555
    %v1588 = vunpack.c.l.bf16 %v1556
    %v1589 = vunpack.c.l.bf16 %v1557
    %v1590 = vunpack.c.l.bf16 %v1558
    %v1591 = vunpack.c.l.bf16 %v1559
    %v1592 = vunpack.c.l.bf16 %v1560
    %v1593 = vunpack.c.l.bf16 %v1561
    %v1594 = vunpack.c.l.bf16 %v1562
    %v1595 = vunpack.c.l.bf16 %v1563
    %v1596 = vunpack.c.l.bf16 %v1564
    %v1597 = vunpack.c.l.bf16 %v1565
    %v1598 = vunpack.c.l.bf16 %v1566
    %v1599 = vunpack.c.l.bf16 %v1567
    %v1600 = vunpack.c.l.bf16 %v1568
    %v1601 = vunpack.c.l.bf16 %v1569
    %v1602 = vunpack.c.l.bf16 %v1570
    %v1603 = vunpack.c.l.bf16 %v1571
    %v1604 = vunpack.c.l.bf16 %v1572
    %v1605 = vunpack.c.l.bf16 %v1573
    %v1606 = vunpack.c.l.bf16 %v1574
    %v1607 = vunpack.c.l.bf16 %v1575
    %v1608 = vunpack.c.l.bf16 %v1576
    %v1609 = vunpack.c.l.bf16 %v1577
    %v1610 = vunpack.c.l.bf16 %v1578
    %v1611 = vunpack.c.l.bf16 %v1579
    %v1612 = vunpack.c.l.bf16 %v1580
    %v1613 = vld [vmem:[#allocation9 + $0x26] ss:$0 sm:$0xff]
    %1614 = vmatpush.msra.mxu0 %v1500
    %1615 = vmatpush.msra.mxu0 %v1499
    %1616 = vmatpush.msra.mxu0 %v1498
    %1617 = vmatpush.msra.mxu0 %v1497
    %1618 = vmatpush.msra.mxu0 %v1496
    %1619 = vmatpush.msra.mxu0 %v1495
    %1620 = vmatpush.msra.mxu0 %v1494
    %1621 = vmatpush.msra.mxu0 %v1493
    %1622 = vmatpush.msra.mxu0 %v1492
    %1623 = vmatpush.msra.mxu0 %v1491
    %1624 = vmatpush.msra.mxu0 %v1490
    %1625 = vmatpush.msra.mxu0 %v1489
    %1626 = vmatpush.msra.mxu0 %v1488
    %1627 = vmatpush.msra.mxu0 %v1487
    %1628 = vmatpush.msra.mxu0 %v1486
    %1629 = vmatpush.msra.mxu0 %v1485
    %1630 = vmatmul.f32.gmra.mxu0 %v1468
    %v1631 = vpop.f32.mrf.mxu0
    %v1632 = vadd.f32 %v1613, %v1631
    %1633 = vdwg.mxu0
    %v1634 = vadd.f32 %v1468, %v1632
    %v1635 = vld [vmem:[#allocation9 + $0x31] ss:$0 sm:$0xff]
    %v1636 = vld [vmem:[#allocation9 + $0x32] ss:$0 sm:$0xff]
    %1637 = vadd.xlane.f32.xlu0 %v1634
    %v1638 = vpop.xlane.xlu0 %1637
    %v1639 = vmul.f32 %v1638, 0.0078125
    %v1640 = vmul.f32 %v1634, %v1634
    %1641 = vadd.xlane.f32.xlu0 %v1640
    %v1642 = vpop.xlane.xlu0 %1641
    %v1643 = vmul.f32 %v1642, 0.0078125
    %v1644 = vsub.f32 %v1634, %v1639
    %v1645 = vmul.f32 %v1639, %v1639
    %v1646 = vsub.f32 %v1643, %v1645
    %v1647 = vadd.f32 %v1646, 1e-05
    %v1648 = vrsqrt.pop %v1647
    %v1649 = vmul.f32 %v1648, %v1647
    %v1650 = vmul.f32 %v1649, %v1648
    %v1651 = vmul.f32 0.5, %v1650
    %v1652 = vsub.f32 1.5, %v1651
    %v1653 = vmul.f32 %v1648, %v1652
    %vm1654 = vweird.f32 %v1647
    %vm1655 = vweird.f32 %v1648
    %vm1656 = vmor %vm1654, %vm1655
    %v1657 = vsel %vm1656, %v1648, %v1653
    %v1658 = vmul.f32 %v1644, %v1657
    %v1659 = vmul.f32 %v1658, %v1635
    %v1660 = vadd.f32 %v1659, %v1636
    %s1661 = scalar_lea.vmem [#allocation9], 39
    %v1662 = vld [vmem:[%s1661] ss:$8 sm:$0x3]
    %v1664 = vperm.slane %v1662, 0
    %v1665 = vperm.slane %v1662, 1
    %1668 = vmatpush.msra.mxu0 %v1547
    %1669 = vmatpush.msra.mxu0 %v1545
    %1670 = vmatpush.msra.mxu0 %v1543
    %1671 = vmatpush.msra.mxu0 %v1541
    %1672 = vmatpush.msra.mxu0 %v1539
    %1673 = vmatpush.msra.mxu0 %v1537
    %1674 = vmatpush.msra.mxu0 %v1535
    %1675 = vmatpush.msra.mxu0 %v1533
    %1676 = vmatpush.msra.mxu0 %v1531
    %1677 = vmatpush.msra.mxu0 %v1529
    %1678 = vmatpush.msra.mxu0 %v1527
    %1679 = vmatpush.msra.mxu0 %v1525
    %1680 = vmatpush.msra.mxu0 %v1523
    %1681 = vmatpush.msra.mxu0 %v1521
    %1682 = vmatpush.msra.mxu0 %v1519
    %1683 = vmatpush.msra.mxu0 %v1517
    %1684 = vmatmul.f32.gmra.mxu0 %v1660
    %v1685 = vpop.f32.mrf.mxu0
    %v1686 = vadd.f32 %v1664, %v1685
    %1687 = vdwg.mxu0
    %1688 = vmatpush.msra.mxu0 %v1548
    %1689 = vmatpush.msra.mxu0 %v1546
    %1690 = vmatpush.msra.mxu0 %v1544
    %1691 = vmatpush.msra.mxu0 %v1542
    %1692 = vmatpush.msra.mxu0 %v1540
    %1693 = vmatpush.msra.mxu0 %v1538
    %1694 = vmatpush.msra.mxu0 %v1536
    %1695 = vmatpush.msra.mxu0 %v1534
    %1696 = vmatpush.msra.mxu0 %v1532
    %1697 = vmatpush.msra.mxu0 %v1530
    %1698 = vmatpush.msra.mxu0 %v1528
    %1699 = vmatpush.msra.mxu0 %v1526
    %1700 = vmatpush.msra.mxu0 %v1524
    %1701 = vmatpush.msra.mxu0 %v1522
    %1702 = vmatpush.msra.mxu0 %v1520
    %1703 = vmatpush.msra.mxu0 %v1518
    %1704 = vmatmul.f32.gmra.mxu0 %v1660
    %v1705 = vpop.f32.mrf.mxu0
    %v1706 = vadd.f32 %v1665, %v1705
    %1707 = vdwg.mxu0
    %v1708 = vmax.f32 %v1686, 0.0
    %v1709 = vmax.f32 %v1706, 0.0
    %v1710 = vld [vmem:[#allocation9 + $0x30] ss:$0 sm:$0xff]
    %1711 = vmatpush.msra.mxu0 %v1596
    %1712 = vmatpush.msra.mxu0 %v1595
    %1713 = vmatpush.msra.mxu0 %v1594
    %1714 = vmatpush.msra.mxu0 %v1593
    %1715 = vmatpush.msra.mxu0 %v1592
    %1716 = vmatpush.msra.mxu0 %v1591
    %1717 = vmatpush.msra.mxu0 %v1590
    %1718 = vmatpush.msra.mxu0 %v1589
    %1719 = vmatpush.msra.mxu0 %v1588
    %1720 = vmatpush.msra.mxu0 %v1587
    %1721 = vmatpush.msra.mxu0 %v1586
    %1722 = vmatpush.msra.mxu0 %v1585
    %1723 = vmatpush.msra.mxu0 %v1584
    %1724 = vmatpush.msra.mxu0 %v1583
    %1725 = vmatpush.msra.mxu0 %v1582
    %1726 = vmatpush.msra.mxu0 %v1581
    %1727 = vmatmul.f32.gmra.mxu0 %v1708
    %v1728 = vpop.f32.mrf.mxu0
    %v1729 = vadd.f32 %v1710, %v1728
    %1730 = vdwg.mxu0
    %1731 = vmatpush.msra.mxu0 %v1612
    %1732 = vmatpush.msra.mxu0 %v1611
    %1733 = vmatpush.msra.mxu0 %v1610
    %1734 = vmatpush.msra.mxu0 %v1609
    %1735 = vmatpush.msra.mxu0 %v1608
    %1736 = vmatpush.msra.mxu0 %v1607
    %1737 = vmatpush.msra.mxu0 %v1606
    %1738 = vmatpush.msra.mxu0 %v1605
    %1739 = vmatpush.msra.mxu0 %v1604
    %1740 = vmatpush.msra.mxu0 %v1603
    %1741 = vmatpush.msra.mxu0 %v1602
    %1742 = vmatpush.msra.mxu0 %v1601
    %1743 = vmatpush.msra.mxu0 %v1600
    %1744 = vmatpush.msra.mxu0 %v1599
    %1745 = vmatpush.msra.mxu0 %v1598
    %1746 = vmatpush.msra.mxu0 %v1597
    %1747 = vmatmul.f32.gmra.mxu0 %v1709
    %v1748 = vpop.f32.mrf.mxu0
    %v1749 = vadd.f32 %v1729, %v1748
    %1750 = vdwg.mxu0
    %v1751 = vadd.f32 %v1660, %v1749
    %v1752 = vld [vmem:[#allocation9 + $0x33] ss:$0 sm:$0xff]
    %v1753 = vld [vmem:[#allocation9 + $0x34] ss:$0 sm:$0xff]
    %1754 = vadd.xlane.f32.xlu0 %v1751
    %v1755 = vpop.xlane.xlu0 %1754
    %v1756 = vmul.f32 %v1755, 0.0078125
    %v1757 = vmul.f32 %v1751, %v1751
    %1758 = vadd.xlane.f32.xlu0 %v1757
    %v1759 = vpop.xlane.xlu0 %1758
    %v1760 = vmul.f32 %v1759, 0.0078125
    %v1761 = vsub.f32 %v1751, %v1756
    %v1762 = vmul.f32 %v1756, %v1756
    %v1763 = vsub.f32 %v1760, %v1762
    %v1764 = vadd.f32 %v1763, 1e-05
    %v1765 = vrsqrt.pop %v1764
    %v1766 = vmul.f32 %v1765, %v1764
    %v1767 = vmul.f32 %v1766, %v1765
    %v1768 = vmul.f32 0.5, %v1767
    %v1769 = vsub.f32 1.5, %v1768
    %v1770 = vmul.f32 %v1765, %v1769
    %vm1771 = vweird.f32 %v1764
    %vm1772 = vweird.f32 %v1765
    %vm1773 = vmor %vm1771, %vm1772
    %v1774 = vsel %vm1773, %v1765, %v1770
    %v1775 = vmul.f32 %v1761, %v1774
    %v1776 = vmul.f32 %v1775, %v1752
    %v1777 = vadd.f32 %v1776, %v1753
    %s1778 = smul.u32 4, 192
    %s1779 = smul.u32 %s1778, 1
    %s1780 = sshll.u32 %s1779, 4
    %1781 = dma.done [#allocation3], %s1780
    %v1782 = vld [vmem:[#allocation2] sm:$0xf]
    %v1783 = vld [vmem:[#allocation2 + $0x4] sm:$0xf]
    %v1784 = vld [vmem:[#allocation2 + $0x8] sm:$0xf]
    %v1785 = vld [vmem:[#allocation2 + $0xc] sm:$0xf]
    %v1786 = vld [vmem:[#allocation2 + $0x10] sm:$0xf]
    %v1787 = vld [vmem:[#allocation2 + $0x14] sm:$0xf]
    %v1788 = vld [vmem:[#allocation2 + $0x18] sm:$0xf]
    %v1789 = vld [vmem:[#allocation2 + $0x1c] sm:$0xf]
    %v1790 = vld [vmem:[#allocation2 + $0x20] sm:$0xf]
    %v1791 = vld [vmem:[#allocation2 + $0x24] sm:$0xf]
    %v1792 = vld [vmem:[#allocation2 + $0x28] sm:$0xf]
    %v1793 = vld [vmem:[#allocation2 + $0x2c] sm:$0xf]
    %v1794 = vld [vmem:[#allocation2 + $0x30] sm:$0xf]
    %v1795 = vld [vmem:[#allocation2 + $0x34] sm:$0xf]
    %v1796 = vld [vmem:[#allocation2 + $0x38] sm:$0xf]
    %v1797 = vld [vmem:[#allocation2 + $0x3c] sm:$0xf]
    %v1798 = vunpack.c.l.bf16 %v1782
    %v1799 = vunpack.c.l.bf16 %v1783
    %v1800 = vunpack.c.l.bf16 %v1784
    %v1801 = vunpack.c.l.bf16 %v1785
    %v1802 = vunpack.c.l.bf16 %v1786
    %v1803 = vunpack.c.l.bf16 %v1787
    %v1804 = vunpack.c.l.bf16 %v1788
    %v1805 = vunpack.c.l.bf16 %v1789
    %v1806 = vunpack.c.l.bf16 %v1790
    %v1807 = vunpack.c.l.bf16 %v1791
    %v1808 = vunpack.c.l.bf16 %v1792
    %v1809 = vunpack.c.l.bf16 %v1793
    %v1810 = vunpack.c.l.bf16 %v1794
    %v1811 = vunpack.c.l.bf16 %v1795
    %v1812 = vunpack.c.l.bf16 %v1796
    %v1813 = vunpack.c.l.bf16 %v1797
    %v1814 = vld [vmem:[#allocation9 + $0x3] ss:$0 sm:$0xff]
    %1815 = vmatpush.msra.mxu0 %v1813
    %1816 = vmatpush.msra.mxu0 %v1812
    %1817 = vmatpush.msra.mxu0 %v1811
    %1818 = vmatpush.msra.mxu0 %v1810
    %1819 = vmatpush.msra.mxu0 %v1809
    %1820 = vmatpush.msra.mxu0 %v1808
    %1821 = vmatpush.msra.mxu0 %v1807
    %1822 = vmatpush.msra.mxu0 %v1806
    %1823 = vmatpush.msra.mxu0 %v1805
    %1824 = vmatpush.msra.mxu0 %v1804
    %1825 = vmatpush.msra.mxu0 %v1803
    %1826 = vmatpush.msra.mxu0 %v1802
    %1827 = vmatpush.msra.mxu0 %v1801
    %1828 = vmatpush.msra.mxu0 %v1800
    %1829 = vmatpush.msra.mxu0 %v1799
    %1830 = vmatpush.msra.mxu0 %v1798
    %1831 = vmatmul.f32.gmra.mxu0 %v1777
    %v1832 = vpop.f32.mrf.mxu0
    %v1833 = vadd.f32 %v1814, %v1832
    %1834 = vdwg.mxu0
    %v1835 = vxor.u32 %v465, 2147483648
    %v1836 = vmul.f32 %v1835, 1.442695
    %v1837 = vpow.pop %v1836
    %v1838 = vadd.f32 %v1837, 1.0
    %v1839 = vrcp.pop %v1838
    %v1840 = vmul.f32 %v1838, %v1839
    %v1841 = vsub.f32 1.0, %v1840
    %v1842 = vmul.f32 %v1839, %v1841
    %v1843 = vadd.f32 %v1839, %v1842
    %vm1844 = vweird.f32 %v1838
    %vm1845 = vweird.f32 %v1839
    %vm1846 = vmor %vm1844, %vm1845
    %v1847 = vsel %vm1846, %v1839, %v1843
    %v1848 = vand.u32 2147483647, %v1838
    %vm1849 = vcmp.eq.f32.partialorder %v1848, 8.507059e+37
    %v1850 = vand.u32 %v1838, 2147483648
    %v1851 = vor.u32 1.1754944e-38, %v1850
    %v1852 = vsel %vm1849, %v1851, %v1847
    %v1853 = vmul.f32 1.0, %v1852
    %v1854 = vmul.f32 %v1833, %v1853
    %v1855 = vadd.f32 %v1854, %v585
    %v1856 = vld [vmem:[#allocation9 + $0x7] ss:$0 sm:$0xff]
    %v1857 = vadd.f32 %v1855, %v1856
    %v1858 = vld [vmem:[#allocation2 + $0xc0] sm:$0xf]
    %v1859 = vld [vmem:[#allocation2 + $0xc4] sm:$0xf]
    %v1860 = vld [vmem:[#allocation2 + $0xc8] sm:$0xf]
    %v1861 = vld [vmem:[#allocation2 + $0xcc] sm:$0xf]
    %v1862 = vld [vmem:[#allocation2 + $0xd0] sm:$0xf]
    %v1863 = vld [vmem:[#allocation2 + $0xd4] sm:$0xf]
    %v1864 = vld [vmem:[#allocation2 + $0xd8] sm:$0xf]
    %v1865 = vld [vmem:[#allocation2 + $0xdc] sm:$0xf]
    %v1866 = vld [vmem:[#allocation2 + $0xe0] sm:$0xf]
    %v1867 = vld [vmem:[#allocation2 + $0xe4] sm:$0xf]
    %v1868 = vld [vmem:[#allocation2 + $0xe8] sm:$0xf]
    %v1869 = vld [vmem:[#allocation2 + $0xec] sm:$0xf]
    %v1870 = vld [vmem:[#allocation2 + $0xf0] sm:$0xf]
    %v1871 = vld [vmem:[#allocation2 + $0xf4] sm:$0xf]
    %v1872 = vld [vmem:[#allocation2 + $0xf8] sm:$0xf]
    %v1873 = vld [vmem:[#allocation2 + $0xfc] sm:$0xf]
    %v1874 = vunpack.c.l.bf16 %v1858
    %v1875 = vunpack.c.l.bf16 %v1859
    %v1876 = vunpack.c.l.bf16 %v1860
    %v1877 = vunpack.c.l.bf16 %v1861
    %v1878 = vunpack.c.l.bf16 %v1862
    %v1879 = vunpack.c.l.bf16 %v1863
    %v1880 = vunpack.c.l.bf16 %v1864
    %v1881 = vunpack.c.l.bf16 %v1865
    %v1882 = vunpack.c.l.bf16 %v1866
    %v1883 = vunpack.c.l.bf16 %v1867
    %v1884 = vunpack.c.l.bf16 %v1868
    %v1885 = vunpack.c.l.bf16 %v1869
    %v1886 = vunpack.c.l.bf16 %v1870
    %v1887 = vunpack.c.l.bf16 %v1871
    %v1888 = vunpack.c.l.bf16 %v1872
    %v1889 = vunpack.c.l.bf16 %v1873
    %v1890 = vld [vmem:[#allocation2 + $0x100] sm:$0xf]
    %v1891 = vld [vmem:[#allocation2 + $0x104] sm:$0xf]
    %v1892 = vld [vmem:[#allocation2 + $0x108] sm:$0xf]
    %v1893 = vld [vmem:[#allocation2 + $0x10c] sm:$0xf]
    %v1894 = vld [vmem:[#allocation2 + $0x110] sm:$0xf]
    %v1895 = vld [vmem:[#allocation2 + $0x114] sm:$0xf]
    %v1896 = vld [vmem:[#allocation2 + $0x118] sm:$0xf]
    %v1897 = vld [vmem:[#allocation2 + $0x11c] sm:$0xf]
    %v1898 = vld [vmem:[#allocation2 + $0x120] sm:$0xf]
    %v1899 = vld [vmem:[#allocation2 + $0x124] sm:$0xf]
    %v1900 = vld [vmem:[#allocation2 + $0x128] sm:$0xf]
    %v1901 = vld [vmem:[#allocation2 + $0x12c] sm:$0xf]
    %v1902 = vld [vmem:[#allocation2 + $0x130] sm:$0xf]
    %v1903 = vld [vmem:[#allocation2 + $0x134] sm:$0xf]
    %v1904 = vld [vmem:[#allocation2 + $0x138] sm:$0xf]
    %v1905 = vld [vmem:[#allocation2 + $0x13c] sm:$0xf]
    %v1906 = vunpack.c.l.bf16 %v1890
    %v1907 = vunpack.c.l.bf16 %v1891
    %v1908 = vunpack.c.l.bf16 %v1892
    %v1909 = vunpack.c.l.bf16 %v1893
    %v1910 = vunpack.c.l.bf16 %v1894
    %v1911 = vunpack.c.l.bf16 %v1895
    %v1912 = vunpack.c.l.bf16 %v1896
    %v1913 = vunpack.c.l.bf16 %v1897
    %v1914 = vunpack.c.l.bf16 %v1898
    %v1915 = vunpack.c.l.bf16 %v1899
    %v1916 = vunpack.c.l.bf16 %v1900
    %v1917 = vunpack.c.l.bf16 %v1901
    %v1918 = vunpack.c.l.bf16 %v1902
    %v1919 = vunpack.c.l.bf16 %v1903
    %v1920 = vunpack.c.l.bf16 %v1904
    %v1921 = vunpack.c.l.bf16 %v1905
    %v1922 = vld [vmem:[#allocation2 + $0x140] sm:$0xf]
    %v1923 = vld [vmem:[#allocation2 + $0x144] sm:$0xf]
    %v1924 = vld [vmem:[#allocation2 + $0x148] sm:$0xf]
    %v1925 = vld [vmem:[#allocation2 + $0x14c] sm:$0xf]
    %v1926 = vld [vmem:[#allocation2 + $0x150] sm:$0xf]
    %v1927 = vld [vmem:[#allocation2 + $0x154] sm:$0xf]
    %v1928 = vld [vmem:[#allocation2 + $0x158] sm:$0xf]
    %v1929 = vld [vmem:[#allocation2 + $0x15c] sm:$0xf]
    %v1930 = vld [vmem:[#allocation2 + $0x160] sm:$0xf]
    %v1931 = vld [vmem:[#allocation2 + $0x164] sm:$0xf]
    %v1932 = vld [vmem:[#allocation2 + $0x168] sm:$0xf]
    %v1933 = vld [vmem:[#allocation2 + $0x16c] sm:$0xf]
    %v1934 = vld [vmem:[#allocation2 + $0x170] sm:$0xf]
    %v1935 = vld [vmem:[#allocation2 + $0x174] sm:$0xf]
    %v1936 = vld [vmem:[#allocation2 + $0x178] sm:$0xf]
    %v1937 = vld [vmem:[#allocation2 + $0x17c] sm:$0xf]
    %v1938 = vunpack.c.l.bf16 %v1922
    %v1939 = vunpack.c.l.bf16 %v1923
    %v1940 = vunpack.c.l.bf16 %v1924
    %v1941 = vunpack.c.l.bf16 %v1925
    %v1942 = vunpack.c.l.bf16 %v1926
    %v1943 = vunpack.c.l.bf16 %v1927
    %v1944 = vunpack.c.l.bf16 %v1928
    %v1945 = vunpack.c.l.bf16 %v1929
    %v1946 = vunpack.c.l.bf16 %v1930
    %v1947 = vunpack.c.l.bf16 %v1931
    %v1948 = vunpack.c.l.bf16 %v1932
    %v1949 = vunpack.c.l.bf16 %v1933
    %v1950 = vunpack.c.l.bf16 %v1934
    %v1951 = vunpack.c.l.bf16 %v1935
    %v1952 = vunpack.c.l.bf16 %v1936
    %v1953 = vunpack.c.l.bf16 %v1937
    %v1954 = vld [vmem:[#allocation9 + $0x35] ss:$0 sm:$0xff]
    %1955 = vmatpush.msra.mxu0 %v1889
    %1956 = vmatpush.msra.mxu0 %v1888
    %1957 = vmatpush.msra.mxu0 %v1887
    %1958 = vmatpush.msra.mxu0 %v1886
    %1959 = vmatpush.msra.mxu0 %v1885
    %1960 = vmatpush.msra.mxu0 %v1884
    %1961 = vmatpush.msra.mxu0 %v1883
    %1962 = vmatpush.msra.mxu0 %v1882
    %1963 = vmatpush.msra.mxu0 %v1881
    %1964 = vmatpush.msra.mxu0 %v1880
    %1965 = vmatpush.msra.mxu0 %v1879
    %1966 = vmatpush.msra.mxu0 %v1878
    %1967 = vmatpush.msra.mxu0 %v1877
    %1968 = vmatpush.msra.mxu0 %v1876
    %1969 = vmatpush.msra.mxu0 %v1875
    %1970 = vmatpush.msra.mxu0 %v1874
    %1971 = vmatmul.f32.gmra.mxu0 %v1857
    %v1972 = vpop.f32.mrf.mxu0
    %v1973 = vadd.f32 %v1954, %v1972
    %1974 = vdwg.mxu0
    %v1975 = vadd.f32 %v1857, %v1973
    %v1976 = vld [vmem:[#allocation9 + $0x40] ss:$0 sm:$0xff]
    %v1977 = vld [vmem:[#allocation9 + $0x41] ss:$0 sm:$0xff]
    %1978 = vadd.xlane.f32.xlu0 %v1975
    %v1979 = vpop.xlane.xlu0 %1978
    %v1980 = vmul.f32 %v1979, 0.015625
    %v1981 = vmul.f32 %v1975, %v1975
    %1982 = vadd.xlane.f32.xlu0 %v1981
    %v1983 = vpop.xlane.xlu0 %1982
    %v1984 = vmul.f32 %v1983, 0.015625
    %v1985 = vsub.f32 %v1975, %v1980
    %v1986 = vmul.f32 %v1980, %v1980
    %v1987 = vsub.f32 %v1984, %v1986
    %v1988 = vadd.f32 %v1987, 1e-05
    %v1989 = vrsqrt.pop %v1988
    %v1990 = vmul.f32 %v1989, %v1988
    %v1991 = vmul.f32 %v1990, %v1989
    %v1992 = vmul.f32 0.5, %v1991
    %v1993 = vsub.f32 1.5, %v1992
    %v1994 = vmul.f32 %v1989, %v1993
    %vm1995 = vweird.f32 %v1988
    %vm1996 = vweird.f32 %v1989
    %vm1997 = vmor %vm1995, %vm1996
    %v1998 = vsel %vm1997, %v1989, %v1994
    %v1999 = vmul.f32 %v1985, %v1998
    %v2000 = vmul.f32 %v1999, %v1976
    %v2001 = vadd.f32 %v2000, %v1977
    %v2002 = vld [vmem:[#allocation9 + $0x36] ss:$0 sm:$0xff]
    %2003 = vmatpush.msra.mxu0 %v1921
    %2004 = vmatpush.msra.mxu0 %v1920
    %2005 = vmatpush.msra.mxu0 %v1919
    %2006 = vmatpush.msra.mxu0 %v1918
    %2007 = vmatpush.msra.mxu0 %v1917
    %2008 = vmatpush.msra.mxu0 %v1916
    %2009 = vmatpush.msra.mxu0 %v1915
    %2010 = vmatpush.msra.mxu0 %v1914
    %2011 = vmatpush.msra.mxu0 %v1913
    %2012 = vmatpush.msra.mxu0 %v1912
    %2013 = vmatpush.msra.mxu0 %v1911
    %2014 = vmatpush.msra.mxu0 %v1910
    %2015 = vmatpush.msra.mxu0 %v1909
    %2016 = vmatpush.msra.mxu0 %v1908
    %2017 = vmatpush.msra.mxu0 %v1907
    %2018 = vmatpush.msra.mxu0 %v1906
    %2019 = vmatmul.f32.gmra.mxu0 %v2001
    %v2020 = vpop.f32.mrf.mxu0
    %v2021 = vadd.f32 %v2002, %v2020
    %2022 = vdwg.mxu0
    %v2023 = vmax.f32 %v2021, 0.0
    %v2024 = vld [vmem:[#allocation9 + $0x37] ss:$0 sm:$0xff]
    %2025 = vmatpush.msra.mxu0 %v1953
    %2026 = vmatpush.msra.mxu0 %v1952
    %2027 = vmatpush.msra.mxu0 %v1951
    %2028 = vmatpush.msra.mxu0 %v1950
    %2029 = vmatpush.msra.mxu0 %v1949
    %2030 = vmatpush.msra.mxu0 %v1948
    %2031 = vmatpush.msra.mxu0 %v1947
    %2032 = vmatpush.msra.mxu0 %v1946
    %2033 = vmatpush.msra.mxu0 %v1945
    %2034 = vmatpush.msra.mxu0 %v1944
    %2035 = vmatpush.msra.mxu0 %v1943
    %2036 = vmatpush.msra.mxu0 %v1942
    %2037 = vmatpush.msra.mxu0 %v1941
    %2038 = vmatpush.msra.mxu0 %v1940
    %2039 = vmatpush.msra.mxu0 %v1939
    %2040 = vmatpush.msra.mxu0 %v1938
    %2041 = vmatmul.f32.gmra.mxu0 %v2023
    %v2042 = vpop.f32.mrf.mxu0
    %v2043 = vadd.f32 %v2024, %v2042
    %2044 = vdwg.mxu0
    %v2045 = vadd.f32 %v2001, %v2043
    %v2046 = vld [vmem:[#allocation9 + $0x42] ss:$0 sm:$0xff]
    %v2047 = vld [vmem:[#allocation9 + $0x43] ss:$0 sm:$0xff]
    %2048 = vadd.xlane.f32.xlu0 %v2045
    %v2049 = vpop.xlane.xlu0 %2048
    %v2050 = vmul.f32 %v2049, 0.015625
    %v2051 = vmul.f32 %v2045, %v2045
    %2052 = vadd.xlane.f32.xlu0 %v2051
    %v2053 = vpop.xlane.xlu0 %2052
    %v2054 = vmul.f32 %v2053, 0.015625
    %v2055 = vsub.f32 %v2045, %v2050
    %v2056 = vmul.f32 %v2050, %v2050
    %v2057 = vsub.f32 %v2054, %v2056
    %v2058 = vadd.f32 %v2057, 1e-05
    %v2059 = vrsqrt.pop %v2058
    %v2060 = vmul.f32 %v2059, %v2058
    %v2061 = vmul.f32 %v2060, %v2059
    %v2062 = vmul.f32 0.5, %v2061
    %v2063 = vsub.f32 1.5, %v2062
    %v2064 = vmul.f32 %v2059, %v2063
    %vm2065 = vweird.f32 %v2058
    %vm2066 = vweird.f32 %v2059
    %vm2067 = vmor %vm2065, %vm2066
    %v2068 = vsel %vm2067, %v2059, %v2064
    %v2069 = vmul.f32 %v2055, %v2068
    %v2070 = vmul.f32 %v2069, %v2046
    %v2071 = vadd.f32 %v2070, %v2047
    %v2072 = vld [vmem:[#allocation2 + $0x180] sm:$0xf]
    %v2073 = vld [vmem:[#allocation2 + $0x184] sm:$0xf]
    %v2074 = vld [vmem:[#allocation2 + $0x188] sm:$0xf]
    %v2075 = vld [vmem:[#allocation2 + $0x18c] sm:$0xf]
    %v2076 = vld [vmem:[#allocation2 + $0x190] sm:$0xf]
    %v2077 = vld [vmem:[#allocation2 + $0x194] sm:$0xf]
    %v2078 = vld [vmem:[#allocation2 + $0x198] sm:$0xf]
    %v2079 = vld [vmem:[#allocation2 + $0x19c] sm:$0xf]
    %v2080 = vld [vmem:[#allocation2 + $0x1a0] sm:$0xf]
    %v2081 = vld [vmem:[#allocation2 + $0x1a4] sm:$0xf]
    %v2082 = vld [vmem:[#allocation2 + $0x1a8] sm:$0xf]
    %v2083 = vld [vmem:[#allocation2 + $0x1ac] sm:$0xf]
    %v2084 = vld [vmem:[#allocation2 + $0x1b0] sm:$0xf]
    %v2085 = vld [vmem:[#allocation2 + $0x1b4] sm:$0xf]
    %v2086 = vld [vmem:[#allocation2 + $0x1b8] sm:$0xf]
    %v2087 = vld [vmem:[#allocation2 + $0x1bc] sm:$0xf]
    %v2088 = vunpack.c.l.bf16 %v2072
    %v2089 = vunpack.c.l.bf16 %v2073
    %v2090 = vunpack.c.l.bf16 %v2074
    %v2091 = vunpack.c.l.bf16 %v2075
    %v2092 = vunpack.c.l.bf16 %v2076
    %v2093 = vunpack.c.l.bf16 %v2077
    %v2094 = vunpack.c.l.bf16 %v2078
    %v2095 = vunpack.c.l.bf16 %v2079
    %v2096 = vunpack.c.l.bf16 %v2080
    %v2097 = vunpack.c.l.bf16 %v2081
    %v2098 = vunpack.c.l.bf16 %v2082
    %v2099 = vunpack.c.l.bf16 %v2083
    %v2100 = vunpack.c.l.bf16 %v2084
    %v2101 = vunpack.c.l.bf16 %v2085
    %v2102 = vunpack.c.l.bf16 %v2086
    %v2103 = vunpack.c.l.bf16 %v2087
    %v2104 = vld [vmem:[#allocation2 + $0x1c0] sm:$0xf]
    %v2105 = vld [vmem:[#allocation2 + $0x1c4] sm:$0xf]
    %v2106 = vld [vmem:[#allocation2 + $0x1c8] sm:$0xf]
    %v2107 = vld [vmem:[#allocation2 + $0x1cc] sm:$0xf]
    %v2108 = vld [vmem:[#allocation2 + $0x1d0] sm:$0xf]
    %v2109 = vld [vmem:[#allocation2 + $0x1d4] sm:$0xf]
    %v2110 = vld [vmem:[#allocation2 + $0x1d8] sm:$0xf]
    %v2111 = vld [vmem:[#allocation2 + $0x1dc] sm:$0xf]
    %v2112 = vld [vmem:[#allocation2 + $0x1e0] sm:$0xf]
    %v2113 = vld [vmem:[#allocation2 + $0x1e4] sm:$0xf]
    %v2114 = vld [vmem:[#allocation2 + $0x1e8] sm:$0xf]
    %v2115 = vld [vmem:[#allocation2 + $0x1ec] sm:$0xf]
    %v2116 = vld [vmem:[#allocation2 + $0x1f0] sm:$0xf]
    %v2117 = vld [vmem:[#allocation2 + $0x1f4] sm:$0xf]
    %v2118 = vld [vmem:[#allocation2 + $0x1f8] sm:$0xf]
    %v2119 = vld [vmem:[#allocation2 + $0x1fc] sm:$0xf]
    %v2120 = vunpack.c.l.bf16 %v2104
    %v2121 = vunpack.c.l.bf16 %v2105
    %v2122 = vunpack.c.l.bf16 %v2106
    %v2123 = vunpack.c.l.bf16 %v2107
    %v2124 = vunpack.c.l.bf16 %v2108
    %v2125 = vunpack.c.l.bf16 %v2109
    %v2126 = vunpack.c.l.bf16 %v2110
    %v2127 = vunpack.c.l.bf16 %v2111
    %v2128 = vunpack.c.l.bf16 %v2112
    %v2129 = vunpack.c.l.bf16 %v2113
    %v2130 = vunpack.c.l.bf16 %v2114
    %v2131 = vunpack.c.l.bf16 %v2115
    %v2132 = vunpack.c.l.bf16 %v2116
    %v2133 = vunpack.c.l.bf16 %v2117
    %v2134 = vunpack.c.l.bf16 %v2118
    %v2135 = vunpack.c.l.bf16 %v2119
    %v2136 = vld [vmem:[#allocation2 + $0x200] sm:$0xf]
    %v2137 = vld [vmem:[#allocation2 + $0x204] sm:$0xf]
    %v2138 = vld [vmem:[#allocation2 + $0x208] sm:$0xf]
    %v2139 = vld [vmem:[#allocation2 + $0x20c] sm:$0xf]
    %v2140 = vld [vmem:[#allocation2 + $0x210] sm:$0xf]
    %v2141 = vld [vmem:[#allocation2 + $0x214] sm:$0xf]
    %v2142 = vld [vmem:[#allocation2 + $0x218] sm:$0xf]
    %v2143 = vld [vmem:[#allocation2 + $0x21c] sm:$0xf]
    %v2144 = vld [vmem:[#allocation2 + $0x220] sm:$0xf]
    %v2145 = vld [vmem:[#allocation2 + $0x224] sm:$0xf]
    %v2146 = vld [vmem:[#allocation2 + $0x228] sm:$0xf]
    %v2147 = vld [vmem:[#allocation2 + $0x22c] sm:$0xf]
    %v2148 = vld [vmem:[#allocation2 + $0x230] sm:$0xf]
    %v2149 = vld [vmem:[#allocation2 + $0x234] sm:$0xf]
    %v2150 = vld [vmem:[#allocation2 + $0x238] sm:$0xf]
    %v2151 = vld [vmem:[#allocation2 + $0x23c] sm:$0xf]
    %v2152 = vunpack.c.l.bf16 %v2136
    %v2153 = vunpack.c.l.bf16 %v2137
    %v2154 = vunpack.c.l.bf16 %v2138
    %v2155 = vunpack.c.l.bf16 %v2139
    %v2156 = vunpack.c.l.bf16 %v2140
    %v2157 = vunpack.c.l.bf16 %v2141
    %v2158 = vunpack.c.l.bf16 %v2142
    %v2159 = vunpack.c.l.bf16 %v2143
    %v2160 = vunpack.c.l.bf16 %v2144
    %v2161 = vunpack.c.l.bf16 %v2145
    %v2162 = vunpack.c.l.bf16 %v2146
    %v2163 = vunpack.c.l.bf16 %v2147
    %v2164 = vunpack.c.l.bf16 %v2148
    %v2165 = vunpack.c.l.bf16 %v2149
    %v2166 = vunpack.c.l.bf16 %v2150
    %v2167 = vunpack.c.l.bf16 %v2151
    %v2168 = vld [vmem:[#allocation9 + $0x44] ss:$0 sm:$0xff]
    %2169 = vmatpush.msra.mxu0 %v2103
    %2170 = vmatpush.msra.mxu0 %v2102
    %2171 = vmatpush.msra.mxu0 %v2101
    %2172 = vmatpush.msra.mxu0 %v2100
    %2173 = vmatpush.msra.mxu0 %v2099
    %2174 = vmatpush.msra.mxu0 %v2098
    %2175 = vmatpush.msra.mxu0 %v2097
    %2176 = vmatpush.msra.mxu0 %v2096
    %2177 = vmatpush.msra.mxu0 %v2095
    %2178 = vmatpush.msra.mxu0 %v2094
    %2179 = vmatpush.msra.mxu0 %v2093
    %2180 = vmatpush.msra.mxu0 %v2092
    %2181 = vmatpush.msra.mxu0 %v2091
    %2182 = vmatpush.msra.mxu0 %v2090
    %2183 = vmatpush.msra.mxu0 %v2089
    %2184 = vmatpush.msra.mxu0 %v2088
    %2185 = vmatmul.f32.gmra.mxu0 %v2071
    %v2186 = vpop.f32.mrf.mxu0
    %v2187 = vadd.f32 %v2168, %v2186
    %2188 = vdwg.mxu0
    %v2189 = vadd.f32 %v2071, %v2187
    %v2190 = vld [vmem:[#allocation9 + $0x47] ss:$0 sm:$0xff]
    %v2191 = vld [vmem:[#allocation9 + $0x50] ss:$0 sm:$0xff]
    %2192 = vadd.xlane.f32.xlu0 %v2189
    %v2193 = vpop.xlane.xlu0 %2192
    %v2194 = vmul.f32 %v2193, 0.015625
    %v2195 = vmul.f32 %v2189, %v2189
    %2196 = vadd.xlane.f32.xlu0 %v2195
    %v2197 = vpop.xlane.xlu0 %2196
    %v2198 = vmul.f32 %v2197, 0.015625
    %v2199 = vsub.f32 %v2189, %v2194
    %v2200 = vmul.f32 %v2194, %v2194
    %v2201 = vsub.f32 %v2198, %v2200
    %v2202 = vadd.f32 %v2201, 1e-05
    %v2203 = vrsqrt.pop %v2202
    %v2204 = vmul.f32 %v2203, %v2202
    %v2205 = vmul.f32 %v2204, %v2203
    %v2206 = vmul.f32 0.5, %v2205
    %v2207 = vsub.f32 1.5, %v2206
    %v2208 = vmul.f32 %v2203, %v2207
    %vm2209 = vweird.f32 %v2202
    %vm2210 = vweird.f32 %v2203
    %vm2211 = vmor %vm2209, %vm2210
    %v2212 = vsel %vm2211, %v2203, %v2208
    %v2213 = vmul.f32 %v2199, %v2212
    %v2214 = vmul.f32 %v2213, %v2190
    %v2215 = vadd.f32 %v2214, %v2191
    %v2216 = vld [vmem:[#allocation9 + $0x45] ss:$0 sm:$0xff]
    %2217 = vmatpush.msra.mxu0 %v2135
    %2218 = vmatpush.msra.mxu0 %v2134
    %2219 = vmatpush.msra.mxu0 %v2133
    %2220 = vmatpush.msra.mxu0 %v2132
    %2221 = vmatpush.msra.mxu0 %v2131
    %2222 = vmatpush.msra.mxu0 %v2130
    %2223 = vmatpush.msra.mxu0 %v2129
    %2224 = vmatpush.msra.mxu0 %v2128
    %2225 = vmatpush.msra.mxu0 %v2127
    %2226 = vmatpush.msra.mxu0 %v2126
    %2227 = vmatpush.msra.mxu0 %v2125
    %2228 = vmatpush.msra.mxu0 %v2124
    %2229 = vmatpush.msra.mxu0 %v2123
    %2230 = vmatpush.msra.mxu0 %v2122
    %2231 = vmatpush.msra.mxu0 %v2121
    %2232 = vmatpush.msra.mxu0 %v2120
    %2233 = vmatmul.f32.gmra.mxu0 %v2215
    %v2234 = vpop.f32.mrf.mxu0
    %v2235 = vadd.f32 %v2216, %v2234
    %2236 = vdwg.mxu0
    %v2237 = vmax.f32 %v2235, 0.0
    %v2238 = vld [vmem:[#allocation9 + $0x46] ss:$0 sm:$0xff]
    %2239 = vmatpush.msra.mxu0 %v2167
    %2240 = vmatpush.msra.mxu0 %v2166
    %2241 = vmatpush.msra.mxu0 %v2165
    %2242 = vmatpush.msra.mxu0 %v2164
    %2243 = vmatpush.msra.mxu0 %v2163
    %2244 = vmatpush.msra.mxu0 %v2162
    %2245 = vmatpush.msra.mxu0 %v2161
    %2246 = vmatpush.msra.mxu0 %v2160
    %2247 = vmatpush.msra.mxu0 %v2159
    %2248 = vmatpush.msra.mxu0 %v2158
    %2249 = vmatpush.msra.mxu0 %v2157
    %2250 = vmatpush.msra.mxu0 %v2156
    %2251 = vmatpush.msra.mxu0 %v2155
    %2252 = vmatpush.msra.mxu0 %v2154
    %2253 = vmatpush.msra.mxu0 %v2153
    %2254 = vmatpush.msra.mxu0 %v2152
    %2255 = vmatmul.f32.gmra.mxu0 %v2237
    %v2256 = vpop.f32.mrf.mxu0
    %v2257 = vadd.f32 %v2238, %v2256
    %2258 = vdwg.mxu0
    %v2259 = vadd.f32 %v2215, %v2257
    %v2260 = vld [vmem:[#allocation9 + $0x51] ss:$0 sm:$0xff]
    %v2261 = vld [vmem:[#allocation9 + $0x52] ss:$0 sm:$0xff]
    %2262 = vadd.xlane.f32.xlu0 %v2259
    %v2263 = vpop.xlane.xlu0 %2262
    %v2264 = vmul.f32 %v2263, 0.015625
    %v2265 = vmul.f32 %v2259, %v2259
    %2266 = vadd.xlane.f32.xlu0 %v2265
    %v2267 = vpop.xlane.xlu0 %2266
    %v2268 = vmul.f32 %v2267, 0.015625
    %v2269 = vsub.f32 %v2259, %v2264
    %v2270 = vmul.f32 %v2264, %v2264
    %v2271 = vsub.f32 %v2268, %v2270
    %v2272 = vadd.f32 %v2271, 1e-05
    %v2273 = vrsqrt.pop %v2272
    %v2274 = vmul.f32 %v2273, %v2272
    %v2275 = vmul.f32 %v2274, %v2273
    %v2276 = vmul.f32 0.5, %v2275
    %v2277 = vsub.f32 1.5, %v2276
    %v2278 = vmul.f32 %v2273, %v2277
    %vm2279 = vweird.f32 %v2272
    %vm2280 = vweird.f32 %v2273
    %vm2281 = vmor %vm2279, %vm2280
    %v2282 = vsel %vm2281, %v2273, %v2278
    %v2283 = vmul.f32 %v2269, %v2282
    %v2284 = vmul.f32 %v2283, %v2260
    %v2285 = vadd.f32 %v2284, %v2261
    %v2286 = vld [vmem:[#allocation2 + $0x240] sm:$0xf]
    %v2287 = vld [vmem:[#allocation2 + $0x244] sm:$0xf]
    %v2288 = vld [vmem:[#allocation2 + $0x248] sm:$0xf]
    %v2289 = vld [vmem:[#allocation2 + $0x24c] sm:$0xf]
    %v2290 = vld [vmem:[#allocation2 + $0x250] sm:$0xf]
    %v2291 = vld [vmem:[#allocation2 + $0x254] sm:$0xf]
    %v2292 = vld [vmem:[#allocation2 + $0x258] sm:$0xf]
    %v2293 = vld [vmem:[#allocation2 + $0x25c] sm:$0xf]
    %v2294 = vld [vmem:[#allocation2 + $0x260] sm:$0xf]
    %v2295 = vld [vmem:[#allocation2 + $0x264] sm:$0xf]
    %v2296 = vld [vmem:[#allocation2 + $0x268] sm:$0xf]
    %v2297 = vld [vmem:[#allocation2 + $0x26c] sm:$0xf]
    %v2298 = vld [vmem:[#allocation2 + $0x270] sm:$0xf]
    %v2299 = vld [vmem:[#allocation2 + $0x274] sm:$0xf]
    %v2300 = vld [vmem:[#allocation2 + $0x278] sm:$0xf]
    %v2301 = vld [vmem:[#allocation2 + $0x27c] sm:$0xf]
    %v2302 = vunpack.c.l.bf16 %v2286
    %v2303 = vunpack.c.l.bf16 %v2287
    %v2304 = vunpack.c.l.bf16 %v2288
    %v2305 = vunpack.c.l.bf16 %v2289
    %v2306 = vunpack.c.l.bf16 %v2290
    %v2307 = vunpack.c.l.bf16 %v2291
    %v2308 = vunpack.c.l.bf16 %v2292
    %v2309 = vunpack.c.l.bf16 %v2293
    %v2310 = vunpack.c.l.bf16 %v2294
    %v2311 = vunpack.c.l.bf16 %v2295
    %v2312 = vunpack.c.l.bf16 %v2296
    %v2313 = vunpack.c.l.bf16 %v2297
    %v2314 = vunpack.c.l.bf16 %v2298
    %v2315 = vunpack.c.l.bf16 %v2299
    %v2316 = vunpack.c.l.bf16 %v2300
    %v2317 = vunpack.c.l.bf16 %v2301
    %v2318 = vld [vmem:[#allocation2 + $0x280] sm:$0xf]
    %v2319 = vld [vmem:[#allocation2 + $0x284] sm:$0xf]
    %v2320 = vld [vmem:[#allocation2 + $0x288] sm:$0xf]
    %v2321 = vld [vmem:[#allocation2 + $0x28c] sm:$0xf]
    %v2322 = vld [vmem:[#allocation2 + $0x290] sm:$0xf]
    %v2323 = vld [vmem:[#allocation2 + $0x294] sm:$0xf]
    %v2324 = vld [vmem:[#allocation2 + $0x298] sm:$0xf]
    %v2325 = vld [vmem:[#allocation2 + $0x29c] sm:$0xf]
    %v2326 = vld [vmem:[#allocation2 + $0x2a0] sm:$0xf]
    %v2327 = vld [vmem:[#allocation2 + $0x2a4] sm:$0xf]
    %v2328 = vld [vmem:[#allocation2 + $0x2a8] sm:$0xf]
    %v2329 = vld [vmem:[#allocation2 + $0x2ac] sm:$0xf]
    %v2330 = vld [vmem:[#allocation2 + $0x2b0] sm:$0xf]
    %v2331 = vld [vmem:[#allocation2 + $0x2b4] sm:$0xf]
    %v2332 = vld [vmem:[#allocation2 + $0x2b8] sm:$0xf]
    %v2333 = vld [vmem:[#allocation2 + $0x2bc] sm:$0xf]
    %v2334 = vunpack.c.l.bf16 %v2318
    %v2335 = vunpack.c.l.bf16 %v2319
    %v2336 = vunpack.c.l.bf16 %v2320
    %v2337 = vunpack.c.l.bf16 %v2321
    %v2338 = vunpack.c.l.bf16 %v2322
    %v2339 = vunpack.c.l.bf16 %v2323
    %v2340 = vunpack.c.l.bf16 %v2324
    %v2341 = vunpack.c.l.bf16 %v2325
    %v2342 = vunpack.c.l.bf16 %v2326
    %v2343 = vunpack.c.l.bf16 %v2327
    %v2344 = vunpack.c.l.bf16 %v2328
    %v2345 = vunpack.c.l.bf16 %v2329
    %v2346 = vunpack.c.l.bf16 %v2330
    %v2347 = vunpack.c.l.bf16 %v2331
    %v2348 = vunpack.c.l.bf16 %v2332
    %v2349 = vunpack.c.l.bf16 %v2333
    %v2350 = vld [vmem:[#allocation2 + $0x2c0] sm:$0xf]
    %v2351 = vld [vmem:[#allocation2 + $0x2c4] sm:$0xf]
    %v2352 = vld [vmem:[#allocation2 + $0x2c8] sm:$0xf]
    %v2353 = vld [vmem:[#allocation2 + $0x2cc] sm:$0xf]
    %v2354 = vld [vmem:[#allocation2 + $0x2d0] sm:$0xf]
    %v2355 = vld [vmem:[#allocation2 + $0x2d4] sm:$0xf]
    %v2356 = vld [vmem:[#allocation2 + $0x2d8] sm:$0xf]
    %v2357 = vld [vmem:[#allocation2 + $0x2dc] sm:$0xf]
    %v2358 = vld [vmem:[#allocation2 + $0x2e0] sm:$0xf]
    %v2359 = vld [vmem:[#allocation2 + $0x2e4] sm:$0xf]
    %v2360 = vld [vmem:[#allocation2 + $0x2e8] sm:$0xf]
    %v2361 = vld [vmem:[#allocation2 + $0x2ec] sm:$0xf]
    %v2362 = vld [vmem:[#allocation2 + $0x2f0] sm:$0xf]
    %v2363 = vld [vmem:[#allocation2 + $0x2f4] sm:$0xf]
    %v2364 = vld [vmem:[#allocation2 + $0x2f8] sm:$0xf]
    %v2365 = vld [vmem:[#allocation2 + $0x2fc] sm:$0xf]
    %v2366 = vunpack.c.l.bf16 %v2350
    %v2367 = vunpack.c.l.bf16 %v2351
    %v2368 = vunpack.c.l.bf16 %v2352
    %v2369 = vunpack.c.l.bf16 %v2353
    %v2370 = vunpack.c.l.bf16 %v2354
    %v2371 = vunpack.c.l.bf16 %v2355
    %v2372 = vunpack.c.l.bf16 %v2356
    %v2373 = vunpack.c.l.bf16 %v2357
    %v2374 = vunpack.c.l.bf16 %v2358
    %v2375 = vunpack.c.l.bf16 %v2359
    %v2376 = vunpack.c.l.bf16 %v2360
    %v2377 = vunpack.c.l.bf16 %v2361
    %v2378 = vunpack.c.l.bf16 %v2362
    %v2379 = vunpack.c.l.bf16 %v2363
    %v2380 = vunpack.c.l.bf16 %v2364
    %v2381 = vunpack.c.l.bf16 %v2365
    %v2382 = vld [vmem:[#allocation9 + $0x53] ss:$0 sm:$0xff]
    %2383 = vmatpush.msra.mxu0 %v2317
    %2384 = vmatpush.msra.mxu0 %v2316
    %2385 = vmatpush.msra.mxu0 %v2315
    %2386 = vmatpush.msra.mxu0 %v2314
    %2387 = vmatpush.msra.mxu0 %v2313
    %2388 = vmatpush.msra.mxu0 %v2312
    %2389 = vmatpush.msra.mxu0 %v2311
    %2390 = vmatpush.msra.mxu0 %v2310
    %2391 = vmatpush.msra.mxu0 %v2309
    %2392 = vmatpush.msra.mxu0 %v2308
    %2393 = vmatpush.msra.mxu0 %v2307
    %2394 = vmatpush.msra.mxu0 %v2306
    %2395 = vmatpush.msra.mxu0 %v2305
    %2396 = vmatpush.msra.mxu0 %v2304
    %2397 = vmatpush.msra.mxu0 %v2303
    %2398 = vmatpush.msra.mxu0 %v2302
    %2399 = vmatmul.f32.gmra.mxu0 %v2285
    %v2400 = vpop.f32.mrf.mxu0
    %v2401 = vadd.f32 %v2382, %v2400
    %2402 = vdwg.mxu0
    %v2403 = vadd.f32 %v2285, %v2401
    %v2404 = vld [vmem:[#allocation9 + $0x56] ss:$0 sm:$0xff]
    %v2405 = vld [vmem:[#allocation9 + $0x57] ss:$0 sm:$0xff]
    %2406 = vadd.xlane.f32.xlu0 %v2403
    %v2407 = vpop.xlane.xlu0 %2406
    %v2408 = vmul.f32 %v2407, 0.015625
    %v2409 = vmul.f32 %v2403, %v2403
    %2410 = vadd.xlane.f32.xlu0 %v2409
    %v2411 = vpop.xlane.xlu0 %2410
    %v2412 = vmul.f32 %v2411, 0.015625
    %v2413 = vsub.f32 %v2403, %v2408
    %v2414 = vmul.f32 %v2408, %v2408
    %v2415 = vsub.f32 %v2412, %v2414
    %v2416 = vadd.f32 %v2415, 1e-05
    %v2417 = vrsqrt.pop %v2416
    %v2418 = vmul.f32 %v2417, %v2416
    %v2419 = vmul.f32 %v2418, %v2417
    %v2420 = vmul.f32 0.5, %v2419
    %v2421 = vsub.f32 1.5, %v2420
    %v2422 = vmul.f32 %v2417, %v2421
    %vm2423 = vweird.f32 %v2416
    %vm2424 = vweird.f32 %v2417
    %vm2425 = vmor %vm2423, %vm2424
    %v2426 = vsel %vm2425, %v2417, %v2422
    %v2427 = vmul.f32 %v2413, %v2426
    %v2428 = vmul.f32 %v2427, %v2404
    %v2429 = vadd.f32 %v2428, %v2405
    %v2430 = vld [vmem:[#allocation9 + $0x54] ss:$0 sm:$0xff]
    %2431 = vmatpush.msra.mxu0 %v2349
    %2432 = vmatpush.msra.mxu0 %v2348
    %2433 = vmatpush.msra.mxu0 %v2347
    %2434 = vmatpush.msra.mxu0 %v2346
    %2435 = vmatpush.msra.mxu0 %v2345
    %2436 = vmatpush.msra.mxu0 %v2344
    %2437 = vmatpush.msra.mxu0 %v2343
    %2438 = vmatpush.msra.mxu0 %v2342
    %2439 = vmatpush.msra.mxu0 %v2341
    %2440 = vmatpush.msra.mxu0 %v2340
    %2441 = vmatpush.msra.mxu0 %v2339
    %2442 = vmatpush.msra.mxu0 %v2338
    %2443 = vmatpush.msra.mxu0 %v2337
    %2444 = vmatpush.msra.mxu0 %v2336
    %2445 = vmatpush.msra.mxu0 %v2335
    %2446 = vmatpush.msra.mxu0 %v2334
    %2447 = vmatmul.f32.gmra.mxu0 %v2429
    %v2448 = vpop.f32.mrf.mxu0
    %v2449 = vadd.f32 %v2430, %v2448
    %2450 = vdwg.mxu0
    %v2451 = vmax.f32 %v2449, 0.0
    %v2452 = vld [vmem:[#allocation9 + $0x55] ss:$0 sm:$0xff]
    %2453 = vmatpush.msra.mxu0 %v2381
    %2454 = vmatpush.msra.mxu0 %v2380
    %2455 = vmatpush.msra.mxu0 %v2379
    %2456 = vmatpush.msra.mxu0 %v2378
    %2457 = vmatpush.msra.mxu0 %v2377
    %2458 = vmatpush.msra.mxu0 %v2376
    %2459 = vmatpush.msra.mxu0 %v2375
    %2460 = vmatpush.msra.mxu0 %v2374
    %2461 = vmatpush.msra.mxu0 %v2373
    %2462 = vmatpush.msra.mxu0 %v2372
    %2463 = vmatpush.msra.mxu0 %v2371
    %2464 = vmatpush.msra.mxu0 %v2370
    %2465 = vmatpush.msra.mxu0 %v2369
    %2466 = vmatpush.msra.mxu0 %v2368
    %2467 = vmatpush.msra.mxu0 %v2367
    %2468 = vmatpush.msra.mxu0 %v2366
    %2469 = vmatmul.f32.gmra.mxu0 %v2451
    %v2470 = vpop.f32.mrf.mxu0
    %v2471 = vadd.f32 %v2452, %v2470
    %2472 = vdwg.mxu0
    %v2473 = vadd.f32 %v2429, %v2471
    %v2474 = vld [vmem:[#allocation9 + $0x60] ss:$0 sm:$0xff]
    %v2475 = vld [vmem:[#allocation9 + $0x61] ss:$0 sm:$0xff]
    %2476 = vadd.xlane.f32.xlu0 %v2473
    %v2477 = vpop.xlane.xlu0 %2476
    %v2478 = vmul.f32 %v2477, 0.015625
    %v2479 = vmul.f32 %v2473, %v2473
    %2480 = vadd.xlane.f32.xlu0 %v2479
    %v2481 = vpop.xlane.xlu0 %2480
    %v2482 = vmul.f32 %v2481, 0.015625
    %v2483 = vsub.f32 %v2473, %v2478
    %v2484 = vmul.f32 %v2478, %v2478
    %v2485 = vsub.f32 %v2482, %v2484
    %v2486 = vadd.f32 %v2485, 1e-05
    %v2487 = vrsqrt.pop %v2486
    %v2488 = vmul.f32 %v2487, %v2486
    %v2489 = vmul.f32 %v2488, %v2487
    %v2490 = vmul.f32 0.5, %v2489
    %v2491 = vsub.f32 1.5, %v2490
    %v2492 = vmul.f32 %v2487, %v2491
    %vm2493 = vweird.f32 %v2486
    %vm2494 = vweird.f32 %v2487
    %vm2495 = vmor %vm2493, %vm2494
    %v2496 = vsel %vm2495, %v2487, %v2492
    %v2497 = vmul.f32 %v2483, %v2496
    %v2498 = vmul.f32 %v2497, %v2474
    %v2499 = vadd.f32 %v2498, %v2475
    %v2500 = vld [vmem:[#allocation2 + $0x40] sm:$0xf]
    %v2501 = vld [vmem:[#allocation2 + $0x44] sm:$0xf]
    %v2502 = vld [vmem:[#allocation2 + $0x48] sm:$0xf]
    %v2503 = vld [vmem:[#allocation2 + $0x4c] sm:$0xf]
    %v2504 = vld [vmem:[#allocation2 + $0x50] sm:$0xf]
    %v2505 = vld [vmem:[#allocation2 + $0x54] sm:$0xf]
    %v2506 = vld [vmem:[#allocation2 + $0x58] sm:$0xf]
    %v2507 = vld [vmem:[#allocation2 + $0x5c] sm:$0xf]
    %v2508 = vld [vmem:[#allocation2 + $0x60] sm:$0xf]
    %v2509 = vld [vmem:[#allocation2 + $0x64] sm:$0xf]
    %v2510 = vld [vmem:[#allocation2 + $0x68] sm:$0xf]
    %v2511 = vld [vmem:[#allocation2 + $0x6c] sm:$0xf]
    %v2512 = vld [vmem:[#allocation2 + $0x70] sm:$0xf]
    %v2513 = vld [vmem:[#allocation2 + $0x74] sm:$0xf]
    %v2514 = vld [vmem:[#allocation2 + $0x78] sm:$0xf]
    %v2515 = vld [vmem:[#allocation2 + $0x7c] sm:$0xf]
    %v2516 = vunpack.c.l.bf16 %v2500
    %v2517 = vunpack.c.l.bf16 %v2501
    %v2518 = vunpack.c.l.bf16 %v2502
    %v2519 = vunpack.c.l.bf16 %v2503
    %v2520 = vunpack.c.l.bf16 %v2504
    %v2521 = vunpack.c.l.bf16 %v2505
    %v2522 = vunpack.c.l.bf16 %v2506
    %v2523 = vunpack.c.l.bf16 %v2507
    %v2524 = vunpack.c.l.bf16 %v2508
    %v2525 = vunpack.c.l.bf16 %v2509
    %v2526 = vunpack.c.l.bf16 %v2510
    %v2527 = vunpack.c.l.bf16 %v2511
    %v2528 = vunpack.c.l.bf16 %v2512
    %v2529 = vunpack.c.l.bf16 %v2513
    %v2530 = vunpack.c.l.bf16 %v2514
    %v2531 = vunpack.c.l.bf16 %v2515
    %v2532 = vld [vmem:[#allocation9 + $0x4] ss:$0 sm:$0xff]
    %2533 = vmatpush.msra.mxu0 %v2531
    %2534 = vmatpush.msra.mxu0 %v2530
    %2535 = vmatpush.msra.mxu0 %v2529
    %2536 = vmatpush.msra.mxu0 %v2528
    %2537 = vmatpush.msra.mxu0 %v2527
    %2538 = vmatpush.msra.mxu0 %v2526
    %2539 = vmatpush.msra.mxu0 %v2525
    %2540 = vmatpush.msra.mxu0 %v2524
    %2541 = vmatpush.msra.mxu0 %v2523
    %2542 = vmatpush.msra.mxu0 %v2522
    %2543 = vmatpush.msra.mxu0 %v2521
    %2544 = vmatpush.msra.mxu0 %v2520
    %2545 = vmatpush.msra.mxu0 %v2519
    %2546 = vmatpush.msra.mxu0 %v2518
    %2547 = vmatpush.msra.mxu0 %v2517
    %2548 = vmatpush.msra.mxu0 %v2516
    %2549 = vmatmul.f32.gmra.mxu0 %v2499
    %v2550 = vpop.f32.mrf.mxu0
    %v2551 = vadd.f32 %v2532, %v2550
    %2552 = vdwg.mxu0
    %v2553 = vxor.u32 %v485, 2147483648
    %v2554 = vmul.f32 %v2553, 1.442695
    %v2555 = vpow.pop %v2554
    %v2556 = vadd.f32 %v2555, 1.0
    %v2557 = vrcp.pop %v2556
    %v2558 = vmul.f32 %v2556, %v2557
    %v2559 = vsub.f32 1.0, %v2558
    %v2560 = vmul.f32 %v2557, %v2559
    %v2561 = vadd.f32 %v2557, %v2560
    %vm2562 = vweird.f32 %v2556
    %vm2563 = vweird.f32 %v2557
    %vm2564 = vmor %vm2562, %vm2563
    %v2565 = vsel %vm2564, %v2557, %v2561
    %v2566 = vand.u32 2147483647, %v2556
    %vm2567 = vcmp.eq.f32.partialorder %v2566, 8.507059e+37
    %v2568 = vand.u32 %v2556, 2147483648
    %v2569 = vor.u32 1.1754944e-38, %v2568
    %v2570 = vsel %vm2567, %v2569, %v2565
    %v2571 = vmul.f32 1.0, %v2570
    %v2572 = vmul.f32 %v2551, %v2571
    %v2573 = vadd.f32 %v2572, %v605
    %v2574 = vld [vmem:[#allocation2 + $0x80] sm:$0xf]
    %v2575 = vld [vmem:[#allocation2 + $0x84] sm:$0xf]
    %v2576 = vld [vmem:[#allocation2 + $0x88] sm:$0xf]
    %v2577 = vld [vmem:[#allocation2 + $0x8c] sm:$0xf]
    %v2578 = vld [vmem:[#allocation2 + $0x90] sm:$0xf]
    %v2579 = vld [vmem:[#allocation2 + $0x94] sm:$0xf]
    %v2580 = vld [vmem:[#allocation2 + $0x98] sm:$0xf]
    %v2581 = vld [vmem:[#allocation2 + $0x9c] sm:$0xf]
    %v2582 = vld [vmem:[#allocation2 + $0xa0] sm:$0xf]
    %v2583 = vld [vmem:[#allocation2 + $0xa4] sm:$0xf]
    %v2584 = vld [vmem:[#allocation2 + $0xa8] sm:$0xf]
    %v2585 = vld [vmem:[#allocation2 + $0xac] sm:$0xf]
    %v2586 = vld [vmem:[#allocation2 + $0xb0] sm:$0xf]
    %v2587 = vld [vmem:[#allocation2 + $0xb4] sm:$0xf]
    %v2588 = vld [vmem:[#allocation2 + $0xb8] sm:$0xf]
    %v2589 = vld [vmem:[#allocation2 + $0xbc] sm:$0xf]
    %v2590 = vunpack.c.l.bf16 %v2574
    %v2591 = vunpack.c.l.bf16 %v2575
    %v2592 = vunpack.c.l.bf16 %v2576
    %v2593 = vunpack.c.l.bf16 %v2577
    %v2594 = vunpack.c.l.bf16 %v2578
    %v2595 = vunpack.c.l.bf16 %v2579
    %v2596 = vunpack.c.l.bf16 %v2580
    %v2597 = vunpack.c.l.bf16 %v2581
    %v2598 = vunpack.c.l.bf16 %v2582
    %v2599 = vunpack.c.l.bf16 %v2583
    %v2600 = vunpack.c.l.bf16 %v2584
    %v2601 = vunpack.c.l.bf16 %v2585
    %v2602 = vunpack.c.l.bf16 %v2586
    %v2603 = vunpack.c.l.bf16 %v2587
    %v2604 = vunpack.c.l.bf16 %v2588
    %v2605 = vunpack.c.l.bf16 %v2589
    %v2606 = vld [vmem:[#allocation9 + $0x5] ss:$0 sm:$0xff]
    %2607 = vmatpush.msra.mxu0 %v2605
    %2608 = vmatpush.msra.mxu0 %v2604
    %2609 = vmatpush.msra.mxu0 %v2603
    %2610 = vmatpush.msra.mxu0 %v2602
    %2611 = vmatpush.msra.mxu0 %v2601
    %2612 = vmatpush.msra.mxu0 %v2600
    %2613 = vmatpush.msra.mxu0 %v2599
    %2614 = vmatpush.msra.mxu0 %v2598
    %2615 = vmatpush.msra.mxu0 %v2597
    %2616 = vmatpush.msra.mxu0 %v2596
    %2617 = vmatpush.msra.mxu0 %v2595
    %2618 = vmatpush.msra.mxu0 %v2594
    %2619 = vmatpush.msra.mxu0 %v2593
    %2620 = vmatpush.msra.mxu0 %v2592
    %2621 = vmatpush.msra.mxu0 %v2591
    %2622 = vmatpush.msra.mxu0 %v2590
    %2623 = vmatmul.f32.gmra.mxu0 %v2573
    %v2624 = vpop.f32.mrf.mxu0
    %v2625 = vadd.f32 %v2606, %v2624
    %2626 = vdwg.mxu0
    %v2627 = vxor.u32 %v505, 2147483648
    %v2628 = vmul.f32 %v2627, 1.442695
    %v2629 = vpow.pop %v2628
    %v2630 = vadd.f32 %v2629, 1.0
    %v2631 = vrcp.pop %v2630
    %v2632 = vmul.f32 %v2630, %v2631
    %v2633 = vsub.f32 1.0, %v2632
    %v2634 = vmul.f32 %v2631, %v2633
    %v2635 = vadd.f32 %v2631, %v2634
    %vm2636 = vweird.f32 %v2630
    %vm2637 = vweird.f32 %v2631
    %vm2638 = vmor %vm2636, %vm2637
    %v2639 = vsel %vm2638, %v2631, %v2635
    %v2640 = vand.u32 2147483647, %v2630
    %vm2641 = vcmp.eq.f32.partialorder %v2640, 8.507059e+37
    %v2642 = vand.u32 %v2630, 2147483648
    %v2643 = vor.u32 1.1754944e-38, %v2642
    %v2644 = vsel %vm2641, %v2643, %v2639
    %v2645 = vmul.f32 1.0, %v2644
    %v2646 = vmul.f32 %v2625, %v2645
    %v2647 = vadd.f32 %v2646, %v625
    %2648 = vst [vmem:[%s6] sm:$0xff] %v2647
    // Predicated region
    $region42: #{hminet_forward.1} parent=1 // pred_check
      _
    $region43: #{hminet_forward.1} parent=1 // pred_check_branch
      %2650 = sbr.rel (0) target = $region45
    $region44: #{hminet_forward.1} parent=1 // pred_region
      _
    $region45: #{hminet_forward.1} parent=1 // pred_fallthru
      _
    // Predicated region
    $region46: #{hminet_forward.1} parent=1 // pred_check
      _
    $region47: #{hminet_forward.1} parent=1 // pred_check_branch
      %2652 = sbr.rel (0) target = $region49
    $region48: #{hminet_forward.1} parent=1 // pred_region
      _
    $region49: #{hminet_forward.1} parent=1 // pred_fallthru
      _
    %2653 = vsyncpa [#allocation5], 1
    %2654 = vsyncpa [#allocation7], 1
    %2655 = vsyncpa [#allocation10], 1
  %2656 = vsyncmov [#allocation3]
  %s2657 = vpop.sfrf %2656
  %p2658 = scmp.eq.s32.totalorder %s2657, 0
  %p2659 = pneg %p2658
  %2661 = shalt.err (%p2659)

</llo_original>
